<compile_context>
chip_gen: v7x
topology: tpu7x:2x2x1
jax: 0.10.0
libtpu: 0.0.40
codegen_flags: <defaults>
</compile_context>

<pallas_src>
import jax
import jax.numpy as jnp
import numpy as np
from jax import lax
from jax.experimental import pallas as pl
from jax.experimental.pallas import tpu as pltpu

VOCAB = 50
EMBED = 16
HIDDEN = 100     # matches HIDDEN_SIZE=100 in the original module
SEQ = 8
BATCH = 2

# Padded, TPU-native sizes (sublane multiple of 8, lane multiple of 128).
BPAD = 8
EPAD = 128
HPAD = 128
VPAD = 128


# ---------------------------------------------------------------------------
# Fused kernel: input projection (all T at once) -> LSTM recurrence (in-kernel
# unrolled loop, h/c in VMEM scratch) -> output projection (all T at once).
# ---------------------------------------------------------------------------
def _rnn_fused_kernel(emb_ref, wih_ref, bias_ref, whh_ref, h0_ref, c0_ref,
                      wlin_ref, blin_ref,
                      logits_ref, hN_ref, cN_ref,
                      xw_sc, hseq_sc, h_sc, c_sc):
    T, Bp, Hp = hseq_sc.shape

    # ---- Prologue: hoisted input projection for all timesteps (one MXU pass).
    xw = (jnp.dot(emb_ref[...], wih_ref[...], preferred_element_type=jnp.float32)
          + bias_ref[...])                                   # (T*Bp, 4*Hp)
    xw_sc[...] = xw.reshape(T, Bp, 4 * Hp)

    h_sc[...] = h0_ref[...]
    c_sc[...] = c0_ref[...]

    # ---- Recurrence: only h @ W_hh^T stays inside the time loop.
    # Gate order matches PyTorch nn.LSTM: [i, f, g, o].  Hp == 128 keeps every
    # gate slice on a full 128-lane vreg boundary (no relayout).  Padded gate
    # columns have zero weights/bias, so their c/h stay exactly 0.
    def step(t, carry):
        gates = (xw_sc[t]
                 + jnp.dot(h_sc[...], whh_ref[...],
                           preferred_element_type=jnp.float32))   # (Bp, 4*Hp)
        i = jax.nn.sigmoid(gates[:, 0 * Hp:1 * Hp])
        f = jax.nn.sigmoid(gates[:, 1 * Hp:2 * Hp])
        g = jnp.tanh(gates[:, 2 * Hp:3 * Hp])
        o = jax.nn.sigmoid(gates[:, 3 * Hp:4 * Hp])
        c = f * c_sc[...] + i * g
        h = o * jnp.tanh(c)
        c_sc[...] = c
        h_sc[...] = h
        hseq_sc[t] = h
        return carry

    lax.fori_loop(0, T, step, 0, unroll=True)

    # Final states written once (no per-step redundant stores).
    hN_ref[...] = h_sc[...]
    cN_ref[...] = c_sc[...]

    # ---- Epilogue: fused Linear over the VMEM-resident hidden sequence.
    hs = hseq_sc[...].reshape(T * Bp, Hp)
    logits = (jnp.dot(hs, wlin_ref[...], preferred_element_type=jnp.float32)
              + blin_ref[...])                               # (T*Bp, Vp)
    logits_ref[...] = logits.reshape(T, Bp, logits_ref.shape[-1])


# ---------------------------------------------------------------------------
# One-time parameter repack: pre-transpose, pre-sum bias, gate-aligned padding.
# ---------------------------------------------------------------------------
def prepare_params(params):
    H, E, V = HIDDEN, EMBED, VOCAB
    embed_p = jnp.zeros((V, EPAD), jnp.float32).at[:, :E].set(params["embed"])

    wih_t = params["w_ih"].T.reshape(E, 4, H)                    # gate-major
    wih_p = (jnp.zeros((EPAD, 4, HPAD), jnp.float32)
             .at[:E, :, :H].set(wih_t).reshape(EPAD, 4 * HPAD))

    whh_t = params["w_hh"].T.reshape(H, 4, H)
    whh_p = (jnp.zeros((HPAD, 4, HPAD), jnp.float32)
             .at[:H, :, :H].set(whh_t).reshape(HPAD, 4 * HPAD))

    bias = (params["b_ih"] + params["b_hh"]).reshape(4, H)
    bias_p = (jnp.zeros((4, HPAD), jnp.float32)
              .at[:, :H].set(bias).reshape(1, 4 * HPAD))

    wlin_p = (jnp.zeros((HPAD, VPAD), jnp.float32)
              .at[:H, :V].set(params["w_lin"].T))
    blin_p = jnp.zeros((1, VPAD), jnp.float32).at[0, :V].set(params["b_lin"])

    return dict(embed=embed_p, wih=wih_p, whh=whh_p, bias=bias_p,
                wlin=wlin_p, blin=blin_p)


# ---------------------------------------------------------------------------
# Full forward pass (mirrors RNNModel.forward).
# ---------------------------------------------------------------------------
def rnn_forward(prep, text, hidden):
    T, B = text.shape
    # Embedding lookup = gather (plain-JAX glue); padded batch columns use
    # token 0 and are sliced away at the end.
    text_p = jnp.zeros((T, BPAD), jnp.int32).at[:, :B].set(text)
    emb = prep["embed"][text_p].reshape(T * BPAD, EPAD)          # (T*Bp, Ep)

    h0 = jnp.zeros((BPAD, HPAD), jnp.float32).at[:B, :HIDDEN].set(hidden[0][0])
    c0 = jnp.zeros((BPAD, HPAD), jnp.float32).at[:B, :HIDDEN].set(hidden[1][0])

    # Single kernel invocation: everything fits in VMEM (≈1 MiB total), so all
    # operands use whole-array VMEM blocks (no grid / no pipelining needed).
    logits_p, hN_p, cN_p = pl.pallas_call(
        _rnn_fused_kernel,
        out_shape=(jax.ShapeDtypeStruct((SEQ, BPAD, VPAD), jnp.float32),
                   jax.ShapeDtypeStruct((BPAD, HPAD), jnp.float32),
                   jax.ShapeDtypeStruct((BPAD, HPAD), jnp.float32)),
        scratch_shapes=[
            pltpu.VMEM((SEQ, BPAD, 4 * HPAD), jnp.float32),   # hoisted x@W_ih
            pltpu.VMEM((SEQ, BPAD, HPAD), jnp.float32),       # hidden sequence
            pltpu.VMEM((BPAD, HPAD), jnp.float32),            # h carry
            pltpu.VMEM((BPAD, HPAD), jnp.float32),            # c carry
        ],
    )(emb, prep["wih"], prep["bias"], prep["whh"], h0, c0,
      prep["wlin"], prep["blin"])

    logits = logits_p[:, :B, :VOCAB]
    hN = hN_p[:B, :HIDDEN][None]
    cN = cN_p[:B, :HIDDEN][None]
    return logits, (hN, cN)


# ---------------------------------------------------------------------------
# Pure-JAX reference (unpadded, PyTorch layout) for verification.
# ---------------------------------------------------------------------------
def rnn_forward_ref(params, text, hidden):
    emb = params["embed"][text]
    h0, c0 = hidden[0][0], hidden[1][0]

    def step(carry, x):
        h, c = carry
        gates = (x @ params["w_ih"].T + params["b_ih"]
                 + h @ params["w_hh"].T + params["b_hh"])
        i, f, g, o = jnp.split(gates, 4, axis=-1)
        i, f, g, o = jax.nn.sigmoid(i), jax.nn.sigmoid(f), jnp.tanh(g), jax.nn.sigmoid(o)
        c = f * c + i * g
        h = o * jnp.tanh(c)
        return (h, c), h

    (hN, cN), out = lax.scan(step, (h0, c0), emb)
    T, B, H = out.shape
    logits = out.reshape(-1, H) @ params["w_lin"].T + params["b_lin"]
    return logits.reshape(T, B, -1), (hN[None], cN[None])


def init_params(key):
    ks = jax.random.split(key, 6)
    scale = 0.1
    return {
        "embed": scale * jax.random.normal(ks[0], (VOCAB, EMBED), jnp.float32),
        "w_ih":  scale * jax.random.normal(ks[1], (4 * HIDDEN, EMBED), jnp.float32),
        "w_hh":  scale * jax.random.normal(ks[2], (4 * HIDDEN, HIDDEN), jnp.float32),
        "b_ih":  scale * jax.random.normal(ks[3], (4 * HIDDEN,), jnp.float32),
        "b_hh":  scale * jax.random.normal(ks[4], (4 * HIDDEN,), jnp.float32),
        "w_lin": scale * jax.random.normal(ks[5], (VOCAB, HIDDEN), jnp.float32),
        "b_lin": jnp.zeros((VOCAB,), jnp.float32),
    }


def init_hidden(bsz):
    # Mirrors RNNModel.init_hidden: zeros of shape (1, bsz, hidden)
    return (jnp.zeros((1, bsz, HIDDEN), jnp.float32),
            jnp.zeros((1, bsz, HIDDEN), jnp.float32))


if __name__ == "__main__":
    key = jax.random.PRNGKey(0)
    pkey, tkey = jax.random.split(key)
    params = init_params(pkey)
    prep = prepare_params(params)          # one-time repack (not per call)
    text = jax.random.randint(tkey, (SEQ, BATCH), 0, VOCAB, jnp.int32)
    hidden = init_hidden(BATCH)

    logits, (hN, cN) = rnn_forward(prep, text, hidden)
    jax.block_until_ready((logits, hN, cN))

    ref_logits, (ref_h, ref_c) = rnn_forward_ref(params, text, hidden)
    np.testing.assert_allclose(np.asarray(logits), np.asarray(ref_logits),
                               rtol=2e-3, atol=2e-3)
    np.testing.assert_allclose(np.asarray(hN), np.asarray(ref_h), rtol=2e-3, atol=2e-3)
    np.testing.assert_allclose(np.asarray(cN), np.asarray(ref_c), rtol=2e-3, atol=2e-3)

    print("KERNEL_OK")
</pallas_src>

<mosaic_0001>
module attributes {stable_mosaic.version = 11 : i64} {
  func.func @_rnn_fused_kernel(%arg0: memref<64x128xf32, #tpu.memory_space<vmem>>, %arg1: memref<128x512xf32, #tpu.memory_space<vmem>>, %arg2: memref<1x512xf32, #tpu.memory_space<vmem>>, %arg3: memref<128x512xf32, #tpu.memory_space<vmem>>, %arg4: memref<8x128xf32, #tpu.memory_space<vmem>>, %arg5: memref<8x128xf32, #tpu.memory_space<vmem>>, %arg6: memref<128x128xf32, #tpu.memory_space<vmem>>, %arg7: memref<1x128xf32, #tpu.memory_space<vmem>>, %arg8: memref<8x8x128xf32, #tpu.memory_space<vmem>>, %arg9: memref<8x128xf32, #tpu.memory_space<vmem>>, %arg10: memref<8x128xf32, #tpu.memory_space<vmem>>, %arg11: memref<8x8x512xf32, #tpu.memory_space<vmem>>, %arg12: memref<8x8x128xf32, #tpu.memory_space<vmem>>, %arg13: memref<8x128xf32, #tpu.memory_space<vmem>>, %arg14: memref<8x128xf32, #tpu.memory_space<vmem>>) attributes {dimension_semantics = [], scalar_prefetch = 0 : i64, scratch_operands = 4 : i64, tpu.core_type = #tpu.core_type<tc>} {
    %c0 = arith.constant 0 : index
    %c0_0 = arith.constant 0 : index
    %0 = vector.load %arg0[%c0, %c0_0] : memref<64x128xf32, #tpu.memory_space<vmem>>, vector<64x128xf32>
    %c0_1 = arith.constant 0 : index
    %c0_2 = arith.constant 0 : index
    %1 = vector.load %arg1[%c0_1, %c0_2] : memref<128x512xf32, #tpu.memory_space<vmem>>, vector<128x512xf32>
    %cst = arith.constant dense<0.000000e+00> : vector<64x512xf32>
    %2 = tpu.matmul %0, %1, %cst {dimension_numbers = #tpu.dot_dimension_numbers<[1], [0], [0], [1], [0, 0, 1, 1], [], []>} : vector<64x128xf32>, vector<128x512xf32>, vector<64x512xf32> -> vector<64x512xf32>
    %c0_3 = arith.constant 0 : index
    %c0_4 = arith.constant 0 : index
    %3 = vector.load %arg2[%c0_3, %c0_4] : memref<1x512xf32, #tpu.memory_space<vmem>>, vector<1x512xf32>
    %4 = vector.broadcast %3 : vector<1x512xf32> to vector<64x512xf32>
    %5 = arith.addf %2, %4 : vector<64x512xf32>
    %6 = vector.shape_cast %5 : vector<64x512xf32> to vector<8x8x512xf32>
    %c0_5 = arith.constant 0 : index
    %c0_6 = arith.constant 0 : index
    %c0_7 = arith.constant 0 : index
    %7 = vector.load %arg11[%c0_5, %c0_6, %c0_7] : memref<8x8x512xf32, #tpu.memory_space<vmem>>, vector<8x8x512xf32>
    tpu.vector_store %arg11[%c0_5, %c0_6, %c0_7], %6 {strides = array<i32>} : memref<8x8x512xf32, #tpu.memory_space<vmem>>, vector<8x8x512xf32>,
    %c0_8 = arith.constant 0 : index
    %c0_9 = arith.constant 0 : index
    %8 = vector.load %arg4[%c0_8, %c0_9] : memref<8x128xf32, #tpu.memory_space<vmem>>, vector<8x128xf32>
    %c0_10 = arith.constant 0 : index
    %c0_11 = arith.constant 0 : index
    %9 = vector.load %arg13[%c0_10, %c0_11] : memref<8x128xf32, #tpu.memory_space<vmem>>, vector<8x128xf32>
    tpu.vector_store %arg13[%c0_10, %c0_11], %8 {strides = array<i32>} : memref<8x128xf32, #tpu.memory_space<vmem>>, vector<8x128xf32>,
    %c0_12 = arith.constant 0 : index
    %c0_13 = arith.constant 0 : index
    %10 = vector.load %arg5[%c0_12, %c0_13] : memref<8x128xf32, #tpu.memory_space<vmem>>, vector<8x128xf32>
    %c0_14 = arith.constant 0 : index
    %c0_15 = arith.constant 0 : index
    %11 = vector.load %arg14[%c0_14, %c0_15] : memref<8x128xf32, #tpu.memory_space<vmem>>, vector<8x128xf32>
    tpu.vector_store %arg14[%c0_14, %c0_15], %10 {strides = array<i32>} : memref<8x128xf32, #tpu.memory_space<vmem>>, vector<8x128xf32>,
    %c0_i32 = arith.constant 0 : i32
    %12 = arith.index_cast %c0_i32 : i32 to index
    %c0_16 = arith.constant 0 : index
    %c0_17 = arith.constant 0 : index
    %13 = vector.load %arg11[%12, %c0_16, %c0_17] : memref<8x8x512xf32, #tpu.memory_space<vmem>>, vector<1x8x512xf32>
    %14 = vector.shape_cast %13 : vector<1x8x512xf32> to vector<8x512xf32>
    %c0_18 = arith.constant 0 : index
    %c0_19 = arith.constant 0 : index
    %15 = vector.load %arg13[%c0_18, %c0_19] : memref<8x128xf32, #tpu.memory_space<vmem>>, vector<8x128xf32>
    %c0_20 = arith.constant 0 : index
    %c0_21 = arith.constant 0 : index
    %16 = vector.load %arg3[%c0_20, %c0_21] : memref<128x512xf32, #tpu.memory_space<vmem>>, vector<128x512xf32>
    %cst_22 = arith.constant dense<0.000000e+00> : vector<8x512xf32>
    %17 = tpu.matmul %15, %16, %cst_22 {dimension_numbers = #tpu.dot_dimension_numbers<[1], [0], [0], [1], [0, 0, 1, 1], [], []>} : vector<8x128xf32>, vector<128x512xf32>, vector<8x512xf32> -> vector<8x512xf32>
    %18 = arith.addf %14, %17 : vector<8x512xf32>
    %19 = vector.extract_strided_slice %18 {offsets = [0, 0], sizes = [8, 128], strides = [1, 1]} : vector<8x512xf32> to vector<8x128xf32>
    %20 = arith.negf %19 : vector<8x128xf32>
    %21 = math.exp %20 : vector<8x128xf32>
    %cst_23 = arith.constant 1.000000e+00 : f32
    %22 = vector.broadcast %cst_23 : f32 to vector<8x128xf32>
    %23 = arith.addf %22, %21 : vector<8x128xf32>
    %24 = arith.divf %22, %23 : vector<8x128xf32>
    %25 = vector.extract_strided_slice %18 {offsets = [0, 128], sizes = [8, 128], strides = [1, 1]} : vector<8x512xf32> to vector<8x128xf32>
    %26 = arith.negf %25 : vector<8x128xf32>
    %27 = math.exp %26 : vector<8x128xf32>
    %cst_24 = arith.constant 1.000000e+00 : f32
    %28 = vector.broadcast %cst_24 : f32 to vector<8x128xf32>
    %29 = arith.addf %28, %27 : vector<8x128xf32>
    %30 = arith.divf %28, %29 : vector<8x128xf32>
    %31 = vector.extract_strided_slice %18 {offsets = [0, 256], sizes = [8, 128], strides = [1, 1]} : vector<8x512xf32> to vector<8x128xf32>
    %32 = math.tanh %31 : vector<8x128xf32>
    %33 = vector.extract_strided_slice %18 {offsets = [0, 384], sizes = [8, 128], strides = [1, 1]} : vector<8x512xf32> to vector<8x128xf32>
    %34 = arith.negf %33 : vector<8x128xf32>
    %35 = math.exp %34 : vector<8x128xf32>
    %cst_25 = arith.constant 1.000000e+00 : f32
    %36 = vector.broadcast %cst_25 : f32 to vector<8x128xf32>
    %37 = arith.addf %36, %35 : vector<8x128xf32>
    %38 = arith.divf %36, %37 : vector<8x128xf32>
    %c0_26 = arith.constant 0 : index
    %c0_27 = arith.constant 0 : index
    %39 = vector.load %arg14[%c0_26, %c0_27] : memref<8x128xf32, #tpu.memory_space<vmem>>, vector<8x128xf32>
    %40 = arith.mulf %30, %39 : vector<8x128xf32>
    %41 = arith.mulf %24, %32 : vector<8x128xf32>
    %42 = arith.addf %40, %41 : vector<8x128xf32>
    %43 = math.tanh %42 : vector<8x128xf32>
    %44 = arith.mulf %38, %43 : vector<8x128xf32>
    %c0_28 = arith.constant 0 : index
    %c0_29 = arith.constant 0 : index
    %45 = vector.load %arg14[%c0_28, %c0_29] : memref<8x128xf32, #tpu.memory_space<vmem>>, vector<8x128xf32>
    tpu.vector_store %arg14[%c0_28, %c0_29], %42 {strides = array<i32>} : memref<8x128xf32, #tpu.memory_space<vmem>>, vector<8x128xf32>,
    %c0_30 = arith.constant 0 : index
    %c0_31 = arith.constant 0 : index
    %46 = vector.load %arg13[%c0_30, %c0_31] : memref<8x128xf32, #tpu.memory_space<vmem>>, vector<8x128xf32>
    tpu.vector_store %arg13[%c0_30, %c0_31], %44 {strides = array<i32>} : memref<8x128xf32, #tpu.memory_space<vmem>>, vector<8x128xf32>,
    %47 = arith.index_cast %c0_i32 : i32 to index
    %c0_32 = arith.constant 0 : index
    %c0_33 = arith.constant 0 : index
    %48 = vector.load %arg12[%47, %c0_32, %c0_33] : memref<8x8x128xf32, #tpu.memory_space<vmem>>, vector<1x8x128xf32>
    %49 = vector.shape_cast %48 : vector<1x8x128xf32> to vector<8x128xf32>
    %50 = vector.shape_cast %44 : vector<8x128xf32> to vector<1x8x128xf32>
    tpu.vector_store %arg12[%47, %c0_32, %c0_33], %50 {strides = array<i32>} : memref<8x8x128xf32, #tpu.memory_space<vmem>>, vector<1x8x128xf32>,
    %c1_i32 = arith.constant 1 : i32
    %51 = arith.index_cast %c1_i32 : i32 to index
    %c0_34 = arith.constant 0 : index
    %c0_35 = arith.constant 0 : index
    %52 = vector.load %arg11[%51, %c0_34, %c0_35] : memref<8x8x512xf32, #tpu.memory_space<vmem>>, vector<1x8x512xf32>
    %53 = vector.shape_cast %52 : vector<1x8x512xf32> to vector<8x512xf32>
    %c0_36 = arith.constant 0 : index
    %c0_37 = arith.constant 0 : index
    %54 = vector.load %arg13[%c0_36, %c0_37] : memref<8x128xf32, #tpu.memory_space<vmem>>, vector<8x128xf32>
    %c0_38 = arith.constant 0 : index
    %c0_39 = arith.constant 0 : index
    %55 = vector.load %arg3[%c0_38, %c0_39] : memref<128x512xf32, #tpu.memory_space<vmem>>, vector<128x512xf32>
    %cst_40 = arith.constant dense<0.000000e+00> : vector<8x512xf32>
    %56 = tpu.matmul %54, %55, %cst_40 {dimension_numbers = #tpu.dot_dimension_numbers<[1], [0], [0], [1], [0, 0, 1, 1], [], []>} : vector<8x128xf32>, vector<128x512xf32>, vector<8x512xf32> -> vector<8x512xf32>
    %57 = arith.addf %53, %56 : vector<8x512xf32>
    %58 = vector.extract_strided_slice %57 {offsets = [0, 0], sizes = [8, 128], strides = [1, 1]} : vector<8x512xf32> to vector<8x128xf32>
    %59 = arith.negf %58 : vector<8x128xf32>
    %60 = math.exp %59 : vector<8x128xf32>
    %cst_41 = arith.constant 1.000000e+00 : f32
    %61 = vector.broadcast %cst_41 : f32 to vector<8x128xf32>
    %62 = arith.addf %61, %60 : vector<8x128xf32>
    %63 = arith.divf %61, %62 : vector<8x128xf32>
    %64 = vector.extract_strided_slice %57 {offsets = [0, 128], sizes = [8, 128], strides = [1, 1]} : vector<8x512xf32> to vector<8x128xf32>
    %65 = arith.negf %64 : vector<8x128xf32>
    %66 = math.exp %65 : vector<8x128xf32>
    %cst_42 = arith.constant 1.000000e+00 : f32
    %67 = vector.broadcast %cst_42 : f32 to vector<8x128xf32>
    %68 = arith.addf %67, %66 : vector<8x128xf32>
    %69 = arith.divf %67, %68 : vector<8x128xf32>
    %70 = vector.extract_strided_slice %57 {offsets = [0, 256], sizes = [8, 128], strides = [1, 1]} : vector<8x512xf32> to vector<8x128xf32>
    %71 = math.tanh %70 : vector<8x128xf32>
    %72 = vector.extract_strided_slice %57 {offsets = [0, 384], sizes = [8, 128], strides = [1, 1]} : vector<8x512xf32> to vector<8x128xf32>
    %73 = arith.negf %72 : vector<8x128xf32>
    %74 = math.exp %73 : vector<8x128xf32>
    %cst_43 = arith.constant 1.000000e+00 : f32
    %75 = vector.broadcast %cst_43 : f32 to vector<8x128xf32>
    %76 = arith.addf %75, %74 : vector<8x128xf32>
    %77 = arith.divf %75, %76 : vector<8x128xf32>
    %c0_44 = arith.constant 0 : index
    %c0_45 = arith.constant 0 : index
    %78 = vector.load %arg14[%c0_44, %c0_45] : memref<8x128xf32, #tpu.memory_space<vmem>>, vector<8x128xf32>
    %79 = arith.mulf %69, %78 : vector<8x128xf32>
    %80 = arith.mulf %63, %71 : vector<8x128xf32>
    %81 = arith.addf %79, %80 : vector<8x128xf32>
    %82 = math.tanh %81 : vector<8x128xf32>
    %83 = arith.mulf %77, %82 : vector<8x128xf32>
    %c0_46 = arith.constant 0 : index
    %c0_47 = arith.constant 0 : index
    %84 = vector.load %arg14[%c0_46, %c0_47] : memref<8x128xf32, #tpu.memory_space<vmem>>, vector<8x128xf32>
    tpu.vector_store %arg14[%c0_46, %c0_47], %81 {strides = array<i32>} : memref<8x128xf32, #tpu.memory_space<vmem>>, vector<8x128xf32>,
    %c0_48 = arith.constant 0 : index
    %c0_49 = arith.constant 0 : index
    %85 = vector.load %arg13[%c0_48, %c0_49] : memref<8x128xf32, #tpu.memory_space<vmem>>, vector<8x128xf32>
    tpu.vector_store %arg13[%c0_48, %c0_49], %83 {strides = array<i32>} : memref<8x128xf32, #tpu.memory_space<vmem>>, vector<8x128xf32>,
    %86 = arith.index_cast %c1_i32 : i32 to index
    %c0_50 = arith.constant 0 : index
    %c0_51 = arith.constant 0 : index
    %87 = vector.load %arg12[%86, %c0_50, %c0_51] : memref<8x8x128xf32, #tpu.memory_space<vmem>>, vector<1x8x128xf32>
    %88 = vector.shape_cast %87 : vector<1x8x128xf32> to vector<8x128xf32>
    %89 = vector.shape_cast %83 : vector<8x128xf32> to vector<1x8x128xf32>
    tpu.vector_store %arg12[%86, %c0_50, %c0_51], %89 {strides = array<i32>} : memref<8x8x128xf32, #tpu.memory_space<vmem>>, vector<1x8x128xf32>,
    %c2_i32 = arith.constant 2 : i32
    %90 = arith.index_cast %c2_i32 : i32 to index
    %c0_52 = arith.constant 0 : index
    %c0_53 = arith.constant 0 : index
    %91 = vector.load %arg11[%90, %c0_52, %c0_53] : memref<8x8x512xf32, #tpu.memory_space<vmem>>, vector<1x8x512xf32>
    %92 = vector.shape_cast %91 : vector<1x8x512xf32> to vector<8x512xf32>
    %c0_54 = arith.constant 0 : index
    %c0_55 = arith.constant 0 : index
    %93 = vector.load %arg13[%c0_54, %c0_55] : memref<8x128xf32, #tpu.memory_space<vmem>>, vector<8x128xf32>
    %c0_56 = arith.constant 0 : index
    %c0_57 = arith.constant 0 : index
    %94 = vector.load %arg3[%c0_56, %c0_57] : memref<128x512xf32, #tpu.memory_space<vmem>>, vector<128x512xf32>
    %cst_58 = arith.constant dense<0.000000e+00> : vector<8x512xf32>
    %95 = tpu.matmul %93, %94, %cst_58 {dimension_numbers = #tpu.dot_dimension_numbers<[1], [0], [0], [1], [0, 0, 1, 1], [], []>} : vector<8x128xf32>, vector<128x512xf32>, vector<8x512xf32> -> vector<8x512xf32>
    %96 = arith.addf %92, %95 : vector<8x512xf32>
    %97 = vector.extract_strided_slice %96 {offsets = [0, 0], sizes = [8, 128], strides = [1, 1]} : vector<8x512xf32> to vector<8x128xf32>
    %98 = arith.negf %97 : vector<8x128xf32>
    %99 = math.exp %98 : vector<8x128xf32>
    %cst_59 = arith.constant 1.000000e+00 : f32
    %100 = vector.broadcast %cst_59 : f32 to vector<8x128xf32>
    %101 = arith.addf %100, %99 : vector<8x128xf32>
    %102 = arith.divf %100, %101 : vector<8x128xf32>
    %103 = vector.extract_strided_slice %96 {offsets = [0, 128], sizes = [8, 128], strides = [1, 1]} : vector<8x512xf32> to vector<8x128xf32>
    %104 = arith.negf %103 : vector<8x128xf32>
    %105 = math.exp %104 : vector<8x128xf32>
    %cst_60 = arith.constant 1.000000e+00 : f32
    %106 = vector.broadcast %cst_60 : f32 to vector<8x128xf32>
    %107 = arith.addf %106, %105 : vector<8x128xf32>
    %108 = arith.divf %106, %107 : vector<8x128xf32>
    %109 = vector.extract_strided_slice %96 {offsets = [0, 256], sizes = [8, 128], strides = [1, 1]} : vector<8x512xf32> to vector<8x128xf32>
    %110 = math.tanh %109 : vector<8x128xf32>
    %111 = vector.extract_strided_slice %96 {offsets = [0, 384], sizes = [8, 128], strides = [1, 1]} : vector<8x512xf32> to vector<8x128xf32>
    %112 = arith.negf %111 : vector<8x128xf32>
    %113 = math.exp %112 : vector<8x128xf32>
    %cst_61 = arith.constant 1.000000e+00 : f32
    %114 = vector.broadcast %cst_61 : f32 to vector<8x128xf32>
    %115 = arith.addf %114, %113 : vector<8x128xf32>
    %116 = arith.divf %114, %115 : vector<8x128xf32>
    %c0_62 = arith.constant 0 : index
    %c0_63 = arith.constant 0 : index
    %117 = vector.load %arg14[%c0_62, %c0_63] : memref<8x128xf32, #tpu.memory_space<vmem>>, vector<8x128xf32>
    %118 = arith.mulf %108, %117 : vector<8x128xf32>
    %119 = arith.mulf %102, %110 : vector<8x128xf32>
    %120 = arith.addf %118, %119 : vector<8x128xf32>
    %121 = math.tanh %120 : vector<8x128xf32>
    %122 = arith.mulf %116, %121 : vector<8x128xf32>
    %c0_64 = arith.constant 0 : index
    %c0_65 = arith.constant 0 : index
    %123 = vector.load %arg14[%c0_64, %c0_65] : memref<8x128xf32, #tpu.memory_space<vmem>>, vector<8x128xf32>
    tpu.vector_store %arg14[%c0_64, %c0_65], %120 {strides = array<i32>} : memref<8x128xf32, #tpu.memory_space<vmem>>, vector<8x128xf32>,
    %c0_66 = arith.constant 0 : index
    %c0_67 = arith.constant 0 : index
    %124 = vector.load %arg13[%c0_66, %c0_67] : memref<8x128xf32, #tpu.memory_space<vmem>>, vector<8x128xf32>
    tpu.vector_store %arg13[%c0_66, %c0_67], %122 {strides = array<i32>} : memref<8x128xf32, #tpu.memory_space<vmem>>, vector<8x128xf32>,
    %125 = arith.index_cast %c2_i32 : i32 to index
    %c0_68 = arith.constant 0 : index
    %c0_69 = arith.constant 0 : index
    %126 = vector.load %arg12[%125, %c0_68, %c0_69] : memref<8x8x128xf32, #tpu.memory_space<vmem>>, vector<1x8x128xf32>
    %127 = vector.shape_cast %126 : vector<1x8x128xf32> to vector<8x128xf32>
    %128 = vector.shape_cast %122 : vector<8x128xf32> to vector<1x8x128xf32>
    tpu.vector_store %arg12[%125, %c0_68, %c0_69], %128 {strides = array<i32>} : memref<8x8x128xf32, #tpu.memory_space<vmem>>, vector<1x8x128xf32>,
    %c3_i32 = arith.constant 3 : i32
    %129 = arith.index_cast %c3_i32 : i32 to index
    %c0_70 = arith.constant 0 : index
    %c0_71 = arith.constant 0 : index
    %130 = vector.load %arg11[%129, %c0_70, %c0_71] : memref<8x8x512xf32, #tpu.memory_space<vmem>>, vector<1x8x512xf32>
    %131 = vector.shape_cast %130 : vector<1x8x512xf32> to vector<8x512xf32>
    %c0_72 = arith.constant 0 : index
    %c0_73 = arith.constant 0 : index
    %132 = vector.load %arg13[%c0_72, %c0_73] : memref<8x128xf32, #tpu.memory_space<vmem>>, vector<8x128xf32>
    %c0_74 = arith.constant 0 : index
    %c0_75 = arith.constant 0 : index
    %133 = vector.load %arg3[%c0_74, %c0_75] : memref<128x512xf32, #tpu.memory_space<vmem>>, vector<128x512xf32>
    %cst_76 = arith.constant dense<0.000000e+00> : vector<8x512xf32>
    %134 = tpu.matmul %132, %133, %cst_76 {dimension_numbers = #tpu.dot_dimension_numbers<[1], [0], [0], [1], [0, 0, 1, 1], [], []>} : vector<8x128xf32>, vector<128x512xf32>, vector<8x512xf32> -> vector<8x512xf32>
    %135 = arith.addf %131, %134 : vector<8x512xf32>
    %136 = vector.extract_strided_slice %135 {offsets = [0, 0], sizes = [8, 128], strides = [1, 1]} : vector<8x512xf32> to vector<8x128xf32>
    %137 = arith.negf %136 : vector<8x128xf32>
    %138 = math.exp %137 : vector<8x128xf32>
    %cst_77 = arith.constant 1.000000e+00 : f32
    %139 = vector.broadcast %cst_77 : f32 to vector<8x128xf32>
    %140 = arith.addf %139, %138 : vector<8x128xf32>
    %141 = arith.divf %139, %140 : vector<8x128xf32>
    %142 = vector.extract_strided_slice %135 {offsets = [0, 128], sizes = [8, 128], strides = [1, 1]} : vector<8x512xf32> to vector<8x128xf32>
    %143 = arith.negf %142 : vector<8x128xf32>
    %144 = math.exp %143 : vector<8x128xf32>
    %cst_78 = arith.constant 1.000000e+00 : f32
    %145 = vector.broadcast %cst_78 : f32 to vector<8x128xf32>
    %146 = arith.addf %145, %144 : vector<8x128xf32>
    %147 = arith.divf %145, %146 : vector<8x128xf32>
    %148 = vector.extract_strided_slice %135 {offsets = [0, 256], sizes = [8, 128], strides = [1, 1]} : vector<8x512xf32> to vector<8x128xf32>
    %149 = math.tanh %148 : vector<8x128xf32>
    %150 = vector.extract_strided_slice %135 {offsets = [0, 384], sizes = [8, 128], strides = [1, 1]} : vector<8x512xf32> to vector<8x128xf32>
    %151 = arith.negf %150 : vector<8x128xf32>
    %152 = math.exp %151 : vector<8x128xf32>
    %cst_79 = arith.constant 1.000000e+00 : f32
    %153 = vector.broadcast %cst_79 : f32 to vector<8x128xf32>
    %154 = arith.addf %153, %152 : vector<8x128xf32>
    %155 = arith.divf %153, %154 : vector<8x128xf32>
    %c0_80 = arith.constant 0 : index
    %c0_81 = arith.constant 0 : index
    %156 = vector.load %arg14[%c0_80, %c0_81] : memref<8x128xf32, #tpu.memory_space<vmem>>, vector<8x128xf32>
    %157 = arith.mulf %147, %156 : vector<8x128xf32>
    %158 = arith.mulf %141, %149 : vector<8x128xf32>
    %159 = arith.addf %157, %158 : vector<8x128xf32>
    %160 = math.tanh %159 : vector<8x128xf32>
    %161 = arith.mulf %155, %160 : vector<8x128xf32>
    %c0_82 = arith.constant 0 : index
    %c0_83 = arith.constant 0 : index
    %162 = vector.load %arg14[%c0_82, %c0_83] : memref<8x128xf32, #tpu.memory_space<vmem>>, vector<8x128xf32>
    tpu.vector_store %arg14[%c0_82, %c0_83], %159 {strides = array<i32>} : memref<8x128xf32, #tpu.memory_space<vmem>>, vector<8x128xf32>,
    %c0_84 = arith.constant 0 : index
    %c0_85 = arith.constant 0 : index
    %163 = vector.load %arg13[%c0_84, %c0_85] : memref<8x128xf32, #tpu.memory_space<vmem>>, vector<8x128xf32>
    tpu.vector_store %arg13[%c0_84, %c0_85], %161 {strides = array<i32>} : memref<8x128xf32, #tpu.memory_space<vmem>>, vector<8x128xf32>,
    %164 = arith.index_cast %c3_i32 : i32 to index
    %c0_86 = arith.constant 0 : index
    %c0_87 = arith.constant 0 : index
    %165 = vector.load %arg12[%164, %c0_86, %c0_87] : memref<8x8x128xf32, #tpu.memory_space<vmem>>, vector<1x8x128xf32>
    %166 = vector.shape_cast %165 : vector<1x8x128xf32> to vector<8x128xf32>
    %167 = vector.shape_cast %161 : vector<8x128xf32> to vector<1x8x128xf32>
    tpu.vector_store %arg12[%164, %c0_86, %c0_87], %167 {strides = array<i32>} : memref<8x8x128xf32, #tpu.memory_space<vmem>>, vector<1x8x128xf32>,
    %c4_i32 = arith.constant 4 : i32
    %168 = arith.index_cast %c4_i32 : i32 to index
    %c0_88 = arith.constant 0 : index
    %c0_89 = arith.constant 0 : index
    %169 = vector.load %arg11[%168, %c0_88, %c0_89] : memref<8x8x512xf32, #tpu.memory_space<vmem>>, vector<1x8x512xf32>
    %170 = vector.shape_cast %169 : vector<1x8x512xf32> to vector<8x512xf32>
    %c0_90 = arith.constant 0 : index
    %c0_91 = arith.constant 0 : index
    %171 = vector.load %arg13[%c0_90, %c0_91] : memref<8x128xf32, #tpu.memory_space<vmem>>, vector<8x128xf32>
    %c0_92 = arith.constant 0 : index
    %c0_93 = arith.constant 0 : index
    %172 = vector.load %arg3[%c0_92, %c0_93] : memref<128x512xf32, #tpu.memory_space<vmem>>, vector<128x512xf32>
    %cst_94 = arith.constant dense<0.000000e+00> : vector<8x512xf32>
    %173 = tpu.matmul %171, %172, %cst_94 {dimension_numbers = #tpu.dot_dimension_numbers<[1], [0], [0], [1], [0, 0, 1, 1], [], []>} : vector<8x128xf32>, vector<128x512xf32>, vector<8x512xf32> -> vector<8x512xf32>
    %174 = arith.addf %170, %173 : vector<8x512xf32>
    %175 = vector.extract_strided_slice %174 {offsets = [0, 0], sizes = [8, 128], strides = [1, 1]} : vector<8x512xf32> to vector<8x128xf32>
    %176 = arith.negf %175 : vector<8x128xf32>
    %177 = math.exp %176 : vector<8x128xf32>
    %cst_95 = arith.constant 1.000000e+00 : f32
    %178 = vector.broadcast %cst_95 : f32 to vector<8x128xf32>
    %179 = arith.addf %178, %177 : vector<8x128xf32>
    %180 = arith.divf %178, %179 : vector<8x128xf32>
    %181 = vector.extract_strided_slice %174 {offsets = [0, 128], sizes = [8, 128], strides = [1, 1]} : vector<8x512xf32> to vector<8x128xf32>
    %182 = arith.negf %181 : vector<8x128xf32>
    %183 = math.exp %182 : vector<8x128xf32>
    %cst_96 = arith.constant 1.000000e+00 : f32
    %184 = vector.broadcast %cst_96 : f32 to vector<8x128xf32>
    %185 = arith.addf %184, %183 : vector<8x128xf32>
    %186 = arith.divf %184, %185 : vector<8x128xf32>
    %187 = vector.extract_strided_slice %174 {offsets = [0, 256], sizes = [8, 128], strides = [1, 1]} : vector<8x512xf32> to vector<8x128xf32>
    %188 = math.tanh %187 : vector<8x128xf32>
    %189 = vector.extract_strided_slice %174 {offsets = [0, 384], sizes = [8, 128], strides = [1, 1]} : vector<8x512xf32> to vector<8x128xf32>
    %190 = arith.negf %189 : vector<8x128xf32>
    %191 = math.exp %190 : vector<8x128xf32>
    %cst_97 = arith.constant 1.000000e+00 : f32
    %192 = vector.broadcast %cst_97 : f32 to vector<8x128xf32>
    %193 = arith.addf %192, %191 : vector<8x128xf32>
    %194 = arith.divf %192, %193 : vector<8x128xf32>
    %c0_98 = arith.constant 0 : index
    %c0_99 = arith.constant 0 : index
    %195 = vector.load %arg14[%c0_98, %c0_99] : memref<8x128xf32, #tpu.memory_space<vmem>>, vector<8x128xf32>
    %196 = arith.mulf %186, %195 : vector<8x128xf32>
    %197 = arith.mulf %180, %188 : vector<8x128xf32>
    %198 = arith.addf %196, %197 : vector<8x128xf32>
    %199 = math.tanh %198 : vector<8x128xf32>
    %200 = arith.mulf %194, %199 : vector<8x128xf32>
    %c0_100 = arith.constant 0 : index
    %c0_101 = arith.constant 0 : index
    %201 = vector.load %arg14[%c0_100, %c0_101] : memref<8x128xf32, #tpu.memory_space<vmem>>, vector<8x128xf32>
    tpu.vector_store %arg14[%c0_100, %c0_101], %198 {strides = array<i32>} : memref<8x128xf32, #tpu.memory_space<vmem>>, vector<8x128xf32>,
    %c0_102 = arith.constant 0 : index
    %c0_103 = arith.constant 0 : index
    %202 = vector.load %arg13[%c0_102, %c0_103] : memref<8x128xf32, #tpu.memory_space<vmem>>, vector<8x128xf32>
    tpu.vector_store %arg13[%c0_102, %c0_103], %200 {strides = array<i32>} : memref<8x128xf32, #tpu.memory_space<vmem>>, vector<8x128xf32>,
    %203 = arith.index_cast %c4_i32 : i32 to index
    %c0_104 = arith.constant 0 : index
    %c0_105 = arith.constant 0 : index
    %204 = vector.load %arg12[%203, %c0_104, %c0_105] : memref<8x8x128xf32, #tpu.memory_space<vmem>>, vector<1x8x128xf32>
    %205 = vector.shape_cast %204 : vector<1x8x128xf32> to vector<8x128xf32>
    %206 = vector.shape_cast %200 : vector<8x128xf32> to vector<1x8x128xf32>
    tpu.vector_store %arg12[%203, %c0_104, %c0_105], %206 {strides = array<i32>} : memref<8x8x128xf32, #tpu.memory_space<vmem>>, vector<1x8x128xf32>,
    %c5_i32 = arith.constant 5 : i32
    %207 = arith.index_cast %c5_i32 : i32 to index
    %c0_106 = arith.constant 0 : index
    %c0_107 = arith.constant 0 : index
    %208 = vector.load %arg11[%207, %c0_106, %c0_107] : memref<8x8x512xf32, #tpu.memory_space<vmem>>, vector<1x8x512xf32>
    %209 = vector.shape_cast %208 : vector<1x8x512xf32> to vector<8x512xf32>
    %c0_108 = arith.constant 0 : index
    %c0_109 = arith.constant 0 : index
    %210 = vector.load %arg13[%c0_108, %c0_109] : memref<8x128xf32, #tpu.memory_space<vmem>>, vector<8x128xf32>
    %c0_110 = arith.constant 0 : index
    %c0_111 = arith.constant 0 : index
    %211 = vector.load %arg3[%c0_110, %c0_111] : memref<128x512xf32, #tpu.memory_space<vmem>>, vector<128x512xf32>
    %cst_112 = arith.constant dense<0.000000e+00> : vector<8x512xf32>
    %212 = tpu.matmul %210, %211, %cst_112 {dimension_numbers = #tpu.dot_dimension_numbers<[1], [0], [0], [1], [0, 0, 1, 1], [], []>} : vector<8x128xf32>, vector<128x512xf32>, vector<8x512xf32> -> vector<8x512xf32>
    %213 = arith.addf %209, %212 : vector<8x512xf32>
    %214 = vector.extract_strided_slice %213 {offsets = [0, 0], sizes = [8, 128], strides = [1, 1]} : vector<8x512xf32> to vector<8x128xf32>
    %215 = arith.negf %214 : vector<8x128xf32>
    %216 = math.exp %215 : vector<8x128xf32>
    %cst_113 = arith.constant 1.000000e+00 : f32
    %217 = vector.broadcast %cst_113 : f32 to vector<8x128xf32>
    %218 = arith.addf %217, %216 : vector<8x128xf32>
    %219 = arith.divf %217, %218 : vector<8x128xf32>
    %220 = vector.extract_strided_slice %213 {offsets = [0, 128], sizes = [8, 128], strides = [1, 1]} : vector<8x512xf32> to vector<8x128xf32>
    %221 = arith.negf %220 : vector<8x128xf32>
    %222 = math.exp %221 : vector<8x128xf32>
    %cst_114 = arith.constant 1.000000e+00 : f32
    %223 = vector.broadcast %cst_114 : f32 to vector<8x128xf32>
    %224 = arith.addf %223, %222 : vector<8x128xf32>
    %225 = arith.divf %223, %224 : vector<8x128xf32>
    %226 = vector.extract_strided_slice %213 {offsets = [0, 256], sizes = [8, 128], strides = [1, 1]} : vector<8x512xf32> to vector<8x128xf32>
    %227 = math.tanh %226 : vector<8x128xf32>
    %228 = vector.extract_strided_slice %213 {offsets = [0, 384], sizes = [8, 128], strides = [1, 1]} : vector<8x512xf32> to vector<8x128xf32>
    %229 = arith.negf %228 : vector<8x128xf32>
    %230 = math.exp %229 : vector<8x128xf32>
    %cst_115 = arith.constant 1.000000e+00 : f32
    %231 = vector.broadcast %cst_115 : f32 to vector<8x128xf32>
    %232 = arith.addf %231, %230 : vector<8x128xf32>
    %233 = arith.divf %231, %232 : vector<8x128xf32>
    %c0_116 = arith.constant 0 : index
    %c0_117 = arith.constant 0 : index
    %234 = vector.load %arg14[%c0_116, %c0_117] : memref<8x128xf32, #tpu.memory_space<vmem>>, vector<8x128xf32>
    %235 = arith.mulf %225, %234 : vector<8x128xf32>
    %236 = arith.mulf %219, %227 : vector<8x128xf32>
    %237 = arith.addf %235, %236 : vector<8x128xf32>
    %238 = math.tanh %237 : vector<8x128xf32>
    %239 = arith.mulf %233, %238 : vector<8x128xf32>
    %c0_118 = arith.constant 0 : index
    %c0_119 = arith.constant 0 : index
    %240 = vector.load %arg14[%c0_118, %c0_119] : memref<8x128xf32, #tpu.memory_space<vmem>>, vector<8x128xf32>
    tpu.vector_store %arg14[%c0_118, %c0_119], %237 {strides = array<i32>} : memref<8x128xf32, #tpu.memory_space<vmem>>, vector<8x128xf32>,
    %c0_120 = arith.constant 0 : index
    %c0_121 = arith.constant 0 : index
    %241 = vector.load %arg13[%c0_120, %c0_121] : memref<8x128xf32, #tpu.memory_space<vmem>>, vector<8x128xf32>
    tpu.vector_store %arg13[%c0_120, %c0_121], %239 {strides = array<i32>} : memref<8x128xf32, #tpu.memory_space<vmem>>, vector<8x128xf32>,
    %242 = arith.index_cast %c5_i32 : i32 to index
    %c0_122 = arith.constant 0 : index
    %c0_123 = arith.constant 0 : index
    %243 = vector.load %arg12[%242, %c0_122, %c0_123] : memref<8x8x128xf32, #tpu.memory_space<vmem>>, vector<1x8x128xf32>
    %244 = vector.shape_cast %243 : vector<1x8x128xf32> to vector<8x128xf32>
    %245 = vector.shape_cast %239 : vector<8x128xf32> to vector<1x8x128xf32>
    tpu.vector_store %arg12[%242, %c0_122, %c0_123], %245 {strides = array<i32>} : memref<8x8x128xf32, #tpu.memory_space<vmem>>, vector<1x8x128xf32>,
    %c6_i32 = arith.constant 6 : i32
    %246 = arith.index_cast %c6_i32 : i32 to index
    %c0_124 = arith.constant 0 : index
    %c0_125 = arith.constant 0 : index
    %247 = vector.load %arg11[%246, %c0_124, %c0_125] : memref<8x8x512xf32, #tpu.memory_space<vmem>>, vector<1x8x512xf32>
    %248 = vector.shape_cast %247 : vector<1x8x512xf32> to vector<8x512xf32>
    %c0_126 = arith.constant 0 : index
    %c0_127 = arith.constant 0 : index
    %249 = vector.load %arg13[%c0_126, %c0_127] : memref<8x128xf32, #tpu.memory_space<vmem>>, vector<8x128xf32>
    %c0_128 = arith.constant 0 : index
    %c0_129 = arith.constant 0 : index
    %250 = vector.load %arg3[%c0_128, %c0_129] : memref<128x512xf32, #tpu.memory_space<vmem>>, vector<128x512xf32>
    %cst_130 = arith.constant dense<0.000000e+00> : vector<8x512xf32>
    %251 = tpu.matmul %249, %250, %cst_130 {dimension_numbers = #tpu.dot_dimension_numbers<[1], [0], [0], [1], [0, 0, 1, 1], [], []>} : vector<8x128xf32>, vector<128x512xf32>, vector<8x512xf32> -> vector<8x512xf32>
    %252 = arith.addf %248, %251 : vector<8x512xf32>
    %253 = vector.extract_strided_slice %252 {offsets = [0, 0], sizes = [8, 128], strides = [1, 1]} : vector<8x512xf32> to vector<8x128xf32>
    %254 = arith.negf %253 : vector<8x128xf32>
    %255 = math.exp %254 : vector<8x128xf32>
    %cst_131 = arith.constant 1.000000e+00 : f32
    %256 = vector.broadcast %cst_131 : f32 to vector<8x128xf32>
    %257 = arith.addf %256, %255 : vector<8x128xf32>
    %258 = arith.divf %256, %257 : vector<8x128xf32>
    %259 = vector.extract_strided_slice %252 {offsets = [0, 128], sizes = [8, 128], strides = [1, 1]} : vector<8x512xf32> to vector<8x128xf32>
    %260 = arith.negf %259 : vector<8x128xf32>
    %261 = math.exp %260 : vector<8x128xf32>
    %cst_132 = arith.constant 1.000000e+00 : f32
    %262 = vector.broadcast %cst_132 : f32 to vector<8x128xf32>
    %263 = arith.addf %262, %261 : vector<8x128xf32>
    %264 = arith.divf %262, %263 : vector<8x128xf32>
    %265 = vector.extract_strided_slice %252 {offsets = [0, 256], sizes = [8, 128], strides = [1, 1]} : vector<8x512xf32> to vector<8x128xf32>
    %266 = math.tanh %265 : vector<8x128xf32>
    %267 = vector.extract_strided_slice %252 {offsets = [0, 384], sizes = [8, 128], strides = [1, 1]} : vector<8x512xf32> to vector<8x128xf32>
    %268 = arith.negf %267 : vector<8x128xf32>
    %269 = math.exp %268 : vector<8x128xf32>
    %cst_133 = arith.constant 1.000000e+00 : f32
    %270 = vector.broadcast %cst_133 : f32 to vector<8x128xf32>
    %271 = arith.addf %270, %269 : vector<8x128xf32>
    %272 = arith.divf %270, %271 : vector<8x128xf32>
    %c0_134 = arith.constant 0 : index
    %c0_135 = arith.constant 0 : index
    %273 = vector.load %arg14[%c0_134, %c0_135] : memref<8x128xf32, #tpu.memory_space<vmem>>, vector<8x128xf32>
    %274 = arith.mulf %264, %273 : vector<8x128xf32>
    %275 = arith.mulf %258, %266 : vector<8x128xf32>
    %276 = arith.addf %274, %275 : vector<8x128xf32>
    %277 = math.tanh %276 : vector<8x128xf32>
    %278 = arith.mulf %272, %277 : vector<8x128xf32>
    %c0_136 = arith.constant 0 : index
    %c0_137 = arith.constant 0 : index
    %279 = vector.load %arg14[%c0_136, %c0_137] : memref<8x128xf32, #tpu.memory_space<vmem>>, vector<8x128xf32>
    tpu.vector_store %arg14[%c0_136, %c0_137], %276 {strides = array<i32>} : memref<8x128xf32, #tpu.memory_space<vmem>>, vector<8x128xf32>,
    %c0_138 = arith.constant 0 : index
    %c0_139 = arith.constant 0 : index
    %280 = vector.load %arg13[%c0_138, %c0_139] : memref<8x128xf32, #tpu.memory_space<vmem>>, vector<8x128xf32>
    tpu.vector_store %arg13[%c0_138, %c0_139], %278 {strides = array<i32>} : memref<8x128xf32, #tpu.memory_space<vmem>>, vector<8x128xf32>,
    %281 = arith.index_cast %c6_i32 : i32 to index
    %c0_140 = arith.constant 0 : index
    %c0_141 = arith.constant 0 : index
    %282 = vector.load %arg12[%281, %c0_140, %c0_141] : memref<8x8x128xf32, #tpu.memory_space<vmem>>, vector<1x8x128xf32>
    %283 = vector.shape_cast %282 : vector<1x8x128xf32> to vector<8x128xf32>
    %284 = vector.shape_cast %278 : vector<8x128xf32> to vector<1x8x128xf32>
    tpu.vector_store %arg12[%281, %c0_140, %c0_141], %284 {strides = array<i32>} : memref<8x8x128xf32, #tpu.memory_space<vmem>>, vector<1x8x128xf32>,
    %c7_i32 = arith.constant 7 : i32
    %285 = arith.index_cast %c7_i32 : i32 to index
    %c0_142 = arith.constant 0 : index
    %c0_143 = arith.constant 0 : index
    %286 = vector.load %arg11[%285, %c0_142, %c0_143] : memref<8x8x512xf32, #tpu.memory_space<vmem>>, vector<1x8x512xf32>
    %287 = vector.shape_cast %286 : vector<1x8x512xf32> to vector<8x512xf32>
    %c0_144 = arith.constant 0 : index
    %c0_145 = arith.constant 0 : index
    %288 = vector.load %arg13[%c0_144, %c0_145] : memref<8x128xf32, #tpu.memory_space<vmem>>, vector<8x128xf32>
    %c0_146 = arith.constant 0 : index
    %c0_147 = arith.constant 0 : index
    %289 = vector.load %arg3[%c0_146, %c0_147] : memref<128x512xf32, #tpu.memory_space<vmem>>, vector<128x512xf32>
    %cst_148 = arith.constant dense<0.000000e+00> : vector<8x512xf32>
    %290 = tpu.matmul %288, %289, %cst_148 {dimension_numbers = #tpu.dot_dimension_numbers<[1], [0], [0], [1], [0, 0, 1, 1], [], []>} : vector<8x128xf32>, vector<128x512xf32>, vector<8x512xf32> -> vector<8x512xf32>
    %291 = arith.addf %287, %290 : vector<8x512xf32>
    %292 = vector.extract_strided_slice %291 {offsets = [0, 0], sizes = [8, 128], strides = [1, 1]} : vector<8x512xf32> to vector<8x128xf32>
    %293 = arith.negf %292 : vector<8x128xf32>
    %294 = math.exp %293 : vector<8x128xf32>
    %cst_149 = arith.constant 1.000000e+00 : f32
    %295 = vector.broadcast %cst_149 : f32 to vector<8x128xf32>
    %296 = arith.addf %295, %294 : vector<8x128xf32>
    %297 = arith.divf %295, %296 : vector<8x128xf32>
    %298 = vector.extract_strided_slice %291 {offsets = [0, 128], sizes = [8, 128], strides = [1, 1]} : vector<8x512xf32> to vector<8x128xf32>
    %299 = arith.negf %298 : vector<8x128xf32>
    %300 = math.exp %299 : vector<8x128xf32>
    %cst_150 = arith.constant 1.000000e+00 : f32
    %301 = vector.broadcast %cst_150 : f32 to vector<8x128xf32>
    %302 = arith.addf %301, %300 : vector<8x128xf32>
    %303 = arith.divf %301, %302 : vector<8x128xf32>
    %304 = vector.extract_strided_slice %291 {offsets = [0, 256], sizes = [8, 128], strides = [1, 1]} : vector<8x512xf32> to vector<8x128xf32>
    %305 = math.tanh %304 : vector<8x128xf32>
    %306 = vector.extract_strided_slice %291 {offsets = [0, 384], sizes = [8, 128], strides = [1, 1]} : vector<8x512xf32> to vector<8x128xf32>
    %307 = arith.negf %306 : vector<8x128xf32>
    %308 = math.exp %307 : vector<8x128xf32>
    %cst_151 = arith.constant 1.000000e+00 : f32
    %309 = vector.broadcast %cst_151 : f32 to vector<8x128xf32>
    %310 = arith.addf %309, %308 : vector<8x128xf32>
    %311 = arith.divf %309, %310 : vector<8x128xf32>
    %c0_152 = arith.constant 0 : index
    %c0_153 = arith.constant 0 : index
    %312 = vector.load %arg14[%c0_152, %c0_153] : memref<8x128xf32, #tpu.memory_space<vmem>>, vector<8x128xf32>
    %313 = arith.mulf %303, %312 : vector<8x128xf32>
    %314 = arith.mulf %297, %305 : vector<8x128xf32>
    %315 = arith.addf %313, %314 : vector<8x128xf32>
    %316 = math.tanh %315 : vector<8x128xf32>
    %317 = arith.mulf %311, %316 : vector<8x128xf32>
    %c0_154 = arith.constant 0 : index
    %c0_155 = arith.constant 0 : index
    %318 = vector.load %arg14[%c0_154, %c0_155] : memref<8x128xf32, #tpu.memory_space<vmem>>, vector<8x128xf32>
    tpu.vector_store %arg14[%c0_154, %c0_155], %315 {strides = array<i32>} : memref<8x128xf32, #tpu.memory_space<vmem>>, vector<8x128xf32>,
    %c0_156 = arith.constant 0 : index
    %c0_157 = arith.constant 0 : index
    %319 = vector.load %arg13[%c0_156, %c0_157] : memref<8x128xf32, #tpu.memory_space<vmem>>, vector<8x128xf32>
    tpu.vector_store %arg13[%c0_156, %c0_157], %317 {strides = array<i32>} : memref<8x128xf32, #tpu.memory_space<vmem>>, vector<8x128xf32>,
    %320 = arith.index_cast %c7_i32 : i32 to index
    %c0_158 = arith.constant 0 : index
    %c0_159 = arith.constant 0 : index
    %321 = vector.load %arg12[%320, %c0_158, %c0_159] : memref<8x8x128xf32, #tpu.memory_space<vmem>>, vector<1x8x128xf32>
    %322 = vector.shape_cast %321 : vector<1x8x128xf32> to vector<8x128xf32>
    %323 = vector.shape_cast %317 : vector<8x128xf32> to vector<1x8x128xf32>
    tpu.vector_store %arg12[%320, %c0_158, %c0_159], %323 {strides = array<i32>} : memref<8x8x128xf32, #tpu.memory_space<vmem>>, vector<1x8x128xf32>,
    %c8_i32 = arith.constant 8 : i32
    %c0_160 = arith.constant 0 : index
    %c0_161 = arith.constant 0 : index
    %324 = vector.load %arg13[%c0_160, %c0_161] : memref<8x128xf32, #tpu.memory_space<vmem>>, vector<8x128xf32>
    %c0_162 = arith.constant 0 : index
    %c0_163 = arith.constant 0 : index
    %325 = vector.load %arg9[%c0_162, %c0_163] : memref<8x128xf32, #tpu.memory_space<vmem>>, vector<8x128xf32>
    tpu.vector_store %arg9[%c0_162, %c0_163], %324 {strides = array<i32>} : memref<8x128xf32, #tpu.memory_space<vmem>>, vector<8x128xf32>,
    %c0_164 = arith.constant 0 : index
    %c0_165 = arith.constant 0 : index
    %326 = vector.load %arg14[%c0_164, %c0_165] : memref<8x128xf32, #tpu.memory_space<vmem>>, vector<8x128xf32>
    %c0_166 = arith.constant 0 : index
    %c0_167 = arith.constant 0 : index
    %327 = vector.load %arg10[%c0_166, %c0_167] : memref<8x128xf32, #tpu.memory_space<vmem>>, vector<8x128xf32>
    tpu.vector_store %arg10[%c0_166, %c0_167], %326 {strides = array<i32>} : memref<8x128xf32, #tpu.memory_space<vmem>>, vector<8x128xf32>,
    %c0_168 = arith.constant 0 : index
    %c0_169 = arith.constant 0 : index
    %c0_170 = arith.constant 0 : index
    %328 = vector.load %arg12[%c0_168, %c0_169, %c0_170] : memref<8x8x128xf32, #tpu.memory_space<vmem>>, vector<8x8x128xf32>
    %329 = vector.shape_cast %328 : vector<8x8x128xf32> to vector<64x128xf32>
    %c0_171 = arith.constant 0 : index
    %c0_172 = arith.constant 0 : index
    %330 = vector.load %arg6[%c0_171, %c0_172] : memref<128x128xf32, #tpu.memory_space<vmem>>, vector<128x128xf32>
    %cst_173 = arith.constant dense<0.000000e+00> : vector<64x128xf32>
    %331 = tpu.matmul %329, %330, %cst_173 {dimension_numbers = #tpu.dot_dimension_numbers<[1], [0], [0], [1], [0, 0, 1, 1], [], []>} : vector<64x128xf32>, vector<128x128xf32>, vector<64x128xf32> -> vector<64x128xf32>
    %c0_174 = arith.constant 0 : index
    %c0_175 = arith.constant 0 : index
    %332 = vector.load %arg7[%c0_174, %c0_175] : memref<1x128xf32, #tpu.memory_space<vmem>>, vector<1x128xf32>
    %333 = vector.broadcast %332 : vector<1x128xf32> to vector<64x128xf32>
    %334 = arith.addf %331, %333 : vector<64x128xf32>
    %335 = vector.shape_cast %334 : vector<64x128xf32> to vector<8x8x128xf32>
    %c0_176 = arith.constant 0 : index
    %c0_177 = arith.constant 0 : index
    %c0_178 = arith.constant 0 : index
    %336 = vector.load %arg8[%c0_176, %c0_177, %c0_178] : memref<8x8x128xf32, #tpu.memory_space<vmem>>, vector<8x8x128xf32>
    tpu.vector_store %arg8[%c0_176, %c0_177, %c0_178], %335 {strides = array<i32>} : memref<8x8x128xf32, #tpu.memory_space<vmem>>, vector<8x8x128xf32>,
    return
  }
}

</mosaic_0001>

<llo_original>
// kernel: tpu_custom_call.1
$region0: #{tpu_custom_call.1}
  #allocation0 [shape = 'u32[]', space=smem, size = 0x4, offset = 0x4, fixed_abs, tag = 'smem constant byte address 0x4 - core index']
  #allocation1 [shape = 'u32[144,128]{1,0:T(1,128)}', space=vmem, size = 0x12000, scoped, tag = 'internal scratch']
  #allocation2 [shape = 'f32[8,8,512]{2,1,0:T(8,128)}', space=vmem, size = 0x20000, scoped, tag = 'scratch operand']
  #allocation3 [shape = 'f32[8,8,128]{2,1,0:T(8,128)}', space=vmem, size = 0x8000, scoped, tag = 'scratch operand']
  #allocation4 [shape = 'f32[8,128]{1,0:T(8,128)}', space=vmem, size = 0x1000, scoped, tag = 'scratch operand']
  #allocation5 [shape = 'f32[8,128]{1,0:T(8,128)}', space=vmem, size = 0x1000, scoped, tag = 'scratch operand']
  %s0 = inlined_call_operand.hbm [shape: f32[64,128], index: 0, kind: input, shape index: {}]
  %s1 = inlined_call_operand.hbm [shape: f32[128,512], index: 1, kind: input, shape index: {}]
  %s2 = inlined_call_operand.hbm [shape: f32[1,512], index: 2, kind: input, shape index: {}]
  %s3 = inlined_call_operand.hbm [shape: f32[128,512], index: 3, kind: input, shape index: {}]
  %s4 = inlined_call_operand.vmem [shape: f32[8,128], index: 4, kind: input, shape index: {}]
  %s5 = inlined_call_operand.vmem [shape: f32[8,128], index: 5, kind: input, shape index: {}]
  %s6 = inlined_call_operand.hbm [shape: f32[128,128], index: 6, kind: input, shape index: {}]
  %s7 = inlined_call_operand.vmem [shape: f32[1,128], index: 7, kind: input, shape index: {}]
  %s8 = inlined_call_operand.hbm [shape: f32[8,8,128], index: 8, kind: output, shape index: {0}]
  %s9 = inlined_call_operand.hbm [shape: f32[8,128], index: 9, kind: output, shape index: {1}]
  %s10 = inlined_call_operand.hbm [shape: f32[8,128], index: 10, kind: output, shape index: {2}]
  %11 = xla_tuple %s8, %s9, %s10
  %s12 = sld [smem:[#allocation0]]
  $region78: #{tpu_custom_call.1} parent=0
    _
  %s14 = ssub.s32 1, %s12
  %s15 = scalar_select 0, %s14, %s12
  $region1: #{tpu_custom_call.1} parent=0
    #allocation6 [shape = 'u8[32768]{0}', space=vmem, size = 0x8000, scoped, tag = 'input window, operand 0, single buffered']
    #allocation7 [shape = 's32[1]{0}', space=sflag, size = 0x4, scoped, tag = 'scoped memory for tpu_custom_call.1']
    #allocation8 [shape = 's32[1]{0}', space=sflag, size = 0x4, scoped, tag = 'scoped memory for tpu_custom_call.1']
    #allocation9 [shape = 'u8[262144]{0}', space=vmem, size = 0x40000, scoped, tag = 'input window, operand 1, single buffered']
    #allocation10 [shape = 's32[1]{0}', space=sflag, size = 0x4, scoped, tag = 'scoped memory for tpu_custom_call.1']
    #allocation11 [shape = 'u8[2048]{0}', space=vmem, size = 0x800, scoped, tag = 'input window, operand 2, single buffered']
    #allocation12 [shape = 'u8[262144]{0}', space=vmem, size = 0x40000, scoped, tag = 'input window, operand 3, single buffered']
    #allocation13 [shape = 's32[1]{0}', space=sflag, size = 0x4, scoped, tag = 'scoped memory for tpu_custom_call.1']
    #allocation14 [shape = 'u8[65536]{0}', space=vmem, size = 0x10000, scoped, tag = 'input window, operand 6, single buffered']
    #allocation15 [shape = 'u8[32768]{0}', space=vmem, size = 0x8000, scoped, tag = 'output window, operand 0, single buffered']
    #allocation16 [shape = 'u8[4096]{0}', space=vmem, size = 0x1000, scoped, tag = 'output window, operand 1, single buffered']
    #allocation17 [shape = 's32[1]{0}', space=sflag, size = 0x4, scoped, tag = 'scoped memory for tpu_custom_call.1']
    #allocation18 [shape = 'u8[4096]{0}', space=vmem, size = 0x1000, scoped, tag = 'output window, operand 2, single buffered']
    %16 = vsyncpa [#allocation7], 0
    %17 = vsyncpa [#allocation10], 0
    %18 = vsyncpa [#allocation13], 0
    %19 = vsyncpa [#allocation8], 0
    %20 = vsyncpa [#allocation17], 0
    // Predicated region
    $region2: #{tpu_custom_call.1} parent=1 // pred_check
      _
    $region3: #{tpu_custom_call.1} parent=1 // pred_check_branch
      %22 = sbr.rel (0) target = $region5
    $region4: #{tpu_custom_call.1} parent=1 // pred_region
      %s24 = ssub.s32 1024, 1024
      %25 = vsyncadd [#allocation7], %s24
      %s26 = sshll.u32 [#allocation6], 4
      %s27 = int_to_ptr.vmem [resolvable:$true] %s26
      %32 = dma.hbm_to_vmem [thread:$0]  %s0, 1024, %s27, [#allocation7], 128, 128, 8
    $region5: #{tpu_custom_call.1} parent=1 // pred_fallthru
      _
    // Predicated region
    $region6: #{tpu_custom_call.1} parent=1 // pred_check
      _
    $region7: #{tpu_custom_call.1} parent=1 // pred_check_branch
      %34 = sbr.rel (0) target = $region9
    $region8: #{tpu_custom_call.1} parent=1 // pred_region
      %s36 = ssub.s32 8192, 8192
      %37 = vsyncadd [#allocation10], %s36
      %s38 = sshll.u32 [#allocation9], 4
      %s39 = int_to_ptr.vmem [resolvable:$true] %s38
      %44 = dma.hbm_to_vmem [thread:$0]  %s1, 8192, %s39, [#allocation10], 512, 512, 32
    $region9: #{tpu_custom_call.1} parent=1 // pred_fallthru
      _
    // Predicated region
    $region10: #{tpu_custom_call.1} parent=1 // pred_check
      _
    $region11: #{tpu_custom_call.1} parent=1 // pred_check_branch
      %46 = sbr.rel (0) target = $region13
    $region12: #{tpu_custom_call.1} parent=1 // pred_region
      %s48 = ssub.s32 64, 64
      %49 = vsyncadd [#allocation10], %s48
      %s51 = sshll.u32 [#allocation11], 4
      %s52 = int_to_ptr.vmem [resolvable:$true] %s51
      %54 = dma.hbm_to_vmem [thread:$0]  %s2, 64, %s52, [#allocation10]
    $region13: #{tpu_custom_call.1} parent=1 // pred_fallthru
      _
    // Predicated region
    $region14: #{tpu_custom_call.1} parent=1 // pred_check
      _
    $region15: #{tpu_custom_call.1} parent=1 // pred_check_branch
      %56 = sbr.rel (0) target = $region17
    $region16: #{tpu_custom_call.1} parent=1 // pred_region
      %s58 = ssub.s32 8192, 8192
      %59 = vsyncadd [#allocation13], %s58
      %s60 = sshll.u32 [#allocation12], 4
      %s61 = int_to_ptr.vmem [resolvable:$true] %s60
      %66 = dma.hbm_to_vmem [thread:$0]  %s3, 8192, %s61, [#allocation13], 512, 512, 32
    $region17: #{tpu_custom_call.1} parent=1 // pred_fallthru
      _
    // Predicated region
    $region18: #{tpu_custom_call.1} parent=1 // pred_check
      _
    $region19: #{tpu_custom_call.1} parent=1 // pred_check_branch
      %68 = sbr.rel (0) target = $region21
    $region20: #{tpu_custom_call.1} parent=1 // pred_region
      _
    $region21: #{tpu_custom_call.1} parent=1 // pred_fallthru
      _
    // Predicated region
    $region22: #{tpu_custom_call.1} parent=1 // pred_check
      _
    $region23: #{tpu_custom_call.1} parent=1 // pred_check_branch
      %70 = sbr.rel (0) target = $region25
    $region24: #{tpu_custom_call.1} parent=1 // pred_region
      _
    $region25: #{tpu_custom_call.1} parent=1 // pred_fallthru
      _
    // Predicated region
    $region26: #{tpu_custom_call.1} parent=1 // pred_check
      _
    $region27: #{tpu_custom_call.1} parent=1 // pred_check_branch
      %72 = sbr.rel (0) target = $region29
    $region28: #{tpu_custom_call.1} parent=1 // pred_region
      %s74 = ssub.s32 2048, 2048
      %75 = vsyncadd [#allocation13], %s74
      %s76 = sshll.u32 [#allocation14], 4
      %s77 = int_to_ptr.vmem [resolvable:$true] %s76
      %82 = dma.hbm_to_vmem [thread:$0]  %s6, 2048, %s77, [#allocation13], 128, 128, 8
    $region29: #{tpu_custom_call.1} parent=1 // pred_fallthru
      _
    // Predicated region
    $region30: #{tpu_custom_call.1} parent=1 // pred_check
      _
    $region31: #{tpu_custom_call.1} parent=1 // pred_check_branch
      %84 = sbr.rel (0) target = $region33
    $region32: #{tpu_custom_call.1} parent=1 // pred_region
      _
    $region33: #{tpu_custom_call.1} parent=1 // pred_fallthru
      _
    // Predicated region
    $region34: #{tpu_custom_call.1} parent=1 // pred_check
      _
    $region35: #{tpu_custom_call.1} parent=1 // pred_check_branch
      %86 = sbr.rel (0) target = $region37
    $region36: #{tpu_custom_call.1} parent=1 // pred_region
      %87 = dma.done [#allocation7], 1024
    $region37: #{tpu_custom_call.1} parent=1 // pred_fallthru
      _
    // Predicated region
    $region38: #{tpu_custom_call.1} parent=1 // pred_check
      _
    $region39: #{tpu_custom_call.1} parent=1 // pred_check_branch
      %89 = sbr.rel (0) target = $region41
    $region40: #{tpu_custom_call.1} parent=1 // pred_region
      %90 = dma.done [#allocation10], 8192
    $region41: #{tpu_custom_call.1} parent=1 // pred_fallthru
      _
    // Predicated region
    $region42: #{tpu_custom_call.1} parent=1 // pred_check
      _
    $region43: #{tpu_custom_call.1} parent=1 // pred_check_branch
      %92 = sbr.rel (0) target = $region45
    $region44: #{tpu_custom_call.1} parent=1 // pred_region
      %93 = dma.done [#allocation10], 64
    $region45: #{tpu_custom_call.1} parent=1 // pred_fallthru
      _
    // Predicated region
    $region46: #{tpu_custom_call.1} parent=1 // pred_check
      _
    $region47: #{tpu_custom_call.1} parent=1 // pred_check_branch
      %95 = sbr.rel (0) target = $region49
    $region48: #{tpu_custom_call.1} parent=1 // pred_region
      %96 = dma.done [#allocation13], 8192
    $region49: #{tpu_custom_call.1} parent=1 // pred_fallthru
      _
    // Predicated region
    $region50: #{tpu_custom_call.1} parent=1 // pred_check
      _
    $region51: #{tpu_custom_call.1} parent=1 // pred_check_branch
      %98 = sbr.rel (0) target = $region53
    $region52: #{tpu_custom_call.1} parent=1 // pred_region
      %99 = dma.done [#allocation13], 2048
    $region53: #{tpu_custom_call.1} parent=1 // pred_fallthru
      _
    %v100 = vld [vmem:[#allocation6] sm:$0xff]
    %v101 = vld [vmem:[#allocation6 + $0x8] sm:$0xff]
    %v102 = vld [vmem:[#allocation6 + $0x10] sm:$0xff]
    %v103 = vld [vmem:[#allocation6 + $0x18] sm:$0xff]
    %v104 = vld [vmem:[#allocation6 + $0x20] sm:$0xff]
    %v105 = vld [vmem:[#allocation6 + $0x28] sm:$0xff]
    %v106 = vld [vmem:[#allocation6 + $0x30] sm:$0xff]
    %v107 = vld [vmem:[#allocation6 + $0x38] sm:$0xff]
    %v108 = vld [vmem:[#allocation9] sm:$0xff]
    %v109 = vld [vmem:[#allocation9 + $0x8] sm:$0xff]
    %v110 = vld [vmem:[#allocation9 + $0x10] sm:$0xff]
    %v111 = vld [vmem:[#allocation9 + $0x18] sm:$0xff]
    %v112 = vld [vmem:[#allocation9 + $0x20] sm:$0xff]
    %v113 = vld [vmem:[#allocation9 + $0x28] sm:$0xff]
    %v114 = vld [vmem:[#allocation9 + $0x30] sm:$0xff]
    %v115 = vld [vmem:[#allocation9 + $0x38] sm:$0xff]
    %v116 = vld [vmem:[#allocation9 + $0x40] sm:$0xff]
    %v117 = vld [vmem:[#allocation9 + $0x48] sm:$0xff]
    %v118 = vld [vmem:[#allocation9 + $0x50] sm:$0xff]
    %v119 = vld [vmem:[#allocation9 + $0x58] sm:$0xff]
    %v120 = vld [vmem:[#allocation9 + $0x60] sm:$0xff]
    %v121 = vld [vmem:[#allocation9 + $0x68] sm:$0xff]
    %v122 = vld [vmem:[#allocation9 + $0x70] sm:$0xff]
    %v123 = vld [vmem:[#allocation9 + $0x78] sm:$0xff]
    %v124 = vld [vmem:[#allocation9 + $0x80] sm:$0xff]
    %v125 = vld [vmem:[#allocation9 + $0x88] sm:$0xff]
    %v126 = vld [vmem:[#allocation9 + $0x90] sm:$0xff]
    %v127 = vld [vmem:[#allocation9 + $0x98] sm:$0xff]
    %v128 = vld [vmem:[#allocation9 + $0xa0] sm:$0xff]
    %v129 = vld [vmem:[#allocation9 + $0xa8] sm:$0xff]
    %v130 = vld [vmem:[#allocation9 + $0xb0] sm:$0xff]
    %v131 = vld [vmem:[#allocation9 + $0xb8] sm:$0xff]
    %v132 = vld [vmem:[#allocation9 + $0xc0] sm:$0xff]
    %v133 = vld [vmem:[#allocation9 + $0xc8] sm:$0xff]
    %v134 = vld [vmem:[#allocation9 + $0xd0] sm:$0xff]
    %v135 = vld [vmem:[#allocation9 + $0xd8] sm:$0xff]
    %v136 = vld [vmem:[#allocation9 + $0xe0] sm:$0xff]
    %v137 = vld [vmem:[#allocation9 + $0xe8] sm:$0xff]
    %v138 = vld [vmem:[#allocation9 + $0xf0] sm:$0xff]
    %v139 = vld [vmem:[#allocation9 + $0xf8] sm:$0xff]
    %v140 = vld [vmem:[#allocation9 + $0x100] sm:$0xff]
    %v141 = vld [vmem:[#allocation9 + $0x108] sm:$0xff]
    %v142 = vld [vmem:[#allocation9 + $0x110] sm:$0xff]
    %v143 = vld [vmem:[#allocation9 + $0x118] sm:$0xff]
    %v144 = vld [vmem:[#allocation9 + $0x120] sm:$0xff]
    %v145 = vld [vmem:[#allocation9 + $0x128] sm:$0xff]
    %v146 = vld [vmem:[#allocation9 + $0x130] sm:$0xff]
    %v147 = vld [vmem:[#allocation9 + $0x138] sm:$0xff]
    %v148 = vld [vmem:[#allocation9 + $0x140] sm:$0xff]
    %v149 = vld [vmem:[#allocation9 + $0x148] sm:$0xff]
    %v150 = vld [vmem:[#allocation9 + $0x150] sm:$0xff]
    %v151 = vld [vmem:[#allocation9 + $0x158] sm:$0xff]
    %v152 = vld [vmem:[#allocation9 + $0x160] sm:$0xff]
    %v153 = vld [vmem:[#allocation9 + $0x168] sm:$0xff]
    %v154 = vld [vmem:[#allocation9 + $0x170] sm:$0xff]
    %v155 = vld [vmem:[#allocation9 + $0x178] sm:$0xff]
    %v156 = vld [vmem:[#allocation9 + $0x180] sm:$0xff]
    %v157 = vld [vmem:[#allocation9 + $0x188] sm:$0xff]
    %v158 = vld [vmem:[#allocation9 + $0x190] sm:$0xff]
    %v159 = vld [vmem:[#allocation9 + $0x198] sm:$0xff]
    %v160 = vld [vmem:[#allocation9 + $0x1a0] sm:$0xff]
    %v161 = vld [vmem:[#allocation9 + $0x1a8] sm:$0xff]
    %v162 = vld [vmem:[#allocation9 + $0x1b0] sm:$0xff]
    %v163 = vld [vmem:[#allocation9 + $0x1b8] sm:$0xff]
    %v164 = vld [vmem:[#allocation9 + $0x1c0] sm:$0xff]
    %v165 = vld [vmem:[#allocation9 + $0x1c8] sm:$0xff]
    %v166 = vld [vmem:[#allocation9 + $0x1d0] sm:$0xff]
    %v167 = vld [vmem:[#allocation9 + $0x1d8] sm:$0xff]
    %v168 = vld [vmem:[#allocation9 + $0x1e0] sm:$0xff]
    %v169 = vld [vmem:[#allocation9 + $0x1e8] sm:$0xff]
    %v170 = vld [vmem:[#allocation9 + $0x1f0] sm:$0xff]
    %v171 = vld [vmem:[#allocation9 + $0x1f8] sm:$0xff]
    %v172 = vld [vmem:[#allocation11] sm:$0xf]
    %v174 = vlaneseq
    %v175 = vshrl.u32 %v174, 7
    %v176 = vsub.s32 0, %v175
    %v177 = vrot.slane %v172, %v176
    %v178 = vlaneseq
    %v179 = vshrl.u32 %v178, 7
    %v180 = vsub.s32 1, %v179
    %v181 = vrot.slane %v172, %v180
    %v182 = vlaneseq
    %v183 = vshrl.u32 %v182, 7
    %v184 = vsub.s32 2, %v183
    %v185 = vrot.slane %v172, %v184
    %v186 = vlaneseq
    %v187 = vshrl.u32 %v186, 7
    %v188 = vsub.s32 3, %v187
    %v189 = vrot.slane %v172, %v188
    %194 = vmatprep.subr.mxu0 %v109
    %195 = vmatpush1.msra.mxu0 %v108
    %196 = vmatprep.subr.mxu0 %v113
    %197 = vmatpush1.msra.mxu0 %v112
    %198 = vmatprep.subr.mxu0 %v117
    %199 = vmatpush1.msra.mxu0 %v116
    %200 = vmatprep.subr.mxu0 %v121
    %201 = vmatpush1.msra.mxu0 %v120
    %202 = vmatprep.subr.mxu0 %v125
    %203 = vmatpush1.msra.mxu0 %v124
    %204 = vmatprep.subr.mxu0 %v129
    %205 = vmatpush1.msra.mxu0 %v128
    %206 = vmatprep.subr.mxu0 %v133
    %207 = vmatpush1.msra.mxu0 %v132
    %208 = vmatprep.subr.mxu0 %v137
    %209 = vmatpush1.msra.mxu0 %v136
    %210 = vmatprep.subr.mxu0 %v141
    %211 = vmatpush1.msra.mxu0 %v140
    %212 = vmatprep.subr.mxu0 %v145
    %213 = vmatpush1.msra.mxu0 %v144
    %214 = vmatprep.subr.mxu0 %v149
    %215 = vmatpush1.msra.mxu0 %v148
    %216 = vmatprep.subr.mxu0 %v153
    %217 = vmatpush1.msra.mxu0 %v152
    %218 = vmatprep.subr.mxu0 %v157
    %219 = vmatpush1.msra.mxu0 %v156
    %220 = vmatprep.subr.mxu0 %v161
    %221 = vmatpush1.msra.mxu0 %v160
    %222 = vmatprep.subr.mxu0 %v165
    %223 = vmatpush1.msra.mxu0 %v164
    %224 = vmatprep.subr.mxu0 %v169
    %225 = vmatpush1.msra.mxu0 %v168
    %226 = vmatprep.subr.mxu0 0.0
    %227 = vmatpush1.msra.mxu0 0.0
    %228 = vmatprep.subr.mxu0 0.0
    %229 = vmatpush1.msra.mxu0 0.0
    %230 = vmatprep.subr.mxu0 0.0
    %231 = vmatpush1.msra.mxu0 0.0
    %232 = vmatprep.subr.mxu0 0.0
    %233 = vmatpush1.msra.mxu0 0.0
    %234 = vmatprep.subr.mxu0 0.0
    %235 = vmatpush1.msra.mxu0 0.0
    %236 = vmatprep.subr.mxu0 0.0
    %237 = vmatpush1.msra.mxu0 0.0
    %238 = vmatprep.subr.mxu0 0.0
    %239 = vmatpush1.msra.mxu0 0.0
    %240 = vmatprep.subr.mxu0 0.0
    %241 = vmatpush1.msra.mxu0 0.0
    %242 = vmatprep.subr.mxu0 0.0
    %243 = vmatpush1.msra.mxu0 0.0
    %244 = vmatprep.subr.mxu0 0.0
    %245 = vmatpush1.msra.mxu0 0.0
    %246 = vmatprep.subr.mxu0 0.0
    %247 = vmatpush1.msra.mxu0 0.0
    %248 = vmatprep.subr.mxu0 0.0
    %249 = vmatpush1.msra.mxu0 0.0
    %250 = vmatprep.subr.mxu0 0.0
    %251 = vmatpush1.msra.mxu0 0.0
    %252 = vmatprep.subr.mxu0 0.0
    %253 = vmatpush1.msra.mxu0 0.0
    %254 = vmatprep.subr.mxu0 0.0
    %255 = vmatpush1.msra.mxu0 0.0
    %256 = vmatprep.subr.mxu0 0.0
    %257 = vmatpush1.msra.mxu0 0.0
    %258 = vmatprep.mubr.f32.mxu0 0.0
    %259 = vmatmul.mubr.f32.gmra.mrb[0].mxu0 %v100
    %v260 = vpop.f32.mrb[0].mxu0
    %v261 = vadd.f32 %v177, %v260
    %v262 = vpop.f32.mrb[0].mxu0
    %v263 = vadd.f32 %v181, %v262
    %264 = vmatprep.mubr.f32.mxu0 0.0
    %265 = vmatmul.mubr.f32.gmra.mrb[0].mxu0 %v101
    %v266 = vpop.f32.mrb[0].mxu0
    %v267 = vadd.f32 %v177, %v266
    %v268 = vpop.f32.mrb[0].mxu0
    %v269 = vadd.f32 %v181, %v268
    %270 = vmatprep.mubr.f32.mxu0 0.0
    %271 = vmatmul.mubr.f32.gmra.mrb[0].mxu0 %v102
    %v272 = vpop.f32.mrb[0].mxu0
    %v273 = vadd.f32 %v177, %v272
    %v274 = vpop.f32.mrb[0].mxu0
    %v275 = vadd.f32 %v181, %v274
    %276 = vmatprep.mubr.f32.mxu0 0.0
    %277 = vmatmul.mubr.f32.gmra.mrb[0].mxu0 %v103
    %v278 = vpop.f32.mrb[0].mxu0
    %v279 = vadd.f32 %v177, %v278
    %v280 = vpop.f32.mrb[0].mxu0
    %v281 = vadd.f32 %v181, %v280
    %282 = vmatprep.mubr.f32.mxu0 0.0
    %283 = vmatmul.mubr.f32.gmra.mrb[0].mxu0 %v104
    %v284 = vpop.f32.mrb[0].mxu0
    %v285 = vadd.f32 %v177, %v284
    %v286 = vpop.f32.mrb[0].mxu0
    %v287 = vadd.f32 %v181, %v286
    %288 = vmatprep.mubr.f32.mxu0 0.0
    %289 = vmatmul.mubr.f32.gmra.mrb[0].mxu0 %v105
    %v290 = vpop.f32.mrb[0].mxu0
    %v291 = vadd.f32 %v177, %v290
    %v292 = vpop.f32.mrb[0].mxu0
    %v293 = vadd.f32 %v181, %v292
    %294 = vmatprep.mubr.f32.mxu0 0.0
    %295 = vmatmul.mubr.f32.gmra.mrb[0].mxu0 %v106
    %v296 = vpop.f32.mrb[0].mxu0
    %v297 = vadd.f32 %v177, %v296
    %v298 = vpop.f32.mrb[0].mxu0
    %v299 = vadd.f32 %v181, %v298
    %300 = vmatprep.mubr.f32.mxu0 0.0
    %301 = vmatmul.mubr.f32.gmra.mrb[0].mxu0 %v107
    %v302 = vpop.f32.mrb[0].mxu0
    %v303 = vadd.f32 %v177, %v302
    %v304 = vpop.f32.mrb[0].mxu0
    %v305 = vadd.f32 %v181, %v304
    %306 = vdwg.mxu0
    %307 = vmatprep.subr.mxu0 %v111
    %308 = vmatpush1.msra.mxu0 %v110
    %309 = vmatprep.subr.mxu0 %v115
    %310 = vmatpush1.msra.mxu0 %v114
    %311 = vmatprep.subr.mxu0 %v119
    %312 = vmatpush1.msra.mxu0 %v118
    %313 = vmatprep.subr.mxu0 %v123
    %314 = vmatpush1.msra.mxu0 %v122
    %315 = vmatprep.subr.mxu0 %v127
    %316 = vmatpush1.msra.mxu0 %v126
    %317 = vmatprep.subr.mxu0 %v131
    %318 = vmatpush1.msra.mxu0 %v130
    %319 = vmatprep.subr.mxu0 %v135
    %320 = vmatpush1.msra.mxu0 %v134
    %321 = vmatprep.subr.mxu0 %v139
    %322 = vmatpush1.msra.mxu0 %v138
    %323 = vmatprep.subr.mxu0 %v143
    %324 = vmatpush1.msra.mxu0 %v142
    %325 = vmatprep.subr.mxu0 %v147
    %326 = vmatpush1.msra.mxu0 %v146
    %327 = vmatprep.subr.mxu0 %v151
    %328 = vmatpush1.msra.mxu0 %v150
    %329 = vmatprep.subr.mxu0 %v155
    %330 = vmatpush1.msra.mxu0 %v154
    %331 = vmatprep.subr.mxu0 %v159
    %332 = vmatpush1.msra.mxu0 %v158
    %333 = vmatprep.subr.mxu0 %v163
    %334 = vmatpush1.msra.mxu0 %v162
    %335 = vmatprep.subr.mxu0 %v167
    %336 = vmatpush1.msra.mxu0 %v166
    %337 = vmatprep.subr.mxu0 %v171
    %338 = vmatpush1.msra.mxu0 %v170
    %339 = vmatprep.subr.mxu0 0.0
    %340 = vmatpush1.msra.mxu0 0.0
    %341 = vmatprep.subr.mxu0 0.0
    %342 = vmatpush1.msra.mxu0 0.0
    %343 = vmatprep.subr.mxu0 0.0
    %344 = vmatpush1.msra.mxu0 0.0
    %345 = vmatprep.subr.mxu0 0.0
    %346 = vmatpush1.msra.mxu0 0.0
    %347 = vmatprep.subr.mxu0 0.0
    %348 = vmatpush1.msra.mxu0 0.0
    %349 = vmatprep.subr.mxu0 0.0
    %350 = vmatpush1.msra.mxu0 0.0
    %351 = vmatprep.subr.mxu0 0.0
    %352 = vmatpush1.msra.mxu0 0.0
    %353 = vmatprep.subr.mxu0 0.0
    %354 = vmatpush1.msra.mxu0 0.0
    %355 = vmatprep.subr.mxu0 0.0
    %356 = vmatpush1.msra.mxu0 0.0
    %357 = vmatprep.subr.mxu0 0.0
    %358 = vmatpush1.msra.mxu0 0.0
    %359 = vmatprep.subr.mxu0 0.0
    %360 = vmatpush1.msra.mxu0 0.0
    %361 = vmatprep.subr.mxu0 0.0
    %362 = vmatpush1.msra.mxu0 0.0
    %363 = vmatprep.subr.mxu0 0.0
    %364 = vmatpush1.msra.mxu0 0.0
    %365 = vmatprep.subr.mxu0 0.0
    %366 = vmatpush1.msra.mxu0 0.0
    %367 = vmatprep.subr.mxu0 0.0
    %368 = vmatpush1.msra.mxu0 0.0
    %369 = vmatprep.subr.mxu0 0.0
    %370 = vmatpush1.msra.mxu0 0.0
    %371 = vmatprep.mubr.f32.mxu0 0.0
    %372 = vmatmul.mubr.f32.gmra.mrb[0].mxu0 %v100
    %v373 = vpop.f32.mrb[0].mxu0
    %v374 = vadd.f32 %v185, %v373
    %v375 = vpop.f32.mrb[0].mxu0
    %v376 = vadd.f32 %v189, %v375
    %377 = vmatprep.mubr.f32.mxu0 0.0
    %378 = vmatmul.mubr.f32.gmra.mrb[0].mxu0 %v101
    %v379 = vpop.f32.mrb[0].mxu0
    %v380 = vadd.f32 %v185, %v379
    %v381 = vpop.f32.mrb[0].mxu0
    %v382 = vadd.f32 %v189, %v381
    %383 = vmatprep.mubr.f32.mxu0 0.0
    %384 = vmatmul.mubr.f32.gmra.mrb[0].mxu0 %v102
    %v385 = vpop.f32.mrb[0].mxu0
    %v386 = vadd.f32 %v185, %v385
    %v387 = vpop.f32.mrb[0].mxu0
    %v388 = vadd.f32 %v189, %v387
    %389 = vmatprep.mubr.f32.mxu0 0.0
    %390 = vmatmul.mubr.f32.gmra.mrb[0].mxu0 %v103
    %v391 = vpop.f32.mrb[0].mxu0
    %v392 = vadd.f32 %v185, %v391
    %v393 = vpop.f32.mrb[0].mxu0
    %v394 = vadd.f32 %v189, %v393
    %395 = vmatprep.mubr.f32.mxu0 0.0
    %396 = vmatmul.mubr.f32.gmra.mrb[0].mxu0 %v104
    %v397 = vpop.f32.mrb[0].mxu0
    %v398 = vadd.f32 %v185, %v397
    %v399 = vpop.f32.mrb[0].mxu0
    %v400 = vadd.f32 %v189, %v399
    %401 = vmatprep.mubr.f32.mxu0 0.0
    %402 = vmatmul.mubr.f32.gmra.mrb[0].mxu0 %v105
    %v403 = vpop.f32.mrb[0].mxu0
    %v404 = vadd.f32 %v185, %v403
    %v405 = vpop.f32.mrb[0].mxu0
    %v406 = vadd.f32 %v189, %v405
    %407 = vmatprep.mubr.f32.mxu0 0.0
    %408 = vmatmul.mubr.f32.gmra.mrb[0].mxu0 %v106
    %v409 = vpop.f32.mrb[0].mxu0
    %v410 = vadd.f32 %v185, %v409
    %v411 = vpop.f32.mrb[0].mxu0
    %v412 = vadd.f32 %v189, %v411
    %413 = vmatprep.mubr.f32.mxu0 0.0
    %414 = vmatmul.mubr.f32.gmra.mrb[0].mxu0 %v107
    %v415 = vpop.f32.mrb[0].mxu0
    %v416 = vadd.f32 %v185, %v415
    %v417 = vpop.f32.mrb[0].mxu0
    %v418 = vadd.f32 %v189, %v417
    %419 = vdwg.mxu0
    %420 = vst [vmem:[#allocation2] sm:$0xff] %v261
    %421 = vst [vmem:[#allocation2 + $0x8] sm:$0xff] %v263
    %422 = vst [vmem:[#allocation2 + $0x10] sm:$0xff] %v374
    %423 = vst [vmem:[#allocation2 + $0x18] sm:$0xff] %v376
    %424 = vst [vmem:[#allocation2 + $0x20] sm:$0xff] %v267
    %425 = vst [vmem:[#allocation2 + $0x28] sm:$0xff] %v269
    %426 = vst [vmem:[#allocation2 + $0x30] sm:$0xff] %v380
    %427 = vst [vmem:[#allocation2 + $0x38] sm:$0xff] %v382
    %428 = vst [vmem:[#allocation2 + $0x40] sm:$0xff] %v273
    %429 = vst [vmem:[#allocation2 + $0x48] sm:$0xff] %v275
    %430 = vst [vmem:[#allocation2 + $0x50] sm:$0xff] %v386
    %431 = vst [vmem:[#allocation2 + $0x58] sm:$0xff] %v388
    %432 = vst [vmem:[#allocation2 + $0x60] sm:$0xff] %v279
    %433 = vst [vmem:[#allocation2 + $0x68] sm:$0xff] %v281
    %434 = vst [vmem:[#allocation2 + $0x70] sm:$0xff] %v392
    %435 = vst [vmem:[#allocation2 + $0x78] sm:$0xff] %v394
    %436 = vst [vmem:[#allocation2 + $0x80] sm:$0xff] %v285
    %437 = vst [vmem:[#allocation2 + $0x88] sm:$0xff] %v287
    %438 = vst [vmem:[#allocation2 + $0x90] sm:$0xff] %v398
    %439 = vst [vmem:[#allocation2 + $0x98] sm:$0xff] %v400
    %440 = vst [vmem:[#allocation2 + $0xa0] sm:$0xff] %v291
    %441 = vst [vmem:[#allocation2 + $0xa8] sm:$0xff] %v293
    %442 = vst [vmem:[#allocation2 + $0xb0] sm:$0xff] %v404
    %443 = vst [vmem:[#allocation2 + $0xb8] sm:$0xff] %v406
    %444 = vst [vmem:[#allocation2 + $0xc0] sm:$0xff] %v297
    %445 = vst [vmem:[#allocation2 + $0xc8] sm:$0xff] %v299
    %446 = vst [vmem:[#allocation2 + $0xd0] sm:$0xff] %v410
    %447 = vst [vmem:[#allocation2 + $0xd8] sm:$0xff] %v412
    %448 = vst [vmem:[#allocation2 + $0xe0] sm:$0xff] %v303
    %449 = vst [vmem:[#allocation2 + $0xe8] sm:$0xff] %v305
    %450 = vst [vmem:[#allocation2 + $0xf0] sm:$0xff] %v416
    %451 = vst [vmem:[#allocation2 + $0xf8] sm:$0xff] %v418
    %v452 = vld [vmem:[%s4] sm:$0xff]
    %453 = vst [vmem:[#allocation4] sm:$0xff] %v452
    %v454 = vld [vmem:[%s5] sm:$0xff]
    %455 = vst [vmem:[#allocation5] sm:$0xff] %v454
    %v456 = vld [vmem:[#allocation2] sm:$0xff]
    %v457 = vld [vmem:[#allocation2 + $0x8] sm:$0xff]
    %v458 = vld [vmem:[#allocation2 + $0x10] sm:$0xff]
    %v459 = vld [vmem:[#allocation2 + $0x18] sm:$0xff]
    %v460 = vld [vmem:[#allocation4] sm:$0xff]
    %v461 = vld [vmem:[#allocation12] sm:$0xff]
    %v462 = vld [vmem:[#allocation12 + $0x8] sm:$0xff]
    %v463 = vld [vmem:[#allocation12 + $0x10] sm:$0xff]
    %v464 = vld [vmem:[#allocation12 + $0x18] sm:$0xff]
    %v465 = vld [vmem:[#allocation12 + $0x20] sm:$0xff]
    %v466 = vld [vmem:[#allocation12 + $0x28] sm:$0xff]
    %v467 = vld [vmem:[#allocation12 + $0x30] sm:$0xff]
    %v468 = vld [vmem:[#allocation12 + $0x38] sm:$0xff]
    %v469 = vld [vmem:[#allocation12 + $0x40] sm:$0xff]
    %v470 = vld [vmem:[#allocation12 + $0x48] sm:$0xff]
    %v471 = vld [vmem:[#allocation12 + $0x50] sm:$0xff]
    %v472 = vld [vmem:[#allocation12 + $0x58] sm:$0xff]
    %v473 = vld [vmem:[#allocation12 + $0x60] sm:$0xff]
    %v474 = vld [vmem:[#allocation12 + $0x68] sm:$0xff]
    %v475 = vld [vmem:[#allocation12 + $0x70] sm:$0xff]
    %v476 = vld [vmem:[#allocation12 + $0x78] sm:$0xff]
    %v477 = vld [vmem:[#allocation12 + $0x80] sm:$0xff]
    %v478 = vld [vmem:[#allocation12 + $0x88] sm:$0xff]
    %v479 = vld [vmem:[#allocation12 + $0x90] sm:$0xff]
    %v480 = vld [vmem:[#allocation12 + $0x98] sm:$0xff]
    %v481 = vld [vmem:[#allocation12 + $0xa0] sm:$0xff]
    %v482 = vld [vmem:[#allocation12 + $0xa8] sm:$0xff]
    %v483 = vld [vmem:[#allocation12 + $0xb0] sm:$0xff]
    %v484 = vld [vmem:[#allocation12 + $0xb8] sm:$0xff]
    %v485 = vld [vmem:[#allocation12 + $0xc0] sm:$0xff]
    %v486 = vld [vmem:[#allocation12 + $0xc8] sm:$0xff]
    %v487 = vld [vmem:[#allocation12 + $0xd0] sm:$0xff]
    %v488 = vld [vmem:[#allocation12 + $0xd8] sm:$0xff]
    %v489 = vld [vmem:[#allocation12 + $0xe0] sm:$0xff]
    %v490 = vld [vmem:[#allocation12 + $0xe8] sm:$0xff]
    %v491 = vld [vmem:[#allocation12 + $0xf0] sm:$0xff]
    %v492 = vld [vmem:[#allocation12 + $0xf8] sm:$0xff]
    %v493 = vld [vmem:[#allocation12 + $0x100] sm:$0xff]
    %v494 = vld [vmem:[#allocation12 + $0x108] sm:$0xff]
    %v495 = vld [vmem:[#allocation12 + $0x110] sm:$0xff]
    %v496 = vld [vmem:[#allocation12 + $0x118] sm:$0xff]
    %v497 = vld [vmem:[#allocation12 + $0x120] sm:$0xff]
    %v498 = vld [vmem:[#allocation12 + $0x128] sm:$0xff]
    %v499 = vld [vmem:[#allocation12 + $0x130] sm:$0xff]
    %v500 = vld [vmem:[#allocation12 + $0x138] sm:$0xff]
    %v501 = vld [vmem:[#allocation12 + $0x140] sm:$0xff]
    %v502 = vld [vmem:[#allocation12 + $0x148] sm:$0xff]
    %v503 = vld [vmem:[#allocation12 + $0x150] sm:$0xff]
    %v504 = vld [vmem:[#allocation12 + $0x158] sm:$0xff]
    %v505 = vld [vmem:[#allocation12 + $0x160] sm:$0xff]
    %v506 = vld [vmem:[#allocation12 + $0x168] sm:$0xff]
    %v507 = vld [vmem:[#allocation12 + $0x170] sm:$0xff]
    %v508 = vld [vmem:[#allocation12 + $0x178] sm:$0xff]
    %v509 = vld [vmem:[#allocation12 + $0x180] sm:$0xff]
    %v510 = vld [vmem:[#allocation12 + $0x188] sm:$0xff]
    %v511 = vld [vmem:[#allocation12 + $0x190] sm:$0xff]
    %v512 = vld [vmem:[#allocation12 + $0x198] sm:$0xff]
    %v513 = vld [vmem:[#allocation12 + $0x1a0] sm:$0xff]
    %v514 = vld [vmem:[#allocation12 + $0x1a8] sm:$0xff]
    %v515 = vld [vmem:[#allocation12 + $0x1b0] sm:$0xff]
    %v516 = vld [vmem:[#allocation12 + $0x1b8] sm:$0xff]
    %v517 = vld [vmem:[#allocation12 + $0x1c0] sm:$0xff]
    %v518 = vld [vmem:[#allocation12 + $0x1c8] sm:$0xff]
    %v519 = vld [vmem:[#allocation12 + $0x1d0] sm:$0xff]
    %v520 = vld [vmem:[#allocation12 + $0x1d8] sm:$0xff]
    %v521 = vld [vmem:[#allocation12 + $0x1e0] sm:$0xff]
    %v522 = vld [vmem:[#allocation12 + $0x1e8] sm:$0xff]
    %v523 = vld [vmem:[#allocation12 + $0x1f0] sm:$0xff]
    %v524 = vld [vmem:[#allocation12 + $0x1f8] sm:$0xff]
    %525 = vmatprep.subr.mxu0 %v462
    %526 = vmatpush1.msra.mxu0 %v461
    %527 = vmatprep.subr.mxu0 %v466
    %528 = vmatpush1.msra.mxu0 %v465
    %529 = vmatprep.subr.mxu0 %v470
    %530 = vmatpush1.msra.mxu0 %v469
    %531 = vmatprep.subr.mxu0 %v474
    %532 = vmatpush1.msra.mxu0 %v473
    %533 = vmatprep.subr.mxu0 %v478
    %534 = vmatpush1.msra.mxu0 %v477
    %535 = vmatprep.subr.mxu0 %v482
    %536 = vmatpush1.msra.mxu0 %v481
    %537 = vmatprep.subr.mxu0 %v486
    %538 = vmatpush1.msra.mxu0 %v485
    %539 = vmatprep.subr.mxu0 %v490
    %540 = vmatpush1.msra.mxu0 %v489
    %541 = vmatprep.subr.mxu0 %v494
    %542 = vmatpush1.msra.mxu0 %v493
    %543 = vmatprep.subr.mxu0 %v498
    %544 = vmatpush1.msra.mxu0 %v497
    %545 = vmatprep.subr.mxu0 %v502
    %546 = vmatpush1.msra.mxu0 %v501
    %547 = vmatprep.subr.mxu0 %v506
    %548 = vmatpush1.msra.mxu0 %v505
    %549 = vmatprep.subr.mxu0 %v510
    %550 = vmatpush1.msra.mxu0 %v509
    %551 = vmatprep.subr.mxu0 %v514
    %552 = vmatpush1.msra.mxu0 %v513
    %553 = vmatprep.subr.mxu0 %v518
    %554 = vmatpush1.msra.mxu0 %v517
    %555 = vmatprep.subr.mxu0 %v522
    %556 = vmatpush1.msra.mxu0 %v521
    %557 = vmatprep.subr.mxu0 0.0
    %558 = vmatpush1.msra.mxu0 0.0
    %559 = vmatprep.subr.mxu0 0.0
    %560 = vmatpush1.msra.mxu0 0.0
    %561 = vmatprep.subr.mxu0 0.0
    %562 = vmatpush1.msra.mxu0 0.0
    %563 = vmatprep.subr.mxu0 0.0
    %564 = vmatpush1.msra.mxu0 0.0
    %565 = vmatprep.subr.mxu0 0.0
    %566 = vmatpush1.msra.mxu0 0.0
    %567 = vmatprep.subr.mxu0 0.0
    %568 = vmatpush1.msra.mxu0 0.0
    %569 = vmatprep.subr.mxu0 0.0
    %570 = vmatpush1.msra.mxu0 0.0
    %571 = vmatprep.subr.mxu0 0.0
    %572 = vmatpush1.msra.mxu0 0.0
    %573 = vmatprep.subr.mxu0 0.0
    %574 = vmatpush1.msra.mxu0 0.0
    %575 = vmatprep.subr.mxu0 0.0
    %576 = vmatpush1.msra.mxu0 0.0
    %577 = vmatprep.subr.mxu0 0.0
    %578 = vmatpush1.msra.mxu0 0.0
    %579 = vmatprep.subr.mxu0 0.0
    %580 = vmatpush1.msra.mxu0 0.0
    %581 = vmatprep.subr.mxu0 0.0
    %582 = vmatpush1.msra.mxu0 0.0
    %583 = vmatprep.subr.mxu0 0.0
    %584 = vmatpush1.msra.mxu0 0.0
    %585 = vmatprep.subr.mxu0 0.0
    %586 = vmatpush1.msra.mxu0 0.0
    %587 = vmatprep.subr.mxu0 0.0
    %588 = vmatpush1.msra.mxu0 0.0
    %589 = vmatprep.mubr.f32.mxu0 0.0
    %590 = vmatmul.mubr.f32.gmra.mrb[0].mxu0 %v460
    %v591 = vpop.f32.mrb[0].mxu0
    %v592 = vadd.f32 0.0, %v591
    %v593 = vpop.f32.mrb[0].mxu0
    %v594 = vadd.f32 0.0, %v593
    %595 = vdwg.mxu0
    %596 = vmatprep.subr.mxu0 %v464
    %597 = vmatpush1.msra.mxu0 %v463
    %598 = vmatprep.subr.mxu0 %v468
    %599 = vmatpush1.msra.mxu0 %v467
    %600 = vmatprep.subr.mxu0 %v472
    %601 = vmatpush1.msra.mxu0 %v471
    %602 = vmatprep.subr.mxu0 %v476
    %603 = vmatpush1.msra.mxu0 %v475
    %604 = vmatprep.subr.mxu0 %v480
    %605 = vmatpush1.msra.mxu0 %v479
    %606 = vmatprep.subr.mxu0 %v484
    %607 = vmatpush1.msra.mxu0 %v483
    %608 = vmatprep.subr.mxu0 %v488
    %609 = vmatpush1.msra.mxu0 %v487
    %610 = vmatprep.subr.mxu0 %v492
    %611 = vmatpush1.msra.mxu0 %v491
    %612 = vmatprep.subr.mxu0 %v496
    %613 = vmatpush1.msra.mxu0 %v495
    %614 = vmatprep.subr.mxu0 %v500
    %615 = vmatpush1.msra.mxu0 %v499
    %616 = vmatprep.subr.mxu0 %v504
    %617 = vmatpush1.msra.mxu0 %v503
    %618 = vmatprep.subr.mxu0 %v508
    %619 = vmatpush1.msra.mxu0 %v507
    %620 = vmatprep.subr.mxu0 %v512
    %621 = vmatpush1.msra.mxu0 %v511
    %622 = vmatprep.subr.mxu0 %v516
    %623 = vmatpush1.msra.mxu0 %v515
    %624 = vmatprep.subr.mxu0 %v520
    %625 = vmatpush1.msra.mxu0 %v519
    %626 = vmatprep.subr.mxu0 %v524
    %627 = vmatpush1.msra.mxu0 %v523
    %628 = vmatprep.subr.mxu0 0.0
    %629 = vmatpush1.msra.mxu0 0.0
    %630 = vmatprep.subr.mxu0 0.0
    %631 = vmatpush1.msra.mxu0 0.0
    %632 = vmatprep.subr.mxu0 0.0
    %633 = vmatpush1.msra.mxu0 0.0
    %634 = vmatprep.subr.mxu0 0.0
    %635 = vmatpush1.msra.mxu0 0.0
    %636 = vmatprep.subr.mxu0 0.0
    %637 = vmatpush1.msra.mxu0 0.0
    %638 = vmatprep.subr.mxu0 0.0
    %639 = vmatpush1.msra.mxu0 0.0
    %640 = vmatprep.subr.mxu0 0.0
    %641 = vmatpush1.msra.mxu0 0.0
    %642 = vmatprep.subr.mxu0 0.0
    %643 = vmatpush1.msra.mxu0 0.0
    %644 = vmatprep.subr.mxu0 0.0
    %645 = vmatpush1.msra.mxu0 0.0
    %646 = vmatprep.subr.mxu0 0.0
    %647 = vmatpush1.msra.mxu0 0.0
    %648 = vmatprep.subr.mxu0 0.0
    %649 = vmatpush1.msra.mxu0 0.0
    %650 = vmatprep.subr.mxu0 0.0
    %651 = vmatpush1.msra.mxu0 0.0
    %652 = vmatprep.subr.mxu0 0.0
    %653 = vmatpush1.msra.mxu0 0.0
    %654 = vmatprep.subr.mxu0 0.0
    %655 = vmatpush1.msra.mxu0 0.0
    %656 = vmatprep.subr.mxu0 0.0
    %657 = vmatpush1.msra.mxu0 0.0
    %658 = vmatprep.subr.mxu0 0.0
    %659 = vmatpush1.msra.mxu0 0.0
    %660 = vmatprep.mubr.f32.mxu0 0.0
    %661 = vmatmul.mubr.f32.gmra.mrb[0].mxu0 %v460
    %v662 = vpop.f32.mrb[0].mxu0
    %v663 = vadd.f32 0.0, %v662
    %v664 = vpop.f32.mrb[0].mxu0
    %v665 = vadd.f32 0.0, %v664
    %666 = vdwg.mxu0
    %v667 = vadd.f32 %v456, %v592
    %v668 = vadd.f32 %v457, %v594
    %v669 = vadd.f32 %v458, %v663
    %v670 = vadd.f32 %v459, %v665
    %v671 = vxor.u32 %v667, 2147483648
    %v672 = vmul.f32 %v671, 1.442695
    %v673 = vpow.pop %v672
    %v674 = vadd.f32 %v673, 1.0
    %v675 = vrcp.pop %v674
    %v676 = vmul.f32 1.0, %v675
    %v677 = vxor.u32 %v668, 2147483648
    %v678 = vmul.f32 %v677, 1.442695
    %v679 = vpow.pop %v678
    %v680 = vadd.f32 %v679, 1.0
    %v681 = vrcp.pop %v680
    %v682 = vmul.f32 1.0, %v681
    %v683 = vtanh.pop %v669
    %v684 = vxor.u32 %v670, 2147483648
    %v685 = vmul.f32 %v684, 1.442695
    %v686 = vpow.pop %v685
    %v687 = vadd.f32 %v686, 1.0
    %v688 = vrcp.pop %v687
    %v689 = vmul.f32 1.0, %v688
    %v690 = vld [vmem:[#allocation5] sm:$0xff]
    %v691 = vmul.f32 %v682, %v690
    %v692 = vmul.f32 %v676, %v683
    %v693 = vadd.f32 %v691, %v692
    %v694 = vtanh.pop %v693
    %v695 = vmul.f32 %v689, %v694
    %696 = vst [vmem:[#allocation5] sm:$0xff] %v693
    %697 = vst [vmem:[#allocation4] sm:$0xff] %v695
    %698 = vst [vmem:[#allocation3] sm:$0xff] %v695
    %s699 = scalar_lea.vmem [#allocation2], 32
    %v700 = vld [vmem:[%s699] sm:$0xff]
    %v701 = vld [vmem:[%s699 + $0x8] sm:$0xff]
    %v702 = vld [vmem:[%s699 + $0x10] sm:$0xff]
    %v703 = vld [vmem:[%s699 + $0x18] sm:$0xff]
    %v704 = vld [vmem:[#allocation4] sm:$0xff]
    %v705 = vld [vmem:[#allocation12] sm:$0xff]
    %v706 = vld [vmem:[#allocation12 + $0x8] sm:$0xff]
    %v707 = vld [vmem:[#allocation12 + $0x10] sm:$0xff]
    %v708 = vld [vmem:[#allocation12 + $0x18] sm:$0xff]
    %v709 = vld [vmem:[#allocation12 + $0x20] sm:$0xff]
    %v710 = vld [vmem:[#allocation12 + $0x28] sm:$0xff]
    %v711 = vld [vmem:[#allocation12 + $0x30] sm:$0xff]
    %v712 = vld [vmem:[#allocation12 + $0x38] sm:$0xff]
    %v713 = vld [vmem:[#allocation12 + $0x40] sm:$0xff]
    %v714 = vld [vmem:[#allocation12 + $0x48] sm:$0xff]
    %v715 = vld [vmem:[#allocation12 + $0x50] sm:$0xff]
    %v716 = vld [vmem:[#allocation12 + $0x58] sm:$0xff]
    %v717 = vld [vmem:[#allocation12 + $0x60] sm:$0xff]
    %v718 = vld [vmem:[#allocation12 + $0x68] sm:$0xff]
    %v719 = vld [vmem:[#allocation12 + $0x70] sm:$0xff]
    %v720 = vld [vmem:[#allocation12 + $0x78] sm:$0xff]
    %v721 = vld [vmem:[#allocation12 + $0x80] sm:$0xff]
    %v722 = vld [vmem:[#allocation12 + $0x88] sm:$0xff]
    %v723 = vld [vmem:[#allocation12 + $0x90] sm:$0xff]
    %v724 = vld [vmem:[#allocation12 + $0x98] sm:$0xff]
    %v725 = vld [vmem:[#allocation12 + $0xa0] sm:$0xff]
    %v726 = vld [vmem:[#allocation12 + $0xa8] sm:$0xff]
    %v727 = vld [vmem:[#allocation12 + $0xb0] sm:$0xff]
    %v728 = vld [vmem:[#allocation12 + $0xb8] sm:$0xff]
    %v729 = vld [vmem:[#allocation12 + $0xc0] sm:$0xff]
    %v730 = vld [vmem:[#allocation12 + $0xc8] sm:$0xff]
    %v731 = vld [vmem:[#allocation12 + $0xd0] sm:$0xff]
    %v732 = vld [vmem:[#allocation12 + $0xd8] sm:$0xff]
    %v733 = vld [vmem:[#allocation12 + $0xe0] sm:$0xff]
    %v734 = vld [vmem:[#allocation12 + $0xe8] sm:$0xff]
    %v735 = vld [vmem:[#allocation12 + $0xf0] sm:$0xff]
    %v736 = vld [vmem:[#allocation12 + $0xf8] sm:$0xff]
    %v737 = vld [vmem:[#allocation12 + $0x100] sm:$0xff]
    %v738 = vld [vmem:[#allocation12 + $0x108] sm:$0xff]
    %v739 = vld [vmem:[#allocation12 + $0x110] sm:$0xff]
    %v740 = vld [vmem:[#allocation12 + $0x118] sm:$0xff]
    %v741 = vld [vmem:[#allocation12 + $0x120] sm:$0xff]
    %v742 = vld [vmem:[#allocation12 + $0x128] sm:$0xff]
    %v743 = vld [vmem:[#allocation12 + $0x130] sm:$0xff]
    %v744 = vld [vmem:[#allocation12 + $0x138] sm:$0xff]
    %v745 = vld [vmem:[#allocation12 + $0x140] sm:$0xff]
    %v746 = vld [vmem:[#allocation12 + $0x148] sm:$0xff]
    %v747 = vld [vmem:[#allocation12 + $0x150] sm:$0xff]
    %v748 = vld [vmem:[#allocation12 + $0x158] sm:$0xff]
    %v749 = vld [vmem:[#allocation12 + $0x160] sm:$0xff]
    %v750 = vld [vmem:[#allocation12 + $0x168] sm:$0xff]
    %v751 = vld [vmem:[#allocation12 + $0x170] sm:$0xff]
    %v752 = vld [vmem:[#allocation12 + $0x178] sm:$0xff]
    %v753 = vld [vmem:[#allocation12 + $0x180] sm:$0xff]
    %v754 = vld [vmem:[#allocation12 + $0x188] sm:$0xff]
    %v755 = vld [vmem:[#allocation12 + $0x190] sm:$0xff]
    %v756 = vld [vmem:[#allocation12 + $0x198] sm:$0xff]
    %v757 = vld [vmem:[#allocation12 + $0x1a0] sm:$0xff]
    %v758 = vld [vmem:[#allocation12 + $0x1a8] sm:$0xff]
    %v759 = vld [vmem:[#allocation12 + $0x1b0] sm:$0xff]
    %v760 = vld [vmem:[#allocation12 + $0x1b8] sm:$0xff]
    %v761 = vld [vmem:[#allocation12 + $0x1c0] sm:$0xff]
    %v762 = vld [vmem:[#allocation12 + $0x1c8] sm:$0xff]
    %v763 = vld [vmem:[#allocation12 + $0x1d0] sm:$0xff]
    %v764 = vld [vmem:[#allocation12 + $0x1d8] sm:$0xff]
    %v765 = vld [vmem:[#allocation12 + $0x1e0] sm:$0xff]
    %v766 = vld [vmem:[#allocation12 + $0x1e8] sm:$0xff]
    %v767 = vld [vmem:[#allocation12 + $0x1f0] sm:$0xff]
    %v768 = vld [vmem:[#allocation12 + $0x1f8] sm:$0xff]
    %769 = vmatprep.subr.mxu0 %v706
    %770 = vmatpush1.msra.mxu0 %v705
    %771 = vmatprep.subr.mxu0 %v710
    %772 = vmatpush1.msra.mxu0 %v709
    %773 = vmatprep.subr.mxu0 %v714
    %774 = vmatpush1.msra.mxu0 %v713
    %775 = vmatprep.subr.mxu0 %v718
    %776 = vmatpush1.msra.mxu0 %v717
    %777 = vmatprep.subr.mxu0 %v722
    %778 = vmatpush1.msra.mxu0 %v721
    %779 = vmatprep.subr.mxu0 %v726
    %780 = vmatpush1.msra.mxu0 %v725
    %781 = vmatprep.subr.mxu0 %v730
    %782 = vmatpush1.msra.mxu0 %v729
    %783 = vmatprep.subr.mxu0 %v734
    %784 = vmatpush1.msra.mxu0 %v733
    %785 = vmatprep.subr.mxu0 %v738
    %786 = vmatpush1.msra.mxu0 %v737
    %787 = vmatprep.subr.mxu0 %v742
    %788 = vmatpush1.msra.mxu0 %v741
    %789 = vmatprep.subr.mxu0 %v746
    %790 = vmatpush1.msra.mxu0 %v745
    %791 = vmatprep.subr.mxu0 %v750
    %792 = vmatpush1.msra.mxu0 %v749
    %793 = vmatprep.subr.mxu0 %v754
    %794 = vmatpush1.msra.mxu0 %v753
    %795 = vmatprep.subr.mxu0 %v758
    %796 = vmatpush1.msra.mxu0 %v757
    %797 = vmatprep.subr.mxu0 %v762
    %798 = vmatpush1.msra.mxu0 %v761
    %799 = vmatprep.subr.mxu0 %v766
    %800 = vmatpush1.msra.mxu0 %v765
    %801 = vmatprep.subr.mxu0 0.0
    %802 = vmatpush1.msra.mxu0 0.0
    %803 = vmatprep.subr.mxu0 0.0
    %804 = vmatpush1.msra.mxu0 0.0
    %805 = vmatprep.subr.mxu0 0.0
    %806 = vmatpush1.msra.mxu0 0.0
    %807 = vmatprep.subr.mxu0 0.0
    %808 = vmatpush1.msra.mxu0 0.0
    %809 = vmatprep.subr.mxu0 0.0
    %810 = vmatpush1.msra.mxu0 0.0
    %811 = vmatprep.subr.mxu0 0.0
    %812 = vmatpush1.msra.mxu0 0.0
    %813 = vmatprep.subr.mxu0 0.0
    %814 = vmatpush1.msra.mxu0 0.0
    %815 = vmatprep.subr.mxu0 0.0
    %816 = vmatpush1.msra.mxu0 0.0
    %817 = vmatprep.subr.mxu0 0.0
    %818 = vmatpush1.msra.mxu0 0.0
    %819 = vmatprep.subr.mxu0 0.0
    %820 = vmatpush1.msra.mxu0 0.0
    %821 = vmatprep.subr.mxu0 0.0
    %822 = vmatpush1.msra.mxu0 0.0
    %823 = vmatprep.subr.mxu0 0.0
    %824 = vmatpush1.msra.mxu0 0.0
    %825 = vmatprep.subr.mxu0 0.0
    %826 = vmatpush1.msra.mxu0 0.0
    %827 = vmatprep.subr.mxu0 0.0
    %828 = vmatpush1.msra.mxu0 0.0
    %829 = vmatprep.subr.mxu0 0.0
    %830 = vmatpush1.msra.mxu0 0.0
    %831 = vmatprep.subr.mxu0 0.0
    %832 = vmatpush1.msra.mxu0 0.0
    %833 = vmatprep.mubr.f32.mxu0 0.0
    %834 = vmatmul.mubr.f32.gmra.mrb[0].mxu0 %v704
    %v835 = vpop.f32.mrb[0].mxu0
    %v836 = vadd.f32 0.0, %v835
    %v837 = vpop.f32.mrb[0].mxu0
    %v838 = vadd.f32 0.0, %v837
    %839 = vdwg.mxu0
    %840 = vmatprep.subr.mxu0 %v708
    %841 = vmatpush1.msra.mxu0 %v707
    %842 = vmatprep.subr.mxu0 %v712
    %843 = vmatpush1.msra.mxu0 %v711
    %844 = vmatprep.subr.mxu0 %v716
    %845 = vmatpush1.msra.mxu0 %v715
    %846 = vmatprep.subr.mxu0 %v720
    %847 = vmatpush1.msra.mxu0 %v719
    %848 = vmatprep.subr.mxu0 %v724
    %849 = vmatpush1.msra.mxu0 %v723
    %850 = vmatprep.subr.mxu0 %v728
    %851 = vmatpush1.msra.mxu0 %v727
    %852 = vmatprep.subr.mxu0 %v732
    %853 = vmatpush1.msra.mxu0 %v731
    %854 = vmatprep.subr.mxu0 %v736
    %855 = vmatpush1.msra.mxu0 %v735
    %856 = vmatprep.subr.mxu0 %v740
    %857 = vmatpush1.msra.mxu0 %v739
    %858 = vmatprep.subr.mxu0 %v744
    %859 = vmatpush1.msra.mxu0 %v743
    %860 = vmatprep.subr.mxu0 %v748
    %861 = vmatpush1.msra.mxu0 %v747
    %862 = vmatprep.subr.mxu0 %v752
    %863 = vmatpush1.msra.mxu0 %v751
    %864 = vmatprep.subr.mxu0 %v756
    %865 = vmatpush1.msra.mxu0 %v755
    %866 = vmatprep.subr.mxu0 %v760
    %867 = vmatpush1.msra.mxu0 %v759
    %868 = vmatprep.subr.mxu0 %v764
    %869 = vmatpush1.msra.mxu0 %v763
    %870 = vmatprep.subr.mxu0 %v768
    %871 = vmatpush1.msra.mxu0 %v767
    %872 = vmatprep.subr.mxu0 0.0
    %873 = vmatpush1.msra.mxu0 0.0
    %874 = vmatprep.subr.mxu0 0.0
    %875 = vmatpush1.msra.mxu0 0.0
    %876 = vmatprep.subr.mxu0 0.0
    %877 = vmatpush1.msra.mxu0 0.0
    %878 = vmatprep.subr.mxu0 0.0
    %879 = vmatpush1.msra.mxu0 0.0
    %880 = vmatprep.subr.mxu0 0.0
    %881 = vmatpush1.msra.mxu0 0.0
    %882 = vmatprep.subr.mxu0 0.0
    %883 = vmatpush1.msra.mxu0 0.0
    %884 = vmatprep.subr.mxu0 0.0
    %885 = vmatpush1.msra.mxu0 0.0
    %886 = vmatprep.subr.mxu0 0.0
    %887 = vmatpush1.msra.mxu0 0.0
    %888 = vmatprep.subr.mxu0 0.0
    %889 = vmatpush1.msra.mxu0 0.0
    %890 = vmatprep.subr.mxu0 0.0
    %891 = vmatpush1.msra.mxu0 0.0
    %892 = vmatprep.subr.mxu0 0.0
    %893 = vmatpush1.msra.mxu0 0.0
    %894 = vmatprep.subr.mxu0 0.0
    %895 = vmatpush1.msra.mxu0 0.0
    %896 = vmatprep.subr.mxu0 0.0
    %897 = vmatpush1.msra.mxu0 0.0
    %898 = vmatprep.subr.mxu0 0.0
    %899 = vmatpush1.msra.mxu0 0.0
    %900 = vmatprep.subr.mxu0 0.0
    %901 = vmatpush1.msra.mxu0 0.0
    %902 = vmatprep.subr.mxu0 0.0
    %903 = vmatpush1.msra.mxu0 0.0
    %904 = vmatprep.mubr.f32.mxu0 0.0
    %905 = vmatmul.mubr.f32.gmra.mrb[0].mxu0 %v704
    %v906 = vpop.f32.mrb[0].mxu0
    %v907 = vadd.f32 0.0, %v906
    %v908 = vpop.f32.mrb[0].mxu0
    %v909 = vadd.f32 0.0, %v908
    %910 = vdwg.mxu0
    %v911 = vadd.f32 %v700, %v836
    %v912 = vadd.f32 %v701, %v838
    %v913 = vadd.f32 %v702, %v907
    %v914 = vadd.f32 %v703, %v909
    %v915 = vxor.u32 %v911, 2147483648
    %v916 = vmul.f32 %v915, 1.442695
    %v917 = vpow.pop %v916
    %v918 = vadd.f32 %v917, 1.0
    %v919 = vrcp.pop %v918
    %v920 = vmul.f32 1.0, %v919
    %v921 = vxor.u32 %v912, 2147483648
    %v922 = vmul.f32 %v921, 1.442695
    %v923 = vpow.pop %v922
    %v924 = vadd.f32 %v923, 1.0
    %v925 = vrcp.pop %v924
    %v926 = vmul.f32 1.0, %v925
    %v927 = vtanh.pop %v913
    %v928 = vxor.u32 %v914, 2147483648
    %v929 = vmul.f32 %v928, 1.442695
    %v930 = vpow.pop %v929
    %v931 = vadd.f32 %v930, 1.0
    %v932 = vrcp.pop %v931
    %v933 = vmul.f32 1.0, %v932
    %v934 = vld [vmem:[#allocation5] sm:$0xff]
    %v935 = vmul.f32 %v926, %v934
    %v936 = vmul.f32 %v920, %v927
    %v937 = vadd.f32 %v935, %v936
    %v938 = vtanh.pop %v937
    %v939 = vmul.f32 %v933, %v938
    %940 = vst [vmem:[#allocation5] sm:$0xff] %v937
    %941 = vst [vmem:[#allocation4] sm:$0xff] %v939
    %s942 = scalar_lea.vmem [#allocation3], 8
    %943 = vst [vmem:[%s942] sm:$0xff] %v939
    %s944 = scalar_lea.vmem [#allocation2], 64
    %v945 = vld [vmem:[%s944] sm:$0xff]
    %v946 = vld [vmem:[%s944 + $0x8] sm:$0xff]
    %v947 = vld [vmem:[%s944 + $0x10] sm:$0xff]
    %v948 = vld [vmem:[%s944 + $0x18] sm:$0xff]
    %v949 = vld [vmem:[#allocation4] sm:$0xff]
    %v950 = vld [vmem:[#allocation12] sm:$0xff]
    %v951 = vld [vmem:[#allocation12 + $0x8] sm:$0xff]
    %v952 = vld [vmem:[#allocation12 + $0x10] sm:$0xff]
    %v953 = vld [vmem:[#allocation12 + $0x18] sm:$0xff]
    %v954 = vld [vmem:[#allocation12 + $0x20] sm:$0xff]
    %v955 = vld [vmem:[#allocation12 + $0x28] sm:$0xff]
    %v956 = vld [vmem:[#allocation12 + $0x30] sm:$0xff]
    %v957 = vld [vmem:[#allocation12 + $0x38] sm:$0xff]
    %v958 = vld [vmem:[#allocation12 + $0x40] sm:$0xff]
    %v959 = vld [vmem:[#allocation12 + $0x48] sm:$0xff]
    %v960 = vld [vmem:[#allocation12 + $0x50] sm:$0xff]
    %v961 = vld [vmem:[#allocation12 + $0x58] sm:$0xff]
    %v962 = vld [vmem:[#allocation12 + $0x60] sm:$0xff]
    %v963 = vld [vmem:[#allocation12 + $0x68] sm:$0xff]
    %v964 = vld [vmem:[#allocation12 + $0x70] sm:$0xff]
    %v965 = vld [vmem:[#allocation12 + $0x78] sm:$0xff]
    %v966 = vld [vmem:[#allocation12 + $0x80] sm:$0xff]
    %v967 = vld [vmem:[#allocation12 + $0x88] sm:$0xff]
    %v968 = vld [vmem:[#allocation12 + $0x90] sm:$0xff]
    %v969 = vld [vmem:[#allocation12 + $0x98] sm:$0xff]
    %v970 = vld [vmem:[#allocation12 + $0xa0] sm:$0xff]
    %v971 = vld [vmem:[#allocation12 + $0xa8] sm:$0xff]
    %v972 = vld [vmem:[#allocation12 + $0xb0] sm:$0xff]
    %v973 = vld [vmem:[#allocation12 + $0xb8] sm:$0xff]
    %v974 = vld [vmem:[#allocation12 + $0xc0] sm:$0xff]
    %v975 = vld [vmem:[#allocation12 + $0xc8] sm:$0xff]
    %v976 = vld [vmem:[#allocation12 + $0xd0] sm:$0xff]
    %v977 = vld [vmem:[#allocation12 + $0xd8] sm:$0xff]
    %v978 = vld [vmem:[#allocation12 + $0xe0] sm:$0xff]
    %v979 = vld [vmem:[#allocation12 + $0xe8] sm:$0xff]
    %v980 = vld [vmem:[#allocation12 + $0xf0] sm:$0xff]
    %v981 = vld [vmem:[#allocation12 + $0xf8] sm:$0xff]
    %v982 = vld [vmem:[#allocation12 + $0x100] sm:$0xff]
    %v983 = vld [vmem:[#allocation12 + $0x108] sm:$0xff]
    %v984 = vld [vmem:[#allocation12 + $0x110] sm:$0xff]
    %v985 = vld [vmem:[#allocation12 + $0x118] sm:$0xff]
    %v986 = vld [vmem:[#allocation12 + $0x120] sm:$0xff]
    %v987 = vld [vmem:[#allocation12 + $0x128] sm:$0xff]
    %v988 = vld [vmem:[#allocation12 + $0x130] sm:$0xff]
    %v989 = vld [vmem:[#allocation12 + $0x138] sm:$0xff]
    %v990 = vld [vmem:[#allocation12 + $0x140] sm:$0xff]
    %v991 = vld [vmem:[#allocation12 + $0x148] sm:$0xff]
    %v992 = vld [vmem:[#allocation12 + $0x150] sm:$0xff]
    %v993 = vld [vmem:[#allocation12 + $0x158] sm:$0xff]
    %v994 = vld [vmem:[#allocation12 + $0x160] sm:$0xff]
    %v995 = vld [vmem:[#allocation12 + $0x168] sm:$0xff]
    %v996 = vld [vmem:[#allocation12 + $0x170] sm:$0xff]
    %v997 = vld [vmem:[#allocation12 + $0x178] sm:$0xff]
    %v998 = vld [vmem:[#allocation12 + $0x180] sm:$0xff]
    %v999 = vld [vmem:[#allocation12 + $0x188] sm:$0xff]
    %v1000 = vld [vmem:[#allocation12 + $0x190] sm:$0xff]
    %v1001 = vld [vmem:[#allocation12 + $0x198] sm:$0xff]
    %v1002 = vld [vmem:[#allocation12 + $0x1a0] sm:$0xff]
    %v1003 = vld [vmem:[#allocation12 + $0x1a8] sm:$0xff]
    %v1004 = vld [vmem:[#allocation12 + $0x1b0] sm:$0xff]
    %v1005 = vld [vmem:[#allocation12 + $0x1b8] sm:$0xff]
    %v1006 = vld [vmem:[#allocation12 + $0x1c0] sm:$0xff]
    %v1007 = vld [vmem:[#allocation12 + $0x1c8] sm:$0xff]
    %v1008 = vld [vmem:[#allocation12 + $0x1d0] sm:$0xff]
    %v1009 = vld [vmem:[#allocation12 + $0x1d8] sm:$0xff]
    %v1010 = vld [vmem:[#allocation12 + $0x1e0] sm:$0xff]
    %v1011 = vld [vmem:[#allocation12 + $0x1e8] sm:$0xff]
    %v1012 = vld [vmem:[#allocation12 + $0x1f0] sm:$0xff]
    %v1013 = vld [vmem:[#allocation12 + $0x1f8] sm:$0xff]
    %1014 = vmatprep.subr.mxu0 %v951
    %1015 = vmatpush1.msra.mxu0 %v950
    %1016 = vmatprep.subr.mxu0 %v955
    %1017 = vmatpush1.msra.mxu0 %v954
    %1018 = vmatprep.subr.mxu0 %v959
    %1019 = vmatpush1.msra.mxu0 %v958
    %1020 = vmatprep.subr.mxu0 %v963
    %1021 = vmatpush1.msra.mxu0 %v962
    %1022 = vmatprep.subr.mxu0 %v967
    %1023 = vmatpush1.msra.mxu0 %v966
    %1024 = vmatprep.subr.mxu0 %v971
    %1025 = vmatpush1.msra.mxu0 %v970
    %1026 = vmatprep.subr.mxu0 %v975
    %1027 = vmatpush1.msra.mxu0 %v974
    %1028 = vmatprep.subr.mxu0 %v979
    %1029 = vmatpush1.msra.mxu0 %v978
    %1030 = vmatprep.subr.mxu0 %v983
    %1031 = vmatpush1.msra.mxu0 %v982
    %1032 = vmatprep.subr.mxu0 %v987
    %1033 = vmatpush1.msra.mxu0 %v986
    %1034 = vmatprep.subr.mxu0 %v991
    %1035 = vmatpush1.msra.mxu0 %v990
    %1036 = vmatprep.subr.mxu0 %v995
    %1037 = vmatpush1.msra.mxu0 %v994
    %1038 = vmatprep.subr.mxu0 %v999
    %1039 = vmatpush1.msra.mxu0 %v998
    %1040 = vmatprep.subr.mxu0 %v1003
    %1041 = vmatpush1.msra.mxu0 %v1002
    %1042 = vmatprep.subr.mxu0 %v1007
    %1043 = vmatpush1.msra.mxu0 %v1006
    %1044 = vmatprep.subr.mxu0 %v1011
    %1045 = vmatpush1.msra.mxu0 %v1010
    %1046 = vmatprep.subr.mxu0 0.0
    %1047 = vmatpush1.msra.mxu0 0.0
    %1048 = vmatprep.subr.mxu0 0.0
    %1049 = vmatpush1.msra.mxu0 0.0
    %1050 = vmatprep.subr.mxu0 0.0
    %1051 = vmatpush1.msra.mxu0 0.0
    %1052 = vmatprep.subr.mxu0 0.0
    %1053 = vmatpush1.msra.mxu0 0.0
    %1054 = vmatprep.subr.mxu0 0.0
    %1055 = vmatpush1.msra.mxu0 0.0
    %1056 = vmatprep.subr.mxu0 0.0
    %1057 = vmatpush1.msra.mxu0 0.0
    %1058 = vmatprep.subr.mxu0 0.0
    %1059 = vmatpush1.msra.mxu0 0.0
    %1060 = vmatprep.subr.mxu0 0.0
    %1061 = vmatpush1.msra.mxu0 0.0
    %1062 = vmatprep.subr.mxu0 0.0
    %1063 = vmatpush1.msra.mxu0 0.0
    %1064 = vmatprep.subr.mxu0 0.0
    %1065 = vmatpush1.msra.mxu0 0.0
    %1066 = vmatprep.subr.mxu0 0.0
    %1067 = vmatpush1.msra.mxu0 0.0
    %1068 = vmatprep.subr.mxu0 0.0
    %1069 = vmatpush1.msra.mxu0 0.0
    %1070 = vmatprep.subr.mxu0 0.0
    %1071 = vmatpush1.msra.mxu0 0.0
    %1072 = vmatprep.subr.mxu0 0.0
    %1073 = vmatpush1.msra.mxu0 0.0
    %1074 = vmatprep.subr.mxu0 0.0
    %1075 = vmatpush1.msra.mxu0 0.0
    %1076 = vmatprep.subr.mxu0 0.0
    %1077 = vmatpush1.msra.mxu0 0.0
    %1078 = vmatprep.mubr.f32.mxu0 0.0
    %1079 = vmatmul.mubr.f32.gmra.mrb[0].mxu0 %v949
    %v1080 = vpop.f32.mrb[0].mxu0
    %v1081 = vadd.f32 0.0, %v1080
    %v1082 = vpop.f32.mrb[0].mxu0
    %v1083 = vadd.f32 0.0, %v1082
    %1084 = vdwg.mxu0
    %1085 = vmatprep.subr.mxu0 %v953
    %1086 = vmatpush1.msra.mxu0 %v952
    %1087 = vmatprep.subr.mxu0 %v957
    %1088 = vmatpush1.msra.mxu0 %v956
    %1089 = vmatprep.subr.mxu0 %v961
    %1090 = vmatpush1.msra.mxu0 %v960
    %1091 = vmatprep.subr.mxu0 %v965
    %1092 = vmatpush1.msra.mxu0 %v964
    %1093 = vmatprep.subr.mxu0 %v969
    %1094 = vmatpush1.msra.mxu0 %v968
    %1095 = vmatprep.subr.mxu0 %v973
    %1096 = vmatpush1.msra.mxu0 %v972
    %1097 = vmatprep.subr.mxu0 %v977
    %1098 = vmatpush1.msra.mxu0 %v976
    %1099 = vmatprep.subr.mxu0 %v981
    %1100 = vmatpush1.msra.mxu0 %v980
    %1101 = vmatprep.subr.mxu0 %v985
    %1102 = vmatpush1.msra.mxu0 %v984
    %1103 = vmatprep.subr.mxu0 %v989
    %1104 = vmatpush1.msra.mxu0 %v988
    %1105 = vmatprep.subr.mxu0 %v993
    %1106 = vmatpush1.msra.mxu0 %v992
    %1107 = vmatprep.subr.mxu0 %v997
    %1108 = vmatpush1.msra.mxu0 %v996
    %1109 = vmatprep.subr.mxu0 %v1001
    %1110 = vmatpush1.msra.mxu0 %v1000
    %1111 = vmatprep.subr.mxu0 %v1005
    %1112 = vmatpush1.msra.mxu0 %v1004
    %1113 = vmatprep.subr.mxu0 %v1009
    %1114 = vmatpush1.msra.mxu0 %v1008
    %1115 = vmatprep.subr.mxu0 %v1013
    %1116 = vmatpush1.msra.mxu0 %v1012
    %1117 = vmatprep.subr.mxu0 0.0
    %1118 = vmatpush1.msra.mxu0 0.0
    %1119 = vmatprep.subr.mxu0 0.0
    %1120 = vmatpush1.msra.mxu0 0.0
    %1121 = vmatprep.subr.mxu0 0.0
    %1122 = vmatpush1.msra.mxu0 0.0
    %1123 = vmatprep.subr.mxu0 0.0
    %1124 = vmatpush1.msra.mxu0 0.0
    %1125 = vmatprep.subr.mxu0 0.0
    %1126 = vmatpush1.msra.mxu0 0.0
    %1127 = vmatprep.subr.mxu0 0.0
    %1128 = vmatpush1.msra.mxu0 0.0
    %1129 = vmatprep.subr.mxu0 0.0
    %1130 = vmatpush1.msra.mxu0 0.0
    %1131 = vmatprep.subr.mxu0 0.0
    %1132 = vmatpush1.msra.mxu0 0.0
    %1133 = vmatprep.subr.mxu0 0.0
    %1134 = vmatpush1.msra.mxu0 0.0
    %1135 = vmatprep.subr.mxu0 0.0
    %1136 = vmatpush1.msra.mxu0 0.0
    %1137 = vmatprep.subr.mxu0 0.0
    %1138 = vmatpush1.msra.mxu0 0.0
    %1139 = vmatprep.subr.mxu0 0.0
    %1140 = vmatpush1.msra.mxu0 0.0
    %1141 = vmatprep.subr.mxu0 0.0
    %1142 = vmatpush1.msra.mxu0 0.0
    %1143 = vmatprep.subr.mxu0 0.0
    %1144 = vmatpush1.msra.mxu0 0.0
    %1145 = vmatprep.subr.mxu0 0.0
    %1146 = vmatpush1.msra.mxu0 0.0
    %1147 = vmatprep.subr.mxu0 0.0
    %1148 = vmatpush1.msra.mxu0 0.0
    %1149 = vmatprep.mubr.f32.mxu0 0.0
    %1150 = vmatmul.mubr.f32.gmra.mrb[0].mxu0 %v949
    %v1151 = vpop.f32.mrb[0].mxu0
    %v1152 = vadd.f32 0.0, %v1151
    %v1153 = vpop.f32.mrb[0].mxu0
    %v1154 = vadd.f32 0.0, %v1153
    %1155 = vdwg.mxu0
    %v1156 = vadd.f32 %v945, %v1081
    %v1157 = vadd.f32 %v946, %v1083
    %v1158 = vadd.f32 %v947, %v1152
    %v1159 = vadd.f32 %v948, %v1154
    %v1160 = vxor.u32 %v1156, 2147483648
    %v1161 = vmul.f32 %v1160, 1.442695
    %v1162 = vpow.pop %v1161
    %v1163 = vadd.f32 %v1162, 1.0
    %v1164 = vrcp.pop %v1163
    %v1165 = vmul.f32 1.0, %v1164
    %v1166 = vxor.u32 %v1157, 2147483648
    %v1167 = vmul.f32 %v1166, 1.442695
    %v1168 = vpow.pop %v1167
    %v1169 = vadd.f32 %v1168, 1.0
    %v1170 = vrcp.pop %v1169
    %v1171 = vmul.f32 1.0, %v1170
    %v1172 = vtanh.pop %v1158
    %v1173 = vxor.u32 %v1159, 2147483648
    %v1174 = vmul.f32 %v1173, 1.442695
    %v1175 = vpow.pop %v1174
    %v1176 = vadd.f32 %v1175, 1.0
    %v1177 = vrcp.pop %v1176
    %v1178 = vmul.f32 1.0, %v1177
    %v1179 = vld [vmem:[#allocation5] sm:$0xff]
    %v1180 = vmul.f32 %v1171, %v1179
    %v1181 = vmul.f32 %v1165, %v1172
    %v1182 = vadd.f32 %v1180, %v1181
    %v1183 = vtanh.pop %v1182
    %v1184 = vmul.f32 %v1178, %v1183
    %1185 = vst [vmem:[#allocation5] sm:$0xff] %v1182
    %1186 = vst [vmem:[#allocation4] sm:$0xff] %v1184
    %s1187 = scalar_lea.vmem [#allocation3], 16
    %1188 = vst [vmem:[%s1187] sm:$0xff] %v1184
    %s1189 = scalar_lea.vmem [#allocation2], 96
    %v1190 = vld [vmem:[%s1189] sm:$0xff]
    %v1191 = vld [vmem:[%s1189 + $0x8] sm:$0xff]
    %v1192 = vld [vmem:[%s1189 + $0x10] sm:$0xff]
    %v1193 = vld [vmem:[%s1189 + $0x18] sm:$0xff]
    %v1194 = vld [vmem:[#allocation4] sm:$0xff]
    %v1195 = vld [vmem:[#allocation12] sm:$0xff]
    %v1196 = vld [vmem:[#allocation12 + $0x8] sm:$0xff]
    %v1197 = vld [vmem:[#allocation12 + $0x10] sm:$0xff]
    %v1198 = vld [vmem:[#allocation12 + $0x18] sm:$0xff]
    %v1199 = vld [vmem:[#allocation12 + $0x20] sm:$0xff]
    %v1200 = vld [vmem:[#allocation12 + $0x28] sm:$0xff]
    %v1201 = vld [vmem:[#allocation12 + $0x30] sm:$0xff]
    %v1202 = vld [vmem:[#allocation12 + $0x38] sm:$0xff]
    %v1203 = vld [vmem:[#allocation12 + $0x40] sm:$0xff]
    %v1204 = vld [vmem:[#allocation12 + $0x48] sm:$0xff]
    %v1205 = vld [vmem:[#allocation12 + $0x50] sm:$0xff]
    %v1206 = vld [vmem:[#allocation12 + $0x58] sm:$0xff]
    %v1207 = vld [vmem:[#allocation12 + $0x60] sm:$0xff]
    %v1208 = vld [vmem:[#allocation12 + $0x68] sm:$0xff]
    %v1209 = vld [vmem:[#allocation12 + $0x70] sm:$0xff]
    %v1210 = vld [vmem:[#allocation12 + $0x78] sm:$0xff]
    %v1211 = vld [vmem:[#allocation12 + $0x80] sm:$0xff]
    %v1212 = vld [vmem:[#allocation12 + $0x88] sm:$0xff]
    %v1213 = vld [vmem:[#allocation12 + $0x90] sm:$0xff]
    %v1214 = vld [vmem:[#allocation12 + $0x98] sm:$0xff]
    %v1215 = vld [vmem:[#allocation12 + $0xa0] sm:$0xff]
    %v1216 = vld [vmem:[#allocation12 + $0xa8] sm:$0xff]
    %v1217 = vld [vmem:[#allocation12 + $0xb0] sm:$0xff]
    %v1218 = vld [vmem:[#allocation12 + $0xb8] sm:$0xff]
    %v1219 = vld [vmem:[#allocation12 + $0xc0] sm:$0xff]
    %v1220 = vld [vmem:[#allocation12 + $0xc8] sm:$0xff]
    %v1221 = vld [vmem:[#allocation12 + $0xd0] sm:$0xff]
    %v1222 = vld [vmem:[#allocation12 + $0xd8] sm:$0xff]
    %v1223 = vld [vmem:[#allocation12 + $0xe0] sm:$0xff]
    %v1224 = vld [vmem:[#allocation12 + $0xe8] sm:$0xff]
    %v1225 = vld [vmem:[#allocation12 + $0xf0] sm:$0xff]
    %v1226 = vld [vmem:[#allocation12 + $0xf8] sm:$0xff]
    %v1227 = vld [vmem:[#allocation12 + $0x100] sm:$0xff]
    %v1228 = vld [vmem:[#allocation12 + $0x108] sm:$0xff]
    %v1229 = vld [vmem:[#allocation12 + $0x110] sm:$0xff]
    %v1230 = vld [vmem:[#allocation12 + $0x118] sm:$0xff]
    %v1231 = vld [vmem:[#allocation12 + $0x120] sm:$0xff]
    %v1232 = vld [vmem:[#allocation12 + $0x128] sm:$0xff]
    %v1233 = vld [vmem:[#allocation12 + $0x130] sm:$0xff]
    %v1234 = vld [vmem:[#allocation12 + $0x138] sm:$0xff]
    %v1235 = vld [vmem:[#allocation12 + $0x140] sm:$0xff]
    %v1236 = vld [vmem:[#allocation12 + $0x148] sm:$0xff]
    %v1237 = vld [vmem:[#allocation12 + $0x150] sm:$0xff]
    %v1238 = vld [vmem:[#allocation12 + $0x158] sm:$0xff]
    %v1239 = vld [vmem:[#allocation12 + $0x160] sm:$0xff]
    %v1240 = vld [vmem:[#allocation12 + $0x168] sm:$0xff]
    %v1241 = vld [vmem:[#allocation12 + $0x170] sm:$0xff]
    %v1242 = vld [vmem:[#allocation12 + $0x178] sm:$0xff]
    %v1243 = vld [vmem:[#allocation12 + $0x180] sm:$0xff]
    %v1244 = vld [vmem:[#allocation12 + $0x188] sm:$0xff]
    %v1245 = vld [vmem:[#allocation12 + $0x190] sm:$0xff]
    %v1246 = vld [vmem:[#allocation12 + $0x198] sm:$0xff]
    %v1247 = vld [vmem:[#allocation12 + $0x1a0] sm:$0xff]
    %v1248 = vld [vmem:[#allocation12 + $0x1a8] sm:$0xff]
    %v1249 = vld [vmem:[#allocation12 + $0x1b0] sm:$0xff]
    %v1250 = vld [vmem:[#allocation12 + $0x1b8] sm:$0xff]
    %v1251 = vld [vmem:[#allocation12 + $0x1c0] sm:$0xff]
    %v1252 = vld [vmem:[#allocation12 + $0x1c8] sm:$0xff]
    %v1253 = vld [vmem:[#allocation12 + $0x1d0] sm:$0xff]
    %v1254 = vld [vmem:[#allocation12 + $0x1d8] sm:$0xff]
    %v1255 = vld [vmem:[#allocation12 + $0x1e0] sm:$0xff]
    %v1256 = vld [vmem:[#allocation12 + $0x1e8] sm:$0xff]
    %v1257 = vld [vmem:[#allocation12 + $0x1f0] sm:$0xff]
    %v1258 = vld [vmem:[#allocation12 + $0x1f8] sm:$0xff]
    %1259 = vmatprep.subr.mxu0 %v1196
    %1260 = vmatpush1.msra.mxu0 %v1195
    %1261 = vmatprep.subr.mxu0 %v1200
    %1262 = vmatpush1.msra.mxu0 %v1199
    %1263 = vmatprep.subr.mxu0 %v1204
    %1264 = vmatpush1.msra.mxu0 %v1203
    %1265 = vmatprep.subr.mxu0 %v1208
    %1266 = vmatpush1.msra.mxu0 %v1207
    %1267 = vmatprep.subr.mxu0 %v1212
    %1268 = vmatpush1.msra.mxu0 %v1211
    %1269 = vmatprep.subr.mxu0 %v1216
    %1270 = vmatpush1.msra.mxu0 %v1215
    %1271 = vmatprep.subr.mxu0 %v1220
    %1272 = vmatpush1.msra.mxu0 %v1219
    %1273 = vmatprep.subr.mxu0 %v1224
    %1274 = vmatpush1.msra.mxu0 %v1223
    %1275 = vmatprep.subr.mxu0 %v1228
    %1276 = vmatpush1.msra.mxu0 %v1227
    %1277 = vmatprep.subr.mxu0 %v1232
    %1278 = vmatpush1.msra.mxu0 %v1231
    %1279 = vmatprep.subr.mxu0 %v1236
    %1280 = vmatpush1.msra.mxu0 %v1235
    %1281 = vmatprep.subr.mxu0 %v1240
    %1282 = vmatpush1.msra.mxu0 %v1239
    %1283 = vmatprep.subr.mxu0 %v1244
    %1284 = vmatpush1.msra.mxu0 %v1243
    %1285 = vmatprep.subr.mxu0 %v1248
    %1286 = vmatpush1.msra.mxu0 %v1247
    %1287 = vmatprep.subr.mxu0 %v1252
    %1288 = vmatpush1.msra.mxu0 %v1251
    %1289 = vmatprep.subr.mxu0 %v1256
    %1290 = vmatpush1.msra.mxu0 %v1255
    %1291 = vmatprep.subr.mxu0 0.0
    %1292 = vmatpush1.msra.mxu0 0.0
    %1293 = vmatprep.subr.mxu0 0.0
    %1294 = vmatpush1.msra.mxu0 0.0
    %1295 = vmatprep.subr.mxu0 0.0
    %1296 = vmatpush1.msra.mxu0 0.0
    %1297 = vmatprep.subr.mxu0 0.0
    %1298 = vmatpush1.msra.mxu0 0.0
    %1299 = vmatprep.subr.mxu0 0.0
    %1300 = vmatpush1.msra.mxu0 0.0
    %1301 = vmatprep.subr.mxu0 0.0
    %1302 = vmatpush1.msra.mxu0 0.0
    %1303 = vmatprep.subr.mxu0 0.0
    %1304 = vmatpush1.msra.mxu0 0.0
    %1305 = vmatprep.subr.mxu0 0.0
    %1306 = vmatpush1.msra.mxu0 0.0
    %1307 = vmatprep.subr.mxu0 0.0
    %1308 = vmatpush1.msra.mxu0 0.0
    %1309 = vmatprep.subr.mxu0 0.0
    %1310 = vmatpush1.msra.mxu0 0.0
    %1311 = vmatprep.subr.mxu0 0.0
    %1312 = vmatpush1.msra.mxu0 0.0
    %1313 = vmatprep.subr.mxu0 0.0
    %1314 = vmatpush1.msra.mxu0 0.0
    %1315 = vmatprep.subr.mxu0 0.0
    %1316 = vmatpush1.msra.mxu0 0.0
    %1317 = vmatprep.subr.mxu0 0.0
    %1318 = vmatpush1.msra.mxu0 0.0
    %1319 = vmatprep.subr.mxu0 0.0
    %1320 = vmatpush1.msra.mxu0 0.0
    %1321 = vmatprep.subr.mxu0 0.0
    %1322 = vmatpush1.msra.mxu0 0.0
    %1323 = vmatprep.mubr.f32.mxu0 0.0
    %1324 = vmatmul.mubr.f32.gmra.mrb[0].mxu0 %v1194
    %v1325 = vpop.f32.mrb[0].mxu0
    %v1326 = vadd.f32 0.0, %v1325
    %v1327 = vpop.f32.mrb[0].mxu0
    %v1328 = vadd.f32 0.0, %v1327
    %1329 = vdwg.mxu0
    %1330 = vmatprep.subr.mxu0 %v1198
    %1331 = vmatpush1.msra.mxu0 %v1197
    %1332 = vmatprep.subr.mxu0 %v1202
    %1333 = vmatpush1.msra.mxu0 %v1201
    %1334 = vmatprep.subr.mxu0 %v1206
    %1335 = vmatpush1.msra.mxu0 %v1205
    %1336 = vmatprep.subr.mxu0 %v1210
    %1337 = vmatpush1.msra.mxu0 %v1209
    %1338 = vmatprep.subr.mxu0 %v1214
    %1339 = vmatpush1.msra.mxu0 %v1213
    %1340 = vmatprep.subr.mxu0 %v1218
    %1341 = vmatpush1.msra.mxu0 %v1217
    %1342 = vmatprep.subr.mxu0 %v1222
    %1343 = vmatpush1.msra.mxu0 %v1221
    %1344 = vmatprep.subr.mxu0 %v1226
    %1345 = vmatpush1.msra.mxu0 %v1225
    %1346 = vmatprep.subr.mxu0 %v1230
    %1347 = vmatpush1.msra.mxu0 %v1229
    %1348 = vmatprep.subr.mxu0 %v1234
    %1349 = vmatpush1.msra.mxu0 %v1233
    %1350 = vmatprep.subr.mxu0 %v1238
    %1351 = vmatpush1.msra.mxu0 %v1237
    %1352 = vmatprep.subr.mxu0 %v1242
    %1353 = vmatpush1.msra.mxu0 %v1241
    %1354 = vmatprep.subr.mxu0 %v1246
    %1355 = vmatpush1.msra.mxu0 %v1245
    %1356 = vmatprep.subr.mxu0 %v1250
    %1357 = vmatpush1.msra.mxu0 %v1249
    %1358 = vmatprep.subr.mxu0 %v1254
    %1359 = vmatpush1.msra.mxu0 %v1253
    %1360 = vmatprep.subr.mxu0 %v1258
    %1361 = vmatpush1.msra.mxu0 %v1257
    %1362 = vmatprep.subr.mxu0 0.0
    %1363 = vmatpush1.msra.mxu0 0.0
    %1364 = vmatprep.subr.mxu0 0.0
    %1365 = vmatpush1.msra.mxu0 0.0
    %1366 = vmatprep.subr.mxu0 0.0
    %1367 = vmatpush1.msra.mxu0 0.0
    %1368 = vmatprep.subr.mxu0 0.0
    %1369 = vmatpush1.msra.mxu0 0.0
    %1370 = vmatprep.subr.mxu0 0.0
    %1371 = vmatpush1.msra.mxu0 0.0
    %1372 = vmatprep.subr.mxu0 0.0
    %1373 = vmatpush1.msra.mxu0 0.0
    %1374 = vmatprep.subr.mxu0 0.0
    %1375 = vmatpush1.msra.mxu0 0.0
    %1376 = vmatprep.subr.mxu0 0.0
    %1377 = vmatpush1.msra.mxu0 0.0
    %1378 = vmatprep.subr.mxu0 0.0
    %1379 = vmatpush1.msra.mxu0 0.0
    %1380 = vmatprep.subr.mxu0 0.0
    %1381 = vmatpush1.msra.mxu0 0.0
    %1382 = vmatprep.subr.mxu0 0.0
    %1383 = vmatpush1.msra.mxu0 0.0
    %1384 = vmatprep.subr.mxu0 0.0
    %1385 = vmatpush1.msra.mxu0 0.0
    %1386 = vmatprep.subr.mxu0 0.0
    %1387 = vmatpush1.msra.mxu0 0.0
    %1388 = vmatprep.subr.mxu0 0.0
    %1389 = vmatpush1.msra.mxu0 0.0
    %1390 = vmatprep.subr.mxu0 0.0
    %1391 = vmatpush1.msra.mxu0 0.0
    %1392 = vmatprep.subr.mxu0 0.0
    %1393 = vmatpush1.msra.mxu0 0.0
    %1394 = vmatprep.mubr.f32.mxu0 0.0
    %1395 = vmatmul.mubr.f32.gmra.mrb[0].mxu0 %v1194
    %v1396 = vpop.f32.mrb[0].mxu0
    %v1397 = vadd.f32 0.0, %v1396
    %v1398 = vpop.f32.mrb[0].mxu0
    %v1399 = vadd.f32 0.0, %v1398
    %1400 = vdwg.mxu0
    %v1401 = vadd.f32 %v1190, %v1326
    %v1402 = vadd.f32 %v1191, %v1328
    %v1403 = vadd.f32 %v1192, %v1397
    %v1404 = vadd.f32 %v1193, %v1399
    %v1405 = vxor.u32 %v1401, 2147483648
    %v1406 = vmul.f32 %v1405, 1.442695
    %v1407 = vpow.pop %v1406
    %v1408 = vadd.f32 %v1407, 1.0
    %v1409 = vrcp.pop %v1408
    %v1410 = vmul.f32 1.0, %v1409
    %v1411 = vxor.u32 %v1402, 2147483648
    %v1412 = vmul.f32 %v1411, 1.442695
    %v1413 = vpow.pop %v1412
    %v1414 = vadd.f32 %v1413, 1.0
    %v1415 = vrcp.pop %v1414
    %v1416 = vmul.f32 1.0, %v1415
    %v1417 = vtanh.pop %v1403
    %v1418 = vxor.u32 %v1404, 2147483648
    %v1419 = vmul.f32 %v1418, 1.442695
    %v1420 = vpow.pop %v1419
    %v1421 = vadd.f32 %v1420, 1.0
    %v1422 = vrcp.pop %v1421
    %v1423 = vmul.f32 1.0, %v1422
    %v1424 = vld [vmem:[#allocation5] sm:$0xff]
    %v1425 = vmul.f32 %v1416, %v1424
    %v1426 = vmul.f32 %v1410, %v1417
    %v1427 = vadd.f32 %v1425, %v1426
    %v1428 = vtanh.pop %v1427
    %v1429 = vmul.f32 %v1423, %v1428
    %1430 = vst [vmem:[#allocation5] sm:$0xff] %v1427
    %1431 = vst [vmem:[#allocation4] sm:$0xff] %v1429
    %s1432 = scalar_lea.vmem [#allocation3], 24
    %1433 = vst [vmem:[%s1432] sm:$0xff] %v1429
    %s1434 = scalar_lea.vmem [#allocation2], 128
    %v1435 = vld [vmem:[%s1434] sm:$0xff]
    %v1436 = vld [vmem:[%s1434 + $0x8] sm:$0xff]
    %v1437 = vld [vmem:[%s1434 + $0x10] sm:$0xff]
    %v1438 = vld [vmem:[%s1434 + $0x18] sm:$0xff]
    %v1439 = vld [vmem:[#allocation4] sm:$0xff]
    %v1440 = vld [vmem:[#allocation12] sm:$0xff]
    %v1441 = vld [vmem:[#allocation12 + $0x8] sm:$0xff]
    %v1442 = vld [vmem:[#allocation12 + $0x10] sm:$0xff]
    %v1443 = vld [vmem:[#allocation12 + $0x18] sm:$0xff]
    %v1444 = vld [vmem:[#allocation12 + $0x20] sm:$0xff]
    %v1445 = vld [vmem:[#allocation12 + $0x28] sm:$0xff]
    %v1446 = vld [vmem:[#allocation12 + $0x30] sm:$0xff]
    %v1447 = vld [vmem:[#allocation12 + $0x38] sm:$0xff]
    %v1448 = vld [vmem:[#allocation12 + $0x40] sm:$0xff]
    %v1449 = vld [vmem:[#allocation12 + $0x48] sm:$0xff]
    %v1450 = vld [vmem:[#allocation12 + $0x50] sm:$0xff]
    %v1451 = vld [vmem:[#allocation12 + $0x58] sm:$0xff]
    %v1452 = vld [vmem:[#allocation12 + $0x60] sm:$0xff]
    %v1453 = vld [vmem:[#allocation12 + $0x68] sm:$0xff]
    %v1454 = vld [vmem:[#allocation12 + $0x70] sm:$0xff]
    %v1455 = vld [vmem:[#allocation12 + $0x78] sm:$0xff]
    %v1456 = vld [vmem:[#allocation12 + $0x80] sm:$0xff]
    %v1457 = vld [vmem:[#allocation12 + $0x88] sm:$0xff]
    %v1458 = vld [vmem:[#allocation12 + $0x90] sm:$0xff]
    %v1459 = vld [vmem:[#allocation12 + $0x98] sm:$0xff]
    %v1460 = vld [vmem:[#allocation12 + $0xa0] sm:$0xff]
    %v1461 = vld [vmem:[#allocation12 + $0xa8] sm:$0xff]
    %v1462 = vld [vmem:[#allocation12 + $0xb0] sm:$0xff]
    %v1463 = vld [vmem:[#allocation12 + $0xb8] sm:$0xff]
    %v1464 = vld [vmem:[#allocation12 + $0xc0] sm:$0xff]
    %v1465 = vld [vmem:[#allocation12 + $0xc8] sm:$0xff]
    %v1466 = vld [vmem:[#allocation12 + $0xd0] sm:$0xff]
    %v1467 = vld [vmem:[#allocation12 + $0xd8] sm:$0xff]
    %v1468 = vld [vmem:[#allocation12 + $0xe0] sm:$0xff]
    %v1469 = vld [vmem:[#allocation12 + $0xe8] sm:$0xff]
    %v1470 = vld [vmem:[#allocation12 + $0xf0] sm:$0xff]
    %v1471 = vld [vmem:[#allocation12 + $0xf8] sm:$0xff]
    %v1472 = vld [vmem:[#allocation12 + $0x100] sm:$0xff]
    %v1473 = vld [vmem:[#allocation12 + $0x108] sm:$0xff]
    %v1474 = vld [vmem:[#allocation12 + $0x110] sm:$0xff]
    %v1475 = vld [vmem:[#allocation12 + $0x118] sm:$0xff]
    %v1476 = vld [vmem:[#allocation12 + $0x120] sm:$0xff]
    %v1477 = vld [vmem:[#allocation12 + $0x128] sm:$0xff]
    %v1478 = vld [vmem:[#allocation12 + $0x130] sm:$0xff]
    %v1479 = vld [vmem:[#allocation12 + $0x138] sm:$0xff]
    %v1480 = vld [vmem:[#allocation12 + $0x140] sm:$0xff]
    %v1481 = vld [vmem:[#allocation12 + $0x148] sm:$0xff]
    %v1482 = vld [vmem:[#allocation12 + $0x150] sm:$0xff]
    %v1483 = vld [vmem:[#allocation12 + $0x158] sm:$0xff]
    %v1484 = vld [vmem:[#allocation12 + $0x160] sm:$0xff]
    %v1485 = vld [vmem:[#allocation12 + $0x168] sm:$0xff]
    %v1486 = vld [vmem:[#allocation12 + $0x170] sm:$0xff]
    %v1487 = vld [vmem:[#allocation12 + $0x178] sm:$0xff]
    %v1488 = vld [vmem:[#allocation12 + $0x180] sm:$0xff]
    %v1489 = vld [vmem:[#allocation12 + $0x188] sm:$0xff]
    %v1490 = vld [vmem:[#allocation12 + $0x190] sm:$0xff]
    %v1491 = vld [vmem:[#allocation12 + $0x198] sm:$0xff]
    %v1492 = vld [vmem:[#allocation12 + $0x1a0] sm:$0xff]
    %v1493 = vld [vmem:[#allocation12 + $0x1a8] sm:$0xff]
    %v1494 = vld [vmem:[#allocation12 + $0x1b0] sm:$0xff]
    %v1495 = vld [vmem:[#allocation12 + $0x1b8] sm:$0xff]
    %v1496 = vld [vmem:[#allocation12 + $0x1c0] sm:$0xff]
    %v1497 = vld [vmem:[#allocation12 + $0x1c8] sm:$0xff]
    %v1498 = vld [vmem:[#allocation12 + $0x1d0] sm:$0xff]
    %v1499 = vld [vmem:[#allocation12 + $0x1d8] sm:$0xff]
    %v1500 = vld [vmem:[#allocation12 + $0x1e0] sm:$0xff]
    %v1501 = vld [vmem:[#allocation12 + $0x1e8] sm:$0xff]
    %v1502 = vld [vmem:[#allocation12 + $0x1f0] sm:$0xff]
    %v1503 = vld [vmem:[#allocation12 + $0x1f8] sm:$0xff]
    %1504 = vmatprep.subr.mxu0 %v1441
    %1505 = vmatpush1.msra.mxu0 %v1440
    %1506 = vmatprep.subr.mxu0 %v1445
    %1507 = vmatpush1.msra.mxu0 %v1444
    %1508 = vmatprep.subr.mxu0 %v1449
    %1509 = vmatpush1.msra.mxu0 %v1448
    %1510 = vmatprep.subr.mxu0 %v1453
    %1511 = vmatpush1.msra.mxu0 %v1452
    %1512 = vmatprep.subr.mxu0 %v1457
    %1513 = vmatpush1.msra.mxu0 %v1456
    %1514 = vmatprep.subr.mxu0 %v1461
    %1515 = vmatpush1.msra.mxu0 %v1460
    %1516 = vmatprep.subr.mxu0 %v1465
    %1517 = vmatpush1.msra.mxu0 %v1464
    %1518 = vmatprep.subr.mxu0 %v1469
    %1519 = vmatpush1.msra.mxu0 %v1468
    %1520 = vmatprep.subr.mxu0 %v1473
    %1521 = vmatpush1.msra.mxu0 %v1472
    %1522 = vmatprep.subr.mxu0 %v1477
    %1523 = vmatpush1.msra.mxu0 %v1476
    %1524 = vmatprep.subr.mxu0 %v1481
    %1525 = vmatpush1.msra.mxu0 %v1480
    %1526 = vmatprep.subr.mxu0 %v1485
    %1527 = vmatpush1.msra.mxu0 %v1484
    %1528 = vmatprep.subr.mxu0 %v1489
    %1529 = vmatpush1.msra.mxu0 %v1488
    %1530 = vmatprep.subr.mxu0 %v1493
    %1531 = vmatpush1.msra.mxu0 %v1492
    %1532 = vmatprep.subr.mxu0 %v1497
    %1533 = vmatpush1.msra.mxu0 %v1496
    %1534 = vmatprep.subr.mxu0 %v1501
    %1535 = vmatpush1.msra.mxu0 %v1500
    %1536 = vmatprep.subr.mxu0 0.0
    %1537 = vmatpush1.msra.mxu0 0.0
    %1538 = vmatprep.subr.mxu0 0.0
    %1539 = vmatpush1.msra.mxu0 0.0
    %1540 = vmatprep.subr.mxu0 0.0
    %1541 = vmatpush1.msra.mxu0 0.0
    %1542 = vmatprep.subr.mxu0 0.0
    %1543 = vmatpush1.msra.mxu0 0.0
    %1544 = vmatprep.subr.mxu0 0.0
    %1545 = vmatpush1.msra.mxu0 0.0
    %1546 = vmatprep.subr.mxu0 0.0
    %1547 = vmatpush1.msra.mxu0 0.0
    %1548 = vmatprep.subr.mxu0 0.0
    %1549 = vmatpush1.msra.mxu0 0.0
    %1550 = vmatprep.subr.mxu0 0.0
    %1551 = vmatpush1.msra.mxu0 0.0
    %1552 = vmatprep.subr.mxu0 0.0
    %1553 = vmatpush1.msra.mxu0 0.0
    %1554 = vmatprep.subr.mxu0 0.0
    %1555 = vmatpush1.msra.mxu0 0.0
    %1556 = vmatprep.subr.mxu0 0.0
    %1557 = vmatpush1.msra.mxu0 0.0
    %1558 = vmatprep.subr.mxu0 0.0
    %1559 = vmatpush1.msra.mxu0 0.0
    %1560 = vmatprep.subr.mxu0 0.0
    %1561 = vmatpush1.msra.mxu0 0.0
    %1562 = vmatprep.subr.mxu0 0.0
    %1563 = vmatpush1.msra.mxu0 0.0
    %1564 = vmatprep.subr.mxu0 0.0
    %1565 = vmatpush1.msra.mxu0 0.0
    %1566 = vmatprep.subr.mxu0 0.0
    %1567 = vmatpush1.msra.mxu0 0.0
    %1568 = vmatprep.mubr.f32.mxu0 0.0
    %1569 = vmatmul.mubr.f32.gmra.mrb[0].mxu0 %v1439
    %v1570 = vpop.f32.mrb[0].mxu0
    %v1571 = vadd.f32 0.0, %v1570
    %v1572 = vpop.f32.mrb[0].mxu0
    %v1573 = vadd.f32 0.0, %v1572
    %1574 = vdwg.mxu0
    %1575 = vmatprep.subr.mxu0 %v1443
    %1576 = vmatpush1.msra.mxu0 %v1442
    %1577 = vmatprep.subr.mxu0 %v1447
    %1578 = vmatpush1.msra.mxu0 %v1446
    %1579 = vmatprep.subr.mxu0 %v1451
    %1580 = vmatpush1.msra.mxu0 %v1450
    %1581 = vmatprep.subr.mxu0 %v1455
    %1582 = vmatpush1.msra.mxu0 %v1454
    %1583 = vmatprep.subr.mxu0 %v1459
    %1584 = vmatpush1.msra.mxu0 %v1458
    %1585 = vmatprep.subr.mxu0 %v1463
    %1586 = vmatpush1.msra.mxu0 %v1462
    %1587 = vmatprep.subr.mxu0 %v1467
    %1588 = vmatpush1.msra.mxu0 %v1466
    %1589 = vmatprep.subr.mxu0 %v1471
    %1590 = vmatpush1.msra.mxu0 %v1470
    %1591 = vmatprep.subr.mxu0 %v1475
    %1592 = vmatpush1.msra.mxu0 %v1474
    %1593 = vmatprep.subr.mxu0 %v1479
    %1594 = vmatpush1.msra.mxu0 %v1478
    %1595 = vmatprep.subr.mxu0 %v1483
    %1596 = vmatpush1.msra.mxu0 %v1482
    %1597 = vmatprep.subr.mxu0 %v1487
    %1598 = vmatpush1.msra.mxu0 %v1486
    %1599 = vmatprep.subr.mxu0 %v1491
    %1600 = vmatpush1.msra.mxu0 %v1490
    %1601 = vmatprep.subr.mxu0 %v1495
    %1602 = vmatpush1.msra.mxu0 %v1494
    %1603 = vmatprep.subr.mxu0 %v1499
    %1604 = vmatpush1.msra.mxu0 %v1498
    %1605 = vmatprep.subr.mxu0 %v1503
    %1606 = vmatpush1.msra.mxu0 %v1502
    %1607 = vmatprep.subr.mxu0 0.0
    %1608 = vmatpush1.msra.mxu0 0.0
    %1609 = vmatprep.subr.mxu0 0.0
    %1610 = vmatpush1.msra.mxu0 0.0
    %1611 = vmatprep.subr.mxu0 0.0
    %1612 = vmatpush1.msra.mxu0 0.0
    %1613 = vmatprep.subr.mxu0 0.0
    %1614 = vmatpush1.msra.mxu0 0.0
    %1615 = vmatprep.subr.mxu0 0.0
    %1616 = vmatpush1.msra.mxu0 0.0
    %1617 = vmatprep.subr.mxu0 0.0
    %1618 = vmatpush1.msra.mxu0 0.0
    %1619 = vmatprep.subr.mxu0 0.0
    %1620 = vmatpush1.msra.mxu0 0.0
    %1621 = vmatprep.subr.mxu0 0.0
    %1622 = vmatpush1.msra.mxu0 0.0
    %1623 = vmatprep.subr.mxu0 0.0
    %1624 = vmatpush1.msra.mxu0 0.0
    %1625 = vmatprep.subr.mxu0 0.0
    %1626 = vmatpush1.msra.mxu0 0.0
    %1627 = vmatprep.subr.mxu0 0.0
    %1628 = vmatpush1.msra.mxu0 0.0
    %1629 = vmatprep.subr.mxu0 0.0
    %1630 = vmatpush1.msra.mxu0 0.0
    %1631 = vmatprep.subr.mxu0 0.0
    %1632 = vmatpush1.msra.mxu0 0.0
    %1633 = vmatprep.subr.mxu0 0.0
    %1634 = vmatpush1.msra.mxu0 0.0
    %1635 = vmatprep.subr.mxu0 0.0
    %1636 = vmatpush1.msra.mxu0 0.0
    %1637 = vmatprep.subr.mxu0 0.0
    %1638 = vmatpush1.msra.mxu0 0.0
    %1639 = vmatprep.mubr.f32.mxu0 0.0
    %1640 = vmatmul.mubr.f32.gmra.mrb[0].mxu0 %v1439
    %v1641 = vpop.f32.mrb[0].mxu0
    %v1642 = vadd.f32 0.0, %v1641
    %v1643 = vpop.f32.mrb[0].mxu0
    %v1644 = vadd.f32 0.0, %v1643
    %1645 = vdwg.mxu0
    %v1646 = vadd.f32 %v1435, %v1571
    %v1647 = vadd.f32 %v1436, %v1573
    %v1648 = vadd.f32 %v1437, %v1642
    %v1649 = vadd.f32 %v1438, %v1644
    %v1650 = vxor.u32 %v1646, 2147483648
    %v1651 = vmul.f32 %v1650, 1.442695
    %v1652 = vpow.pop %v1651
    %v1653 = vadd.f32 %v1652, 1.0
    %v1654 = vrcp.pop %v1653
    %v1655 = vmul.f32 1.0, %v1654
    %v1656 = vxor.u32 %v1647, 2147483648
    %v1657 = vmul.f32 %v1656, 1.442695
    %v1658 = vpow.pop %v1657
    %v1659 = vadd.f32 %v1658, 1.0
    %v1660 = vrcp.pop %v1659
    %v1661 = vmul.f32 1.0, %v1660
    %v1662 = vtanh.pop %v1648
    %v1663 = vxor.u32 %v1649, 2147483648
    %v1664 = vmul.f32 %v1663, 1.442695
    %v1665 = vpow.pop %v1664
    %v1666 = vadd.f32 %v1665, 1.0
    %v1667 = vrcp.pop %v1666
    %v1668 = vmul.f32 1.0, %v1667
    %v1669 = vld [vmem:[#allocation5] sm:$0xff]
    %v1670 = vmul.f32 %v1661, %v1669
    %v1671 = vmul.f32 %v1655, %v1662
    %v1672 = vadd.f32 %v1670, %v1671
    %v1673 = vtanh.pop %v1672
    %v1674 = vmul.f32 %v1668, %v1673
    %1675 = vst [vmem:[#allocation5] sm:$0xff] %v1672
    %1676 = vst [vmem:[#allocation4] sm:$0xff] %v1674
    %s1677 = scalar_lea.vmem [#allocation3], 32
    %1678 = vst [vmem:[%s1677] sm:$0xff] %v1674
    %s1679 = scalar_lea.vmem [#allocation2], 160
    %v1680 = vld [vmem:[%s1679] sm:$0xff]
    %v1681 = vld [vmem:[%s1679 + $0x8] sm:$0xff]
    %v1682 = vld [vmem:[%s1679 + $0x10] sm:$0xff]
    %v1683 = vld [vmem:[%s1679 + $0x18] sm:$0xff]
    %v1684 = vld [vmem:[#allocation4] sm:$0xff]
    %v1685 = vld [vmem:[#allocation12] sm:$0xff]
    %v1686 = vld [vmem:[#allocation12 + $0x8] sm:$0xff]
    %v1687 = vld [vmem:[#allocation12 + $0x10] sm:$0xff]
    %v1688 = vld [vmem:[#allocation12 + $0x18] sm:$0xff]
    %v1689 = vld [vmem:[#allocation12 + $0x20] sm:$0xff]
    %v1690 = vld [vmem:[#allocation12 + $0x28] sm:$0xff]
    %v1691 = vld [vmem:[#allocation12 + $0x30] sm:$0xff]
    %v1692 = vld [vmem:[#allocation12 + $0x38] sm:$0xff]
    %v1693 = vld [vmem:[#allocation12 + $0x40] sm:$0xff]
    %v1694 = vld [vmem:[#allocation12 + $0x48] sm:$0xff]
    %v1695 = vld [vmem:[#allocation12 + $0x50] sm:$0xff]
    %v1696 = vld [vmem:[#allocation12 + $0x58] sm:$0xff]
    %v1697 = vld [vmem:[#allocation12 + $0x60] sm:$0xff]
    %v1698 = vld [vmem:[#allocation12 + $0x68] sm:$0xff]
    %v1699 = vld [vmem:[#allocation12 + $0x70] sm:$0xff]
    %v1700 = vld [vmem:[#allocation12 + $0x78] sm:$0xff]
    %v1701 = vld [vmem:[#allocation12 + $0x80] sm:$0xff]
    %v1702 = vld [vmem:[#allocation12 + $0x88] sm:$0xff]
    %v1703 = vld [vmem:[#allocation12 + $0x90] sm:$0xff]
    %v1704 = vld [vmem:[#allocation12 + $0x98] sm:$0xff]
    %v1705 = vld [vmem:[#allocation12 + $0xa0] sm:$0xff]
    %v1706 = vld [vmem:[#allocation12 + $0xa8] sm:$0xff]
    %v1707 = vld [vmem:[#allocation12 + $0xb0] sm:$0xff]
    %v1708 = vld [vmem:[#allocation12 + $0xb8] sm:$0xff]
    %v1709 = vld [vmem:[#allocation12 + $0xc0] sm:$0xff]
    %v1710 = vld [vmem:[#allocation12 + $0xc8] sm:$0xff]
    %v1711 = vld [vmem:[#allocation12 + $0xd0] sm:$0xff]
    %v1712 = vld [vmem:[#allocation12 + $0xd8] sm:$0xff]
    %v1713 = vld [vmem:[#allocation12 + $0xe0] sm:$0xff]
    %v1714 = vld [vmem:[#allocation12 + $0xe8] sm:$0xff]
    %v1715 = vld [vmem:[#allocation12 + $0xf0] sm:$0xff]
    %v1716 = vld [vmem:[#allocation12 + $0xf8] sm:$0xff]
    %v1717 = vld [vmem:[#allocation12 + $0x100] sm:$0xff]
    %v1718 = vld [vmem:[#allocation12 + $0x108] sm:$0xff]
    %v1719 = vld [vmem:[#allocation12 + $0x110] sm:$0xff]
    %v1720 = vld [vmem:[#allocation12 + $0x118] sm:$0xff]
    %v1721 = vld [vmem:[#allocation12 + $0x120] sm:$0xff]
    %v1722 = vld [vmem:[#allocation12 + $0x128] sm:$0xff]
    %v1723 = vld [vmem:[#allocation12 + $0x130] sm:$0xff]
    %v1724 = vld [vmem:[#allocation12 + $0x138] sm:$0xff]
    %v1725 = vld [vmem:[#allocation12 + $0x140] sm:$0xff]
    %v1726 = vld [vmem:[#allocation12 + $0x148] sm:$0xff]
    %v1727 = vld [vmem:[#allocation12 + $0x150] sm:$0xff]
    %v1728 = vld [vmem:[#allocation12 + $0x158] sm:$0xff]
    %v1729 = vld [vmem:[#allocation12 + $0x160] sm:$0xff]
    %v1730 = vld [vmem:[#allocation12 + $0x168] sm:$0xff]
    %v1731 = vld [vmem:[#allocation12 + $0x170] sm:$0xff]
    %v1732 = vld [vmem:[#allocation12 + $0x178] sm:$0xff]
    %v1733 = vld [vmem:[#allocation12 + $0x180] sm:$0xff]
    %v1734 = vld [vmem:[#allocation12 + $0x188] sm:$0xff]
    %v1735 = vld [vmem:[#allocation12 + $0x190] sm:$0xff]
    %v1736 = vld [vmem:[#allocation12 + $0x198] sm:$0xff]
    %v1737 = vld [vmem:[#allocation12 + $0x1a0] sm:$0xff]
    %v1738 = vld [vmem:[#allocation12 + $0x1a8] sm:$0xff]
    %v1739 = vld [vmem:[#allocation12 + $0x1b0] sm:$0xff]
    %v1740 = vld [vmem:[#allocation12 + $0x1b8] sm:$0xff]
    %v1741 = vld [vmem:[#allocation12 + $0x1c0] sm:$0xff]
    %v1742 = vld [vmem:[#allocation12 + $0x1c8] sm:$0xff]
    %v1743 = vld [vmem:[#allocation12 + $0x1d0] sm:$0xff]
    %v1744 = vld [vmem:[#allocation12 + $0x1d8] sm:$0xff]
    %v1745 = vld [vmem:[#allocation12 + $0x1e0] sm:$0xff]
    %v1746 = vld [vmem:[#allocation12 + $0x1e8] sm:$0xff]
    %v1747 = vld [vmem:[#allocation12 + $0x1f0] sm:$0xff]
    %v1748 = vld [vmem:[#allocation12 + $0x1f8] sm:$0xff]
    %1749 = vmatprep.subr.mxu0 %v1686
    %1750 = vmatpush1.msra.mxu0 %v1685
    %1751 = vmatprep.subr.mxu0 %v1690
    %1752 = vmatpush1.msra.mxu0 %v1689
    %1753 = vmatprep.subr.mxu0 %v1694
    %1754 = vmatpush1.msra.mxu0 %v1693
    %1755 = vmatprep.subr.mxu0 %v1698
    %1756 = vmatpush1.msra.mxu0 %v1697
    %1757 = vmatprep.subr.mxu0 %v1702
    %1758 = vmatpush1.msra.mxu0 %v1701
    %1759 = vmatprep.subr.mxu0 %v1706
    %1760 = vmatpush1.msra.mxu0 %v1705
    %1761 = vmatprep.subr.mxu0 %v1710
    %1762 = vmatpush1.msra.mxu0 %v1709
    %1763 = vmatprep.subr.mxu0 %v1714
    %1764 = vmatpush1.msra.mxu0 %v1713
    %1765 = vmatprep.subr.mxu0 %v1718
    %1766 = vmatpush1.msra.mxu0 %v1717
    %1767 = vmatprep.subr.mxu0 %v1722
    %1768 = vmatpush1.msra.mxu0 %v1721
    %1769 = vmatprep.subr.mxu0 %v1726
    %1770 = vmatpush1.msra.mxu0 %v1725
    %1771 = vmatprep.subr.mxu0 %v1730
    %1772 = vmatpush1.msra.mxu0 %v1729
    %1773 = vmatprep.subr.mxu0 %v1734
    %1774 = vmatpush1.msra.mxu0 %v1733
    %1775 = vmatprep.subr.mxu0 %v1738
    %1776 = vmatpush1.msra.mxu0 %v1737
    %1777 = vmatprep.subr.mxu0 %v1742
    %1778 = vmatpush1.msra.mxu0 %v1741
    %1779 = vmatprep.subr.mxu0 %v1746
    %1780 = vmatpush1.msra.mxu0 %v1745
    %1781 = vmatprep.subr.mxu0 0.0
    %1782 = vmatpush1.msra.mxu0 0.0
    %1783 = vmatprep.subr.mxu0 0.0
    %1784 = vmatpush1.msra.mxu0 0.0
    %1785 = vmatprep.subr.mxu0 0.0
    %1786 = vmatpush1.msra.mxu0 0.0
    %1787 = vmatprep.subr.mxu0 0.0
    %1788 = vmatpush1.msra.mxu0 0.0
    %1789 = vmatprep.subr.mxu0 0.0
    %1790 = vmatpush1.msra.mxu0 0.0
    %1791 = vmatprep.subr.mxu0 0.0
    %1792 = vmatpush1.msra.mxu0 0.0
    %1793 = vmatprep.subr.mxu0 0.0
    %1794 = vmatpush1.msra.mxu0 0.0
    %1795 = vmatprep.subr.mxu0 0.0
    %1796 = vmatpush1.msra.mxu0 0.0
    %1797 = vmatprep.subr.mxu0 0.0
    %1798 = vmatpush1.msra.mxu0 0.0
    %1799 = vmatprep.subr.mxu0 0.0
    %1800 = vmatpush1.msra.mxu0 0.0
    %1801 = vmatprep.subr.mxu0 0.0
    %1802 = vmatpush1.msra.mxu0 0.0
    %1803 = vmatprep.subr.mxu0 0.0
    %1804 = vmatpush1.msra.mxu0 0.0
    %1805 = vmatprep.subr.mxu0 0.0
    %1806 = vmatpush1.msra.mxu0 0.0
    %1807 = vmatprep.subr.mxu0 0.0
    %1808 = vmatpush1.msra.mxu0 0.0
    %1809 = vmatprep.subr.mxu0 0.0
    %1810 = vmatpush1.msra.mxu0 0.0
    %1811 = vmatprep.subr.mxu0 0.0
    %1812 = vmatpush1.msra.mxu0 0.0
    %1813 = vmatprep.mubr.f32.mxu0 0.0
    %1814 = vmatmul.mubr.f32.gmra.mrb[0].mxu0 %v1684
    %v1815 = vpop.f32.mrb[0].mxu0
    %v1816 = vadd.f32 0.0, %v1815
    %v1817 = vpop.f32.mrb[0].mxu0
    %v1818 = vadd.f32 0.0, %v1817
    %1819 = vdwg.mxu0
    %1820 = vmatprep.subr.mxu0 %v1688
    %1821 = vmatpush1.msra.mxu0 %v1687
    %1822 = vmatprep.subr.mxu0 %v1692
    %1823 = vmatpush1.msra.mxu0 %v1691
    %1824 = vmatprep.subr.mxu0 %v1696
    %1825 = vmatpush1.msra.mxu0 %v1695
    %1826 = vmatprep.subr.mxu0 %v1700
    %1827 = vmatpush1.msra.mxu0 %v1699
    %1828 = vmatprep.subr.mxu0 %v1704
    %1829 = vmatpush1.msra.mxu0 %v1703
    %1830 = vmatprep.subr.mxu0 %v1708
    %1831 = vmatpush1.msra.mxu0 %v1707
    %1832 = vmatprep.subr.mxu0 %v1712
    %1833 = vmatpush1.msra.mxu0 %v1711
    %1834 = vmatprep.subr.mxu0 %v1716
    %1835 = vmatpush1.msra.mxu0 %v1715
    %1836 = vmatprep.subr.mxu0 %v1720
    %1837 = vmatpush1.msra.mxu0 %v1719
    %1838 = vmatprep.subr.mxu0 %v1724
    %1839 = vmatpush1.msra.mxu0 %v1723
    %1840 = vmatprep.subr.mxu0 %v1728
    %1841 = vmatpush1.msra.mxu0 %v1727
    %1842 = vmatprep.subr.mxu0 %v1732
    %1843 = vmatpush1.msra.mxu0 %v1731
    %1844 = vmatprep.subr.mxu0 %v1736
    %1845 = vmatpush1.msra.mxu0 %v1735
    %1846 = vmatprep.subr.mxu0 %v1740
    %1847 = vmatpush1.msra.mxu0 %v1739
    %1848 = vmatprep.subr.mxu0 %v1744
    %1849 = vmatpush1.msra.mxu0 %v1743
    %1850 = vmatprep.subr.mxu0 %v1748
    %1851 = vmatpush1.msra.mxu0 %v1747
    %1852 = vmatprep.subr.mxu0 0.0
    %1853 = vmatpush1.msra.mxu0 0.0
    %1854 = vmatprep.subr.mxu0 0.0
    %1855 = vmatpush1.msra.mxu0 0.0
    %1856 = vmatprep.subr.mxu0 0.0
    %1857 = vmatpush1.msra.mxu0 0.0
    %1858 = vmatprep.subr.mxu0 0.0
    %1859 = vmatpush1.msra.mxu0 0.0
    %1860 = vmatprep.subr.mxu0 0.0
    %1861 = vmatpush1.msra.mxu0 0.0
    %1862 = vmatprep.subr.mxu0 0.0
    %1863 = vmatpush1.msra.mxu0 0.0
    %1864 = vmatprep.subr.mxu0 0.0
    %1865 = vmatpush1.msra.mxu0 0.0
    %1866 = vmatprep.subr.mxu0 0.0
    %1867 = vmatpush1.msra.mxu0 0.0
    %1868 = vmatprep.subr.mxu0 0.0
    %1869 = vmatpush1.msra.mxu0 0.0
    %1870 = vmatprep.subr.mxu0 0.0
    %1871 = vmatpush1.msra.mxu0 0.0
    %1872 = vmatprep.subr.mxu0 0.0
    %1873 = vmatpush1.msra.mxu0 0.0
    %1874 = vmatprep.subr.mxu0 0.0
    %1875 = vmatpush1.msra.mxu0 0.0
    %1876 = vmatprep.subr.mxu0 0.0
    %1877 = vmatpush1.msra.mxu0 0.0
    %1878 = vmatprep.subr.mxu0 0.0
    %1879 = vmatpush1.msra.mxu0 0.0
    %1880 = vmatprep.subr.mxu0 0.0
    %1881 = vmatpush1.msra.mxu0 0.0
    %1882 = vmatprep.subr.mxu0 0.0
    %1883 = vmatpush1.msra.mxu0 0.0
    %1884 = vmatprep.mubr.f32.mxu0 0.0
    %1885 = vmatmul.mubr.f32.gmra.mrb[0].mxu0 %v1684
    %v1886 = vpop.f32.mrb[0].mxu0
    %v1887 = vadd.f32 0.0, %v1886
    %v1888 = vpop.f32.mrb[0].mxu0
    %v1889 = vadd.f32 0.0, %v1888
    %1890 = vdwg.mxu0
    %v1891 = vadd.f32 %v1680, %v1816
    %v1892 = vadd.f32 %v1681, %v1818
    %v1893 = vadd.f32 %v1682, %v1887
    %v1894 = vadd.f32 %v1683, %v1889
    %v1895 = vxor.u32 %v1891, 2147483648
    %v1896 = vmul.f32 %v1895, 1.442695
    %v1897 = vpow.pop %v1896
    %v1898 = vadd.f32 %v1897, 1.0
    %v1899 = vrcp.pop %v1898
    %v1900 = vmul.f32 1.0, %v1899
    %v1901 = vxor.u32 %v1892, 2147483648
    %v1902 = vmul.f32 %v1901, 1.442695
    %v1903 = vpow.pop %v1902
    %v1904 = vadd.f32 %v1903, 1.0
    %v1905 = vrcp.pop %v1904
    %v1906 = vmul.f32 1.0, %v1905
    %v1907 = vtanh.pop %v1893
    %v1908 = vxor.u32 %v1894, 2147483648
    %v1909 = vmul.f32 %v1908, 1.442695
    %v1910 = vpow.pop %v1909
    %v1911 = vadd.f32 %v1910, 1.0
    %v1912 = vrcp.pop %v1911
    %v1913 = vmul.f32 1.0, %v1912
    %v1914 = vld [vmem:[#allocation5] sm:$0xff]
    %v1915 = vmul.f32 %v1906, %v1914
    %v1916 = vmul.f32 %v1900, %v1907
    %v1917 = vadd.f32 %v1915, %v1916
    %v1918 = vtanh.pop %v1917
    %v1919 = vmul.f32 %v1913, %v1918
    %1920 = vst [vmem:[#allocation5] sm:$0xff] %v1917
    %1921 = vst [vmem:[#allocation4] sm:$0xff] %v1919
    %s1922 = scalar_lea.vmem [#allocation3], 40
    %1923 = vst [vmem:[%s1922] sm:$0xff] %v1919
    %s1924 = scalar_lea.vmem [#allocation2], 192
    %v1925 = vld [vmem:[%s1924] sm:$0xff]
    %v1926 = vld [vmem:[%s1924 + $0x8] sm:$0xff]
    %v1927 = vld [vmem:[%s1924 + $0x10] sm:$0xff]
    %v1928 = vld [vmem:[%s1924 + $0x18] sm:$0xff]
    %v1929 = vld [vmem:[#allocation4] sm:$0xff]
    %v1930 = vld [vmem:[#allocation12] sm:$0xff]
    %v1931 = vld [vmem:[#allocation12 + $0x8] sm:$0xff]
    %v1932 = vld [vmem:[#allocation12 + $0x10] sm:$0xff]
    %v1933 = vld [vmem:[#allocation12 + $0x18] sm:$0xff]
    %v1934 = vld [vmem:[#allocation12 + $0x20] sm:$0xff]
    %v1935 = vld [vmem:[#allocation12 + $0x28] sm:$0xff]
    %v1936 = vld [vmem:[#allocation12 + $0x30] sm:$0xff]
    %v1937 = vld [vmem:[#allocation12 + $0x38] sm:$0xff]
    %v1938 = vld [vmem:[#allocation12 + $0x40] sm:$0xff]
    %v1939 = vld [vmem:[#allocation12 + $0x48] sm:$0xff]
    %v1940 = vld [vmem:[#allocation12 + $0x50] sm:$0xff]
    %v1941 = vld [vmem:[#allocation12 + $0x58] sm:$0xff]
    %v1942 = vld [vmem:[#allocation12 + $0x60] sm:$0xff]
    %v1943 = vld [vmem:[#allocation12 + $0x68] sm:$0xff]
    %v1944 = vld [vmem:[#allocation12 + $0x70] sm:$0xff]
    %v1945 = vld [vmem:[#allocation12 + $0x78] sm:$0xff]
    %v1946 = vld [vmem:[#allocation12 + $0x80] sm:$0xff]
    %v1947 = vld [vmem:[#allocation12 + $0x88] sm:$0xff]
    %v1948 = vld [vmem:[#allocation12 + $0x90] sm:$0xff]
    %v1949 = vld [vmem:[#allocation12 + $0x98] sm:$0xff]
    %v1950 = vld [vmem:[#allocation12 + $0xa0] sm:$0xff]
    %v1951 = vld [vmem:[#allocation12 + $0xa8] sm:$0xff]
    %v1952 = vld [vmem:[#allocation12 + $0xb0] sm:$0xff]
    %v1953 = vld [vmem:[#allocation12 + $0xb8] sm:$0xff]
    %v1954 = vld [vmem:[#allocation12 + $0xc0] sm:$0xff]
    %v1955 = vld [vmem:[#allocation12 + $0xc8] sm:$0xff]
    %v1956 = vld [vmem:[#allocation12 + $0xd0] sm:$0xff]
    %v1957 = vld [vmem:[#allocation12 + $0xd8] sm:$0xff]
    %v1958 = vld [vmem:[#allocation12 + $0xe0] sm:$0xff]
    %v1959 = vld [vmem:[#allocation12 + $0xe8] sm:$0xff]
    %v1960 = vld [vmem:[#allocation12 + $0xf0] sm:$0xff]
    %v1961 = vld [vmem:[#allocation12 + $0xf8] sm:$0xff]
    %v1962 = vld [vmem:[#allocation12 + $0x100] sm:$0xff]
    %v1963 = vld [vmem:[#allocation12 + $0x108] sm:$0xff]
    %v1964 = vld [vmem:[#allocation12 + $0x110] sm:$0xff]
    %v1965 = vld [vmem:[#allocation12 + $0x118] sm:$0xff]
    %v1966 = vld [vmem:[#allocation12 + $0x120] sm:$0xff]
    %v1967 = vld [vmem:[#allocation12 + $0x128] sm:$0xff]
    %v1968 = vld [vmem:[#allocation12 + $0x130] sm:$0xff]
    %v1969 = vld [vmem:[#allocation12 + $0x138] sm:$0xff]
    %v1970 = vld [vmem:[#allocation12 + $0x140] sm:$0xff]
    %v1971 = vld [vmem:[#allocation12 + $0x148] sm:$0xff]
    %v1972 = vld [vmem:[#allocation12 + $0x150] sm:$0xff]
    %v1973 = vld [vmem:[#allocation12 + $0x158] sm:$0xff]
    %v1974 = vld [vmem:[#allocation12 + $0x160] sm:$0xff]
    %v1975 = vld [vmem:[#allocation12 + $0x168] sm:$0xff]
    %v1976 = vld [vmem:[#allocation12 + $0x170] sm:$0xff]
    %v1977 = vld [vmem:[#allocation12 + $0x178] sm:$0xff]
    %v1978 = vld [vmem:[#allocation12 + $0x180] sm:$0xff]
    %v1979 = vld [vmem:[#allocation12 + $0x188] sm:$0xff]
    %v1980 = vld [vmem:[#allocation12 + $0x190] sm:$0xff]
    %v1981 = vld [vmem:[#allocation12 + $0x198] sm:$0xff]
    %v1982 = vld [vmem:[#allocation12 + $0x1a0] sm:$0xff]
    %v1983 = vld [vmem:[#allocation12 + $0x1a8] sm:$0xff]
    %v1984 = vld [vmem:[#allocation12 + $0x1b0] sm:$0xff]
    %v1985 = vld [vmem:[#allocation12 + $0x1b8] sm:$0xff]
    %v1986 = vld [vmem:[#allocation12 + $0x1c0] sm:$0xff]
    %v1987 = vld [vmem:[#allocation12 + $0x1c8] sm:$0xff]
    %v1988 = vld [vmem:[#allocation12 + $0x1d0] sm:$0xff]
    %v1989 = vld [vmem:[#allocation12 + $0x1d8] sm:$0xff]
    %v1990 = vld [vmem:[#allocation12 + $0x1e0] sm:$0xff]
    %v1991 = vld [vmem:[#allocation12 + $0x1e8] sm:$0xff]
    %v1992 = vld [vmem:[#allocation12 + $0x1f0] sm:$0xff]
    %v1993 = vld [vmem:[#allocation12 + $0x1f8] sm:$0xff]
    %1994 = vmatprep.subr.mxu0 %v1931
    %1995 = vmatpush1.msra.mxu0 %v1930
    %1996 = vmatprep.subr.mxu0 %v1935
    %1997 = vmatpush1.msra.mxu0 %v1934
    %1998 = vmatprep.subr.mxu0 %v1939
    %1999 = vmatpush1.msra.mxu0 %v1938
    %2000 = vmatprep.subr.mxu0 %v1943
    %2001 = vmatpush1.msra.mxu0 %v1942
    %2002 = vmatprep.subr.mxu0 %v1947
    %2003 = vmatpush1.msra.mxu0 %v1946
    %2004 = vmatprep.subr.mxu0 %v1951
    %2005 = vmatpush1.msra.mxu0 %v1950
    %2006 = vmatprep.subr.mxu0 %v1955
    %2007 = vmatpush1.msra.mxu0 %v1954
    %2008 = vmatprep.subr.mxu0 %v1959
    %2009 = vmatpush1.msra.mxu0 %v1958
    %2010 = vmatprep.subr.mxu0 %v1963
    %2011 = vmatpush1.msra.mxu0 %v1962
    %2012 = vmatprep.subr.mxu0 %v1967
    %2013 = vmatpush1.msra.mxu0 %v1966
    %2014 = vmatprep.subr.mxu0 %v1971
    %2015 = vmatpush1.msra.mxu0 %v1970
    %2016 = vmatprep.subr.mxu0 %v1975
    %2017 = vmatpush1.msra.mxu0 %v1974
    %2018 = vmatprep.subr.mxu0 %v1979
    %2019 = vmatpush1.msra.mxu0 %v1978
    %2020 = vmatprep.subr.mxu0 %v1983
    %2021 = vmatpush1.msra.mxu0 %v1982
    %2022 = vmatprep.subr.mxu0 %v1987
    %2023 = vmatpush1.msra.mxu0 %v1986
    %2024 = vmatprep.subr.mxu0 %v1991
    %2025 = vmatpush1.msra.mxu0 %v1990
    %2026 = vmatprep.subr.mxu0 0.0
    %2027 = vmatpush1.msra.mxu0 0.0
    %2028 = vmatprep.subr.mxu0 0.0
    %2029 = vmatpush1.msra.mxu0 0.0
    %2030 = vmatprep.subr.mxu0 0.0
    %2031 = vmatpush1.msra.mxu0 0.0
    %2032 = vmatprep.subr.mxu0 0.0
    %2033 = vmatpush1.msra.mxu0 0.0
    %2034 = vmatprep.subr.mxu0 0.0
    %2035 = vmatpush1.msra.mxu0 0.0
    %2036 = vmatprep.subr.mxu0 0.0
    %2037 = vmatpush1.msra.mxu0 0.0
    %2038 = vmatprep.subr.mxu0 0.0
    %2039 = vmatpush1.msra.mxu0 0.0
    %2040 = vmatprep.subr.mxu0 0.0
    %2041 = vmatpush1.msra.mxu0 0.0
    %2042 = vmatprep.subr.mxu0 0.0
    %2043 = vmatpush1.msra.mxu0 0.0
    %2044 = vmatprep.subr.mxu0 0.0
    %2045 = vmatpush1.msra.mxu0 0.0
    %2046 = vmatprep.subr.mxu0 0.0
    %2047 = vmatpush1.msra.mxu0 0.0
    %2048 = vmatprep.subr.mxu0 0.0
    %2049 = vmatpush1.msra.mxu0 0.0
    %2050 = vmatprep.subr.mxu0 0.0
    %2051 = vmatpush1.msra.mxu0 0.0
    %2052 = vmatprep.subr.mxu0 0.0
    %2053 = vmatpush1.msra.mxu0 0.0
    %2054 = vmatprep.subr.mxu0 0.0
    %2055 = vmatpush1.msra.mxu0 0.0
    %2056 = vmatprep.subr.mxu0 0.0
    %2057 = vmatpush1.msra.mxu0 0.0
    %2058 = vmatprep.mubr.f32.mxu0 0.0
    %2059 = vmatmul.mubr.f32.gmra.mrb[0].mxu0 %v1929
    %v2060 = vpop.f32.mrb[0].mxu0
    %v2061 = vadd.f32 0.0, %v2060
    %v2062 = vpop.f32.mrb[0].mxu0
    %v2063 = vadd.f32 0.0, %v2062
    %2064 = vdwg.mxu0
    %2065 = vmatprep.subr.mxu0 %v1933
    %2066 = vmatpush1.msra.mxu0 %v1932
    %2067 = vmatprep.subr.mxu0 %v1937
    %2068 = vmatpush1.msra.mxu0 %v1936
    %2069 = vmatprep.subr.mxu0 %v1941
    %2070 = vmatpush1.msra.mxu0 %v1940
    %2071 = vmatprep.subr.mxu0 %v1945
    %2072 = vmatpush1.msra.mxu0 %v1944
    %2073 = vmatprep.subr.mxu0 %v1949
    %2074 = vmatpush1.msra.mxu0 %v1948
    %2075 = vmatprep.subr.mxu0 %v1953
    %2076 = vmatpush1.msra.mxu0 %v1952
    %2077 = vmatprep.subr.mxu0 %v1957
    %2078 = vmatpush1.msra.mxu0 %v1956
    %2079 = vmatprep.subr.mxu0 %v1961
    %2080 = vmatpush1.msra.mxu0 %v1960
    %2081 = vmatprep.subr.mxu0 %v1965
    %2082 = vmatpush1.msra.mxu0 %v1964
    %2083 = vmatprep.subr.mxu0 %v1969
    %2084 = vmatpush1.msra.mxu0 %v1968
    %2085 = vmatprep.subr.mxu0 %v1973
    %2086 = vmatpush1.msra.mxu0 %v1972
    %2087 = vmatprep.subr.mxu0 %v1977
    %2088 = vmatpush1.msra.mxu0 %v1976
    %2089 = vmatprep.subr.mxu0 %v1981
    %2090 = vmatpush1.msra.mxu0 %v1980
    %2091 = vmatprep.subr.mxu0 %v1985
    %2092 = vmatpush1.msra.mxu0 %v1984
    %2093 = vmatprep.subr.mxu0 %v1989
    %2094 = vmatpush1.msra.mxu0 %v1988
    %2095 = vmatprep.subr.mxu0 %v1993
    %2096 = vmatpush1.msra.mxu0 %v1992
    %2097 = vmatprep.subr.mxu0 0.0
    %2098 = vmatpush1.msra.mxu0 0.0
    %2099 = vmatprep.subr.mxu0 0.0
    %2100 = vmatpush1.msra.mxu0 0.0
    %2101 = vmatprep.subr.mxu0 0.0
    %2102 = vmatpush1.msra.mxu0 0.0
    %2103 = vmatprep.subr.mxu0 0.0
    %2104 = vmatpush1.msra.mxu0 0.0
    %2105 = vmatprep.subr.mxu0 0.0
    %2106 = vmatpush1.msra.mxu0 0.0
    %2107 = vmatprep.subr.mxu0 0.0
    %2108 = vmatpush1.msra.mxu0 0.0
    %2109 = vmatprep.subr.mxu0 0.0
    %2110 = vmatpush1.msra.mxu0 0.0
    %2111 = vmatprep.subr.mxu0 0.0
    %2112 = vmatpush1.msra.mxu0 0.0
    %2113 = vmatprep.subr.mxu0 0.0
    %2114 = vmatpush1.msra.mxu0 0.0
    %2115 = vmatprep.subr.mxu0 0.0
    %2116 = vmatpush1.msra.mxu0 0.0
    %2117 = vmatprep.subr.mxu0 0.0
    %2118 = vmatpush1.msra.mxu0 0.0
    %2119 = vmatprep.subr.mxu0 0.0
    %2120 = vmatpush1.msra.mxu0 0.0
    %2121 = vmatprep.subr.mxu0 0.0
    %2122 = vmatpush1.msra.mxu0 0.0
    %2123 = vmatprep.subr.mxu0 0.0
    %2124 = vmatpush1.msra.mxu0 0.0
    %2125 = vmatprep.subr.mxu0 0.0
    %2126 = vmatpush1.msra.mxu0 0.0
    %2127 = vmatprep.subr.mxu0 0.0
    %2128 = vmatpush1.msra.mxu0 0.0
    %2129 = vmatprep.mubr.f32.mxu0 0.0
    %2130 = vmatmul.mubr.f32.gmra.mrb[0].mxu0 %v1929
    %v2131 = vpop.f32.mrb[0].mxu0
    %v2132 = vadd.f32 0.0, %v2131
    %v2133 = vpop.f32.mrb[0].mxu0
    %v2134 = vadd.f32 0.0, %v2133
    %2135 = vdwg.mxu0
    %v2136 = vadd.f32 %v1925, %v2061
    %v2137 = vadd.f32 %v1926, %v2063
    %v2138 = vadd.f32 %v1927, %v2132
    %v2139 = vadd.f32 %v1928, %v2134
    %v2140 = vxor.u32 %v2136, 2147483648
    %v2141 = vmul.f32 %v2140, 1.442695
    %v2142 = vpow.pop %v2141
    %v2143 = vadd.f32 %v2142, 1.0
    %v2144 = vrcp.pop %v2143
    %v2145 = vmul.f32 1.0, %v2144
    %v2146 = vxor.u32 %v2137, 2147483648
    %v2147 = vmul.f32 %v2146, 1.442695
    %v2148 = vpow.pop %v2147
    %v2149 = vadd.f32 %v2148, 1.0
    %v2150 = vrcp.pop %v2149
    %v2151 = vmul.f32 1.0, %v2150
    %v2152 = vtanh.pop %v2138
    %v2153 = vxor.u32 %v2139, 2147483648
    %v2154 = vmul.f32 %v2153, 1.442695
    %v2155 = vpow.pop %v2154
    %v2156 = vadd.f32 %v2155, 1.0
    %v2157 = vrcp.pop %v2156
    %v2158 = vmul.f32 1.0, %v2157
    %v2159 = vld [vmem:[#allocation5] sm:$0xff]
    %v2160 = vmul.f32 %v2151, %v2159
    %v2161 = vmul.f32 %v2145, %v2152
    %v2162 = vadd.f32 %v2160, %v2161
    %v2163 = vtanh.pop %v2162
    %v2164 = vmul.f32 %v2158, %v2163
    %2165 = vst [vmem:[#allocation5] sm:$0xff] %v2162
    %2166 = vst [vmem:[#allocation4] sm:$0xff] %v2164
    %s2167 = scalar_lea.vmem [#allocation3], 48
    %2168 = vst [vmem:[%s2167] sm:$0xff] %v2164
    %s2169 = scalar_lea.vmem [#allocation2], 224
    %v2170 = vld [vmem:[%s2169] sm:$0xff]
    %v2171 = vld [vmem:[%s2169 + $0x8] sm:$0xff]
    %v2172 = vld [vmem:[%s2169 + $0x10] sm:$0xff]
    %v2173 = vld [vmem:[%s2169 + $0x18] sm:$0xff]
    %v2174 = vld [vmem:[#allocation4] sm:$0xff]
    %v2175 = vld [vmem:[#allocation12] sm:$0xff]
    %v2176 = vld [vmem:[#allocation12 + $0x8] sm:$0xff]
    %v2177 = vld [vmem:[#allocation12 + $0x10] sm:$0xff]
    %v2178 = vld [vmem:[#allocation12 + $0x18] sm:$0xff]
    %v2179 = vld [vmem:[#allocation12 + $0x20] sm:$0xff]
    %v2180 = vld [vmem:[#allocation12 + $0x28] sm:$0xff]
    %v2181 = vld [vmem:[#allocation12 + $0x30] sm:$0xff]
    %v2182 = vld [vmem:[#allocation12 + $0x38] sm:$0xff]
    %v2183 = vld [vmem:[#allocation12 + $0x40] sm:$0xff]
    %v2184 = vld [vmem:[#allocation12 + $0x48] sm:$0xff]
    %v2185 = vld [vmem:[#allocation12 + $0x50] sm:$0xff]
    %v2186 = vld [vmem:[#allocation12 + $0x58] sm:$0xff]
    %v2187 = vld [vmem:[#allocation12 + $0x60] sm:$0xff]
    %v2188 = vld [vmem:[#allocation12 + $0x68] sm:$0xff]
    %v2189 = vld [vmem:[#allocation12 + $0x70] sm:$0xff]
    %v2190 = vld [vmem:[#allocation12 + $0x78] sm:$0xff]
    %v2191 = vld [vmem:[#allocation12 + $0x80] sm:$0xff]
    %v2192 = vld [vmem:[#allocation12 + $0x88] sm:$0xff]
    %v2193 = vld [vmem:[#allocation12 + $0x90] sm:$0xff]
    %v2194 = vld [vmem:[#allocation12 + $0x98] sm:$0xff]
    %v2195 = vld [vmem:[#allocation12 + $0xa0] sm:$0xff]
    %v2196 = vld [vmem:[#allocation12 + $0xa8] sm:$0xff]
    %v2197 = vld [vmem:[#allocation12 + $0xb0] sm:$0xff]
    %v2198 = vld [vmem:[#allocation12 + $0xb8] sm:$0xff]
    %v2199 = vld [vmem:[#allocation12 + $0xc0] sm:$0xff]
    %v2200 = vld [vmem:[#allocation12 + $0xc8] sm:$0xff]
    %v2201 = vld [vmem:[#allocation12 + $0xd0] sm:$0xff]
    %v2202 = vld [vmem:[#allocation12 + $0xd8] sm:$0xff]
    %v2203 = vld [vmem:[#allocation12 + $0xe0] sm:$0xff]
    %v2204 = vld [vmem:[#allocation12 + $0xe8] sm:$0xff]
    %v2205 = vld [vmem:[#allocation12 + $0xf0] sm:$0xff]
    %v2206 = vld [vmem:[#allocation12 + $0xf8] sm:$0xff]
    %v2207 = vld [vmem:[#allocation12 + $0x100] sm:$0xff]
    %v2208 = vld [vmem:[#allocation12 + $0x108] sm:$0xff]
    %v2209 = vld [vmem:[#allocation12 + $0x110] sm:$0xff]
    %v2210 = vld [vmem:[#allocation12 + $0x118] sm:$0xff]
    %v2211 = vld [vmem:[#allocation12 + $0x120] sm:$0xff]
    %v2212 = vld [vmem:[#allocation12 + $0x128] sm:$0xff]
    %v2213 = vld [vmem:[#allocation12 + $0x130] sm:$0xff]
    %v2214 = vld [vmem:[#allocation12 + $0x138] sm:$0xff]
    %v2215 = vld [vmem:[#allocation12 + $0x140] sm:$0xff]
    %v2216 = vld [vmem:[#allocation12 + $0x148] sm:$0xff]
    %v2217 = vld [vmem:[#allocation12 + $0x150] sm:$0xff]
    %v2218 = vld [vmem:[#allocation12 + $0x158] sm:$0xff]
    %v2219 = vld [vmem:[#allocation12 + $0x160] sm:$0xff]
    %v2220 = vld [vmem:[#allocation12 + $0x168] sm:$0xff]
    %v2221 = vld [vmem:[#allocation12 + $0x170] sm:$0xff]
    %v2222 = vld [vmem:[#allocation12 + $0x178] sm:$0xff]
    %v2223 = vld [vmem:[#allocation12 + $0x180] sm:$0xff]
    %v2224 = vld [vmem:[#allocation12 + $0x188] sm:$0xff]
    %v2225 = vld [vmem:[#allocation12 + $0x190] sm:$0xff]
    %v2226 = vld [vmem:[#allocation12 + $0x198] sm:$0xff]
    %v2227 = vld [vmem:[#allocation12 + $0x1a0] sm:$0xff]
    %v2228 = vld [vmem:[#allocation12 + $0x1a8] sm:$0xff]
    %v2229 = vld [vmem:[#allocation12 + $0x1b0] sm:$0xff]
    %v2230 = vld [vmem:[#allocation12 + $0x1b8] sm:$0xff]
    %v2231 = vld [vmem:[#allocation12 + $0x1c0] sm:$0xff]
    %v2232 = vld [vmem:[#allocation12 + $0x1c8] sm:$0xff]
    %v2233 = vld [vmem:[#allocation12 + $0x1d0] sm:$0xff]
    %v2234 = vld [vmem:[#allocation12 + $0x1d8] sm:$0xff]
    %v2235 = vld [vmem:[#allocation12 + $0x1e0] sm:$0xff]
    %v2236 = vld [vmem:[#allocation12 + $0x1e8] sm:$0xff]
    %v2237 = vld [vmem:[#allocation12 + $0x1f0] sm:$0xff]
    %v2238 = vld [vmem:[#allocation12 + $0x1f8] sm:$0xff]
    %2239 = vmatprep.subr.mxu0 %v2176
    %2240 = vmatpush1.msra.mxu0 %v2175
    %2241 = vmatprep.subr.mxu0 %v2180
    %2242 = vmatpush1.msra.mxu0 %v2179
    %2243 = vmatprep.subr.mxu0 %v2184
    %2244 = vmatpush1.msra.mxu0 %v2183
    %2245 = vmatprep.subr.mxu0 %v2188
    %2246 = vmatpush1.msra.mxu0 %v2187
    %2247 = vmatprep.subr.mxu0 %v2192
    %2248 = vmatpush1.msra.mxu0 %v2191
    %2249 = vmatprep.subr.mxu0 %v2196
    %2250 = vmatpush1.msra.mxu0 %v2195
    %2251 = vmatprep.subr.mxu0 %v2200
    %2252 = vmatpush1.msra.mxu0 %v2199
    %2253 = vmatprep.subr.mxu0 %v2204
    %2254 = vmatpush1.msra.mxu0 %v2203
    %2255 = vmatprep.subr.mxu0 %v2208
    %2256 = vmatpush1.msra.mxu0 %v2207
    %2257 = vmatprep.subr.mxu0 %v2212
    %2258 = vmatpush1.msra.mxu0 %v2211
    %2259 = vmatprep.subr.mxu0 %v2216
    %2260 = vmatpush1.msra.mxu0 %v2215
    %2261 = vmatprep.subr.mxu0 %v2220
    %2262 = vmatpush1.msra.mxu0 %v2219
    %2263 = vmatprep.subr.mxu0 %v2224
    %2264 = vmatpush1.msra.mxu0 %v2223
    %2265 = vmatprep.subr.mxu0 %v2228
    %2266 = vmatpush1.msra.mxu0 %v2227
    %2267 = vmatprep.subr.mxu0 %v2232
    %2268 = vmatpush1.msra.mxu0 %v2231
    %2269 = vmatprep.subr.mxu0 %v2236
    %2270 = vmatpush1.msra.mxu0 %v2235
    %2271 = vmatprep.subr.mxu0 0.0
    %2272 = vmatpush1.msra.mxu0 0.0
    %2273 = vmatprep.subr.mxu0 0.0
    %2274 = vmatpush1.msra.mxu0 0.0
    %2275 = vmatprep.subr.mxu0 0.0
    %2276 = vmatpush1.msra.mxu0 0.0
    %2277 = vmatprep.subr.mxu0 0.0
    %2278 = vmatpush1.msra.mxu0 0.0
    %2279 = vmatprep.subr.mxu0 0.0
    %2280 = vmatpush1.msra.mxu0 0.0
    %2281 = vmatprep.subr.mxu0 0.0
    %2282 = vmatpush1.msra.mxu0 0.0
    %2283 = vmatprep.subr.mxu0 0.0
    %2284 = vmatpush1.msra.mxu0 0.0
    %2285 = vmatprep.subr.mxu0 0.0
    %2286 = vmatpush1.msra.mxu0 0.0
    %2287 = vmatprep.subr.mxu0 0.0
    %2288 = vmatpush1.msra.mxu0 0.0
    %2289 = vmatprep.subr.mxu0 0.0
    %2290 = vmatpush1.msra.mxu0 0.0
    %2291 = vmatprep.subr.mxu0 0.0
    %2292 = vmatpush1.msra.mxu0 0.0
    %2293 = vmatprep.subr.mxu0 0.0
    %2294 = vmatpush1.msra.mxu0 0.0
    %2295 = vmatprep.subr.mxu0 0.0
    %2296 = vmatpush1.msra.mxu0 0.0
    %2297 = vmatprep.subr.mxu0 0.0
    %2298 = vmatpush1.msra.mxu0 0.0
    %2299 = vmatprep.subr.mxu0 0.0
    %2300 = vmatpush1.msra.mxu0 0.0
    %2301 = vmatprep.subr.mxu0 0.0
    %2302 = vmatpush1.msra.mxu0 0.0
    %2303 = vmatprep.mubr.f32.mxu0 0.0
    %2304 = vmatmul.mubr.f32.gmra.mrb[0].mxu0 %v2174
    %v2305 = vpop.f32.mrb[0].mxu0
    %v2306 = vadd.f32 0.0, %v2305
    %v2307 = vpop.f32.mrb[0].mxu0
    %v2308 = vadd.f32 0.0, %v2307
    %2309 = vdwg.mxu0
    %2310 = vmatprep.subr.mxu0 %v2178
    %2311 = vmatpush1.msra.mxu0 %v2177
    %2312 = vmatprep.subr.mxu0 %v2182
    %2313 = vmatpush1.msra.mxu0 %v2181
    %2314 = vmatprep.subr.mxu0 %v2186
    %2315 = vmatpush1.msra.mxu0 %v2185
    %2316 = vmatprep.subr.mxu0 %v2190
    %2317 = vmatpush1.msra.mxu0 %v2189
    %2318 = vmatprep.subr.mxu0 %v2194
    %2319 = vmatpush1.msra.mxu0 %v2193
    %2320 = vmatprep.subr.mxu0 %v2198
    %2321 = vmatpush1.msra.mxu0 %v2197
    %2322 = vmatprep.subr.mxu0 %v2202
    %2323 = vmatpush1.msra.mxu0 %v2201
    %2324 = vmatprep.subr.mxu0 %v2206
    %2325 = vmatpush1.msra.mxu0 %v2205
    %2326 = vmatprep.subr.mxu0 %v2210
    %2327 = vmatpush1.msra.mxu0 %v2209
    %2328 = vmatprep.subr.mxu0 %v2214
    %2329 = vmatpush1.msra.mxu0 %v2213
    %2330 = vmatprep.subr.mxu0 %v2218
    %2331 = vmatpush1.msra.mxu0 %v2217
    %2332 = vmatprep.subr.mxu0 %v2222
    %2333 = vmatpush1.msra.mxu0 %v2221
    %2334 = vmatprep.subr.mxu0 %v2226
    %2335 = vmatpush1.msra.mxu0 %v2225
    %2336 = vmatprep.subr.mxu0 %v2230
    %2337 = vmatpush1.msra.mxu0 %v2229
    %2338 = vmatprep.subr.mxu0 %v2234
    %2339 = vmatpush1.msra.mxu0 %v2233
    %2340 = vmatprep.subr.mxu0 %v2238
    %2341 = vmatpush1.msra.mxu0 %v2237
    %2342 = vmatprep.subr.mxu0 0.0
    %2343 = vmatpush1.msra.mxu0 0.0
    %2344 = vmatprep.subr.mxu0 0.0
    %2345 = vmatpush1.msra.mxu0 0.0
    %2346 = vmatprep.subr.mxu0 0.0
    %2347 = vmatpush1.msra.mxu0 0.0
    %2348 = vmatprep.subr.mxu0 0.0
    %2349 = vmatpush1.msra.mxu0 0.0
    %2350 = vmatprep.subr.mxu0 0.0
    %2351 = vmatpush1.msra.mxu0 0.0
    %2352 = vmatprep.subr.mxu0 0.0
    %2353 = vmatpush1.msra.mxu0 0.0
    %2354 = vmatprep.subr.mxu0 0.0
    %2355 = vmatpush1.msra.mxu0 0.0
    %2356 = vmatprep.subr.mxu0 0.0
    %2357 = vmatpush1.msra.mxu0 0.0
    %2358 = vmatprep.subr.mxu0 0.0
    %2359 = vmatpush1.msra.mxu0 0.0
    %2360 = vmatprep.subr.mxu0 0.0
    %2361 = vmatpush1.msra.mxu0 0.0
    %2362 = vmatprep.subr.mxu0 0.0
    %2363 = vmatpush1.msra.mxu0 0.0
    %2364 = vmatprep.subr.mxu0 0.0
    %2365 = vmatpush1.msra.mxu0 0.0
    %2366 = vmatprep.subr.mxu0 0.0
    %2367 = vmatpush1.msra.mxu0 0.0
    %2368 = vmatprep.subr.mxu0 0.0
    %2369 = vmatpush1.msra.mxu0 0.0
    %2370 = vmatprep.subr.mxu0 0.0
    %2371 = vmatpush1.msra.mxu0 0.0
    %2372 = vmatprep.subr.mxu0 0.0
    %2373 = vmatpush1.msra.mxu0 0.0
    %2374 = vmatprep.mubr.f32.mxu0 0.0
    %2375 = vmatmul.mubr.f32.gmra.mrb[0].mxu0 %v2174
    %v2376 = vpop.f32.mrb[0].mxu0
    %v2377 = vadd.f32 0.0, %v2376
    %v2378 = vpop.f32.mrb[0].mxu0
    %v2379 = vadd.f32 0.0, %v2378
    %2380 = vdwg.mxu0
    %v2381 = vadd.f32 %v2170, %v2306
    %v2382 = vadd.f32 %v2171, %v2308
    %v2383 = vadd.f32 %v2172, %v2377
    %v2384 = vadd.f32 %v2173, %v2379
    %v2385 = vxor.u32 %v2381, 2147483648
    %v2386 = vmul.f32 %v2385, 1.442695
    %v2387 = vpow.pop %v2386
    %v2388 = vadd.f32 %v2387, 1.0
    %v2389 = vrcp.pop %v2388
    %v2390 = vmul.f32 1.0, %v2389
    %v2391 = vxor.u32 %v2382, 2147483648
    %v2392 = vmul.f32 %v2391, 1.442695
    %v2393 = vpow.pop %v2392
    %v2394 = vadd.f32 %v2393, 1.0
    %v2395 = vrcp.pop %v2394
    %v2396 = vmul.f32 1.0, %v2395
    %v2397 = vtanh.pop %v2383
    %v2398 = vxor.u32 %v2384, 2147483648
    %v2399 = vmul.f32 %v2398, 1.442695
    %v2400 = vpow.pop %v2399
    %v2401 = vadd.f32 %v2400, 1.0
    %v2402 = vrcp.pop %v2401
    %v2403 = vmul.f32 1.0, %v2402
    %v2404 = vld [vmem:[#allocation5] sm:$0xff]
    %v2405 = vmul.f32 %v2396, %v2404
    %v2406 = vmul.f32 %v2390, %v2397
    %v2407 = vadd.f32 %v2405, %v2406
    %v2408 = vtanh.pop %v2407
    %v2409 = vmul.f32 %v2403, %v2408
    %2410 = vst [vmem:[#allocation5] sm:$0xff] %v2407
    %2411 = vst [vmem:[#allocation4] sm:$0xff] %v2409
    %s2412 = scalar_lea.vmem [#allocation3], 56
    %2413 = vst [vmem:[%s2412] sm:$0xff] %v2409
    %v2414 = vld [vmem:[#allocation4] sm:$0xff]
    %2415 = vst [vmem:[#allocation16] sm:$0xff] %v2414
    %v2416 = vld [vmem:[#allocation5] sm:$0xff]
    %2417 = vst [vmem:[#allocation18] sm:$0xff] %v2416
    %v2418 = vld [vmem:[#allocation3] sm:$0xff]
    %v2419 = vld [vmem:[#allocation3 + $0x8] sm:$0xff]
    %v2420 = vld [vmem:[#allocation3 + $0x10] sm:$0xff]
    %v2421 = vld [vmem:[#allocation3 + $0x18] sm:$0xff]
    %v2422 = vld [vmem:[#allocation3 + $0x20] sm:$0xff]
    %v2423 = vld [vmem:[#allocation3 + $0x28] sm:$0xff]
    %v2424 = vld [vmem:[#allocation3 + $0x30] sm:$0xff]
    %v2425 = vld [vmem:[#allocation3 + $0x38] sm:$0xff]
    %v2426 = vld [vmem:[#allocation14] sm:$0xff]
    %v2427 = vld [vmem:[#allocation14 + $0x8] sm:$0xff]
    %v2428 = vld [vmem:[#allocation14 + $0x10] sm:$0xff]
    %v2429 = vld [vmem:[#allocation14 + $0x18] sm:$0xff]
    %v2430 = vld [vmem:[#allocation14 + $0x20] sm:$0xff]
    %v2431 = vld [vmem:[#allocation14 + $0x28] sm:$0xff]
    %v2432 = vld [vmem:[#allocation14 + $0x30] sm:$0xff]
    %v2433 = vld [vmem:[#allocation14 + $0x38] sm:$0xff]
    %v2434 = vld [vmem:[#allocation14 + $0x40] sm:$0xff]
    %v2435 = vld [vmem:[#allocation14 + $0x48] sm:$0xff]
    %v2436 = vld [vmem:[#allocation14 + $0x50] sm:$0xff]
    %v2437 = vld [vmem:[#allocation14 + $0x58] sm:$0xff]
    %v2438 = vld [vmem:[#allocation14 + $0x60] sm:$0xff]
    %v2439 = vld [vmem:[#allocation14 + $0x68] sm:$0xff]
    %v2440 = vld [vmem:[#allocation14 + $0x70] sm:$0xff]
    %v2441 = vld [vmem:[#allocation14 + $0x78] sm:$0xff]
    %v2442 = vld [vmem:[%s7] sm:$0x1]
    %v2444 = vlaneseq
    %v2445 = vshrl.u32 %v2444, 7
    %v2446 = vsub.s32 0, %v2445
    %v2447 = vrot.slane %v2442, %v2446
    %2449 = vmatprep.subr.mxu0 0.0
    %2450 = vmatpush1.msra.mxu0 %v2426
    %2451 = vmatprep.subr.mxu0 0.0
    %2452 = vmatpush1.msra.mxu0 %v2427
    %2453 = vmatprep.subr.mxu0 0.0
    %2454 = vmatpush1.msra.mxu0 %v2428
    %2455 = vmatprep.subr.mxu0 0.0
    %2456 = vmatpush1.msra.mxu0 %v2429
    %2457 = vmatprep.subr.mxu0 0.0
    %2458 = vmatpush1.msra.mxu0 %v2430
    %2459 = vmatprep.subr.mxu0 0.0
    %2460 = vmatpush1.msra.mxu0 %v2431
    %2461 = vmatprep.subr.mxu0 0.0
    %2462 = vmatpush1.msra.mxu0 %v2432
    %2463 = vmatprep.subr.mxu0 0.0
    %2464 = vmatpush1.msra.mxu0 %v2433
    %2465 = vmatprep.subr.mxu0 0.0
    %2466 = vmatpush1.msra.mxu0 %v2434
    %2467 = vmatprep.subr.mxu0 0.0
    %2468 = vmatpush1.msra.mxu0 %v2435
    %2469 = vmatprep.subr.mxu0 0.0
    %2470 = vmatpush1.msra.mxu0 %v2436
    %2471 = vmatprep.subr.mxu0 0.0
    %2472 = vmatpush1.msra.mxu0 %v2437
    %2473 = vmatprep.subr.mxu0 0.0
    %2474 = vmatpush1.msra.mxu0 %v2438
    %2475 = vmatprep.subr.mxu0 0.0
    %2476 = vmatpush1.msra.mxu0 %v2439
    %2477 = vmatprep.subr.mxu0 0.0
    %2478 = vmatpush1.msra.mxu0 %v2440
    %2479 = vmatprep.subr.mxu0 0.0
    %2480 = vmatpush1.msra.mxu0 %v2441
    %2481 = vmatprep.subr.mxu0 0.0
    %2482 = vmatpush1.msra.mxu0 0.0
    %2483 = vmatprep.subr.mxu0 0.0
    %2484 = vmatpush1.msra.mxu0 0.0
    %2485 = vmatprep.subr.mxu0 0.0
    %2486 = vmatpush1.msra.mxu0 0.0
    %2487 = vmatprep.subr.mxu0 0.0
    %2488 = vmatpush1.msra.mxu0 0.0
    %2489 = vmatprep.subr.mxu0 0.0
    %2490 = vmatpush1.msra.mxu0 0.0
    %2491 = vmatprep.subr.mxu0 0.0
    %2492 = vmatpush1.msra.mxu0 0.0
    %2493 = vmatprep.subr.mxu0 0.0
    %2494 = vmatpush1.msra.mxu0 0.0
    %2495 = vmatprep.subr.mxu0 0.0
    %2496 = vmatpush1.msra.mxu0 0.0
    %2497 = vmatprep.subr.mxu0 0.0
    %2498 = vmatpush1.msra.mxu0 0.0
    %2499 = vmatprep.subr.mxu0 0.0
    %2500 = vmatpush1.msra.mxu0 0.0
    %2501 = vmatprep.subr.mxu0 0.0
    %2502 = vmatpush1.msra.mxu0 0.0
    %2503 = vmatprep.subr.mxu0 0.0
    %2504 = vmatpush1.msra.mxu0 0.0
    %2505 = vmatprep.subr.mxu0 0.0
    %2506 = vmatpush1.msra.mxu0 0.0
    %2507 = vmatprep.subr.mxu0 0.0
    %2508 = vmatpush1.msra.mxu0 0.0
    %2509 = vmatprep.subr.mxu0 0.0
    %2510 = vmatpush1.msra.mxu0 0.0
    %2511 = vmatprep.subr.mxu0 0.0
    %2512 = vmatpush1.msra.mxu0 0.0
    %2513 = vmatprep.mubr.f32.mxu0 0.0
    %2514 = vmatmul.mubr.f32.gmra.mrb[0].mxu0 %v2418
    %v2515 = vpop.f32.mrb[0].mxu0
    %v2516 = vadd.f32 %v2447, %v2515
    %v2517 = vpop.f32.mrb[0].mxu0
    %2518 = vmatprep.mubr.f32.mxu0 0.0
    %2519 = vmatmul.mubr.f32.gmra.mrb[0].mxu0 %v2419
    %v2520 = vpop.f32.mrb[0].mxu0
    %v2521 = vadd.f32 %v2447, %v2520
    %v2522 = vpop.f32.mrb[0].mxu0
    %2523 = vmatprep.mubr.f32.mxu0 0.0
    %2524 = vmatmul.mubr.f32.gmra.mrb[0].mxu0 %v2420
    %v2525 = vpop.f32.mrb[0].mxu0
    %v2526 = vadd.f32 %v2447, %v2525
    %v2527 = vpop.f32.mrb[0].mxu0
    %2528 = vmatprep.mubr.f32.mxu0 0.0
    %2529 = vmatmul.mubr.f32.gmra.mrb[0].mxu0 %v2421
    %v2530 = vpop.f32.mrb[0].mxu0
    %v2531 = vadd.f32 %v2447, %v2530
    %v2532 = vpop.f32.mrb[0].mxu0
    %2533 = vmatprep.mubr.f32.mxu0 0.0
    %2534 = vmatmul.mubr.f32.gmra.mrb[0].mxu0 %v2422
    %v2535 = vpop.f32.mrb[0].mxu0
    %v2536 = vadd.f32 %v2447, %v2535
    %v2537 = vpop.f32.mrb[0].mxu0
    %2538 = vmatprep.mubr.f32.mxu0 0.0
    %2539 = vmatmul.mubr.f32.gmra.mrb[0].mxu0 %v2423
    %v2540 = vpop.f32.mrb[0].mxu0
    %v2541 = vadd.f32 %v2447, %v2540
    %v2542 = vpop.f32.mrb[0].mxu0
    %2543 = vmatprep.mubr.f32.mxu0 0.0
    %2544 = vmatmul.mubr.f32.gmra.mrb[0].mxu0 %v2424
    %v2545 = vpop.f32.mrb[0].mxu0
    %v2546 = vadd.f32 %v2447, %v2545
    %v2547 = vpop.f32.mrb[0].mxu0
    %2548 = vmatprep.mubr.f32.mxu0 0.0
    %2549 = vmatmul.mubr.f32.gmra.mrb[0].mxu0 %v2425
    %v2550 = vpop.f32.mrb[0].mxu0
    %v2551 = vadd.f32 %v2447, %v2550
    %v2552 = vpop.f32.mrb[0].mxu0
    %2553 = vdwg.mxu0
    %2554 = vst [vmem:[#allocation15] sm:$0xff] %v2516
    %2555 = vst [vmem:[#allocation15 + $0x8] sm:$0xff] %v2521
    %2556 = vst [vmem:[#allocation15 + $0x10] sm:$0xff] %v2526
    %2557 = vst [vmem:[#allocation15 + $0x18] sm:$0xff] %v2531
    %2558 = vst [vmem:[#allocation15 + $0x20] sm:$0xff] %v2536
    %2559 = vst [vmem:[#allocation15 + $0x28] sm:$0xff] %v2541
    %2560 = vst [vmem:[#allocation15 + $0x30] sm:$0xff] %v2546
    %2561 = vst [vmem:[#allocation15 + $0x38] sm:$0xff] %v2551
    // Predicated region
    $region54: #{tpu_custom_call.1} parent=1 // pred_check
      _
    $region55: #{tpu_custom_call.1} parent=1 // pred_check_branch
      %2563 = sbr.rel (0) target = $region57
    $region56: #{tpu_custom_call.1} parent=1 // pred_region
      %s2565 = ssub.s32 1024, 1024
      %2566 = vsyncadd [#allocation8], %s2565
      %s2567 = sshll.u32 [#allocation15], 4
      %s2568 = int_to_ptr.vmem [resolvable:$true] %s2567
      %2573 = dma.vmem_to_hbm [thread:$0]  %s2568, 1024, %s8, [#allocation8], 128, 128, 8
    $region57: #{tpu_custom_call.1} parent=1 // pred_fallthru
      _
    // Predicated region
    $region58: #{tpu_custom_call.1} parent=1 // pred_check
      _
    $region59: #{tpu_custom_call.1} parent=1 // pred_check_branch
      %2575 = sbr.rel (0) target = $region61
    $region60: #{tpu_custom_call.1} parent=1 // pred_region
      %s2577 = ssub.s32 128, 128
      %2578 = vsyncadd [#allocation17], %s2577
      %s2580 = sshll.u32 [#allocation16], 4
      %s2581 = int_to_ptr.vmem [resolvable:$true] %s2580
      %2583 = dma.vmem_to_hbm [thread:$0]  %s2581, 128, %s9, [#allocation17]
    $region61: #{tpu_custom_call.1} parent=1 // pred_fallthru
      _
    // Predicated region
    $region62: #{tpu_custom_call.1} parent=1 // pred_check
      _
    $region63: #{tpu_custom_call.1} parent=1 // pred_check_branch
      %2585 = sbr.rel (0) target = $region65
    $region64: #{tpu_custom_call.1} parent=1 // pred_region
      %s2587 = ssub.s32 128, 128
      %2588 = vsyncadd [#allocation17], %s2587
      %s2590 = sshll.u32 [#allocation18], 4
      %s2591 = int_to_ptr.vmem [resolvable:$true] %s2590
      %2593 = dma.vmem_to_hbm [thread:$0]  %s2591, 128, %s10, [#allocation17]
    $region65: #{tpu_custom_call.1} parent=1 // pred_fallthru
      _
    // Predicated region
    $region66: #{tpu_custom_call.1} parent=1 // pred_check
      _
    $region67: #{tpu_custom_call.1} parent=1 // pred_check_branch
      %2595 = sbr.rel (0) target = $region69
    $region68: #{tpu_custom_call.1} parent=1 // pred_region
      %2596 = dma.done [#allocation8], 1024
    $region69: #{tpu_custom_call.1} parent=1 // pred_fallthru
      _
    // Predicated region
    $region70: #{tpu_custom_call.1} parent=1 // pred_check
      _
    $region71: #{tpu_custom_call.1} parent=1 // pred_check_branch
      %2598 = sbr.rel (0) target = $region73
    $region72: #{tpu_custom_call.1} parent=1 // pred_region
      %2599 = dma.done [#allocation17], 128
    $region73: #{tpu_custom_call.1} parent=1 // pred_fallthru
      _
    // Predicated region
    $region74: #{tpu_custom_call.1} parent=1 // pred_check
      _
    $region75: #{tpu_custom_call.1} parent=1 // pred_check_branch
      %2601 = sbr.rel (0) target = $region77
    $region76: #{tpu_custom_call.1} parent=1 // pred_region
      %2602 = dma.done [#allocation17], 128
    $region77: #{tpu_custom_call.1} parent=1 // pred_fallthru
      _
    %2603 = vsyncpa [#allocation7], 1
    %2604 = vsyncpa [#allocation10], 1
    %2605 = vsyncpa [#allocation13], 1
    %2606 = vsyncpa [#allocation8], 1
    %2607 = vsyncpa [#allocation17], 1

</llo_original>
